<compile_context>
chip_gen: v7x
topology: tpu7x:2x2x1
jax: 0.10.0
libtpu: 0.0.40
codegen_flags: <defaults>
</compile_context>

<pallas_src>
import functools

import jax
import jax.numpy as jnp
from jax import lax
from jax.experimental import pallas as pl
from jax.experimental.pallas import tpu as pltpu


# MXU fast path on v5e/v6e/v7x.  Accumulation stays f32 (preferred_element_type);
# softmax / LayerNorm math stays f32.
_MATMUL_DTYPE = jnp.bfloat16

# Row-tile cap for the row-parallel matmul kernels.  256 fits v5e's 16 MiB
# scoped default and v7x's 64 MiB with resident bf16 weights; bump to 512 on
# v6e (128 MiB) for better roofline utilization.
_ROW_TILE_CAP = 256

_PARALLEL_1D = pltpu.CompilerParams(dimension_semantics=("parallel",))


# ----------------------------------------------------------------------------
# In-kernel helpers
# ----------------------------------------------------------------------------
def _dot(a, b):
    return jnp.dot(a.astype(_MATMUL_DTYPE), b.astype(_MATMUL_DTYPE),
                   preferred_element_type=jnp.float32)


def _dot_nt(a, b):
    # a @ b.T without materializing the transpose: contract the last dims.
    return lax.dot_general(a.astype(_MATMUL_DTYPE), b.astype(_MATMUL_DTYPE),
                           dimension_numbers=(((1,), (1,)), ((), ())),
                           preferred_element_type=jnp.float32)


def _layernorm(x, gamma, beta, eps):
    mu = jnp.mean(x, axis=-1, keepdims=True)
    xc = x - mu
    var = jnp.mean(xc * xc, axis=-1, keepdims=True)
    return xc * lax.rsqrt(var + eps) * gamma + beta


def _attn_proj_acc(q, k, v, bias, wo, n_heads, acc):
    """Multi-head attention fused with the output projection.

    q, k, v are lane-dense (L, C); q is pre-scaled.  For each head the
    (Lq, Dh) softmax(qk^T) v output is immediately contracted against the
    corresponding Dh rows of the out-projection weight and accumulated into
    `acc` (f32, already holding residual + out-proj bias), so no per-head
    concatenation / lane re-layout is ever materialized.
    """
    c = q.shape[-1]
    dh = c // n_heads
    for h in range(n_heads):                      # static unroll over heads
        sl = slice(h * dh, (h + 1) * dh)
        s = _dot_nt(q[:, sl], k[:, sl])           # (Lq, Lk) logits, f32
        if bias is not None:
            s = s + bias                          # (1, Lk) broadcast
        m = jnp.max(s, axis=-1, keepdims=True)
        p = jnp.exp(s - m)
        p = p * pl.reciprocal(jnp.sum(p, axis=-1, keepdims=True), approx=True)
        head = _dot(p, v[:, sl])                  # (Lq, Dh) f32
        acc = acc + _dot(head, wo[sl, :])         # per-head out-proj accumulate
    return acc


# ----------------------------------------------------------------------------
# Pallas kernels
# ----------------------------------------------------------------------------
def _posadd_linear_kernel(x_ref, pos_ref, w_ref, b_ref, o_ref):
    # (x + pos) @ w + b
    o_ref[...] = (_dot(x_ref[...] + pos_ref[...], w_ref[...])
                  + b_ref[...]).astype(o_ref.dtype)


def _qkv_proj_kernel(x_ref, pos_ref, wq_ref, bq_ref, wk_ref, bk_ref,
                     wv_ref, bv_ref, q_ref, k_ref, v_ref):
    # q = (x+pos)@Wq + bq (scale folded), k = (x+pos)@Wk + bk, v = x@Wv + bv.
    # Three separate full-lane outputs (no concat).
    x = x_ref[...]
    xp = x + pos_ref[...]
    q_ref[...] = (_dot(xp, wq_ref[...]) + bq_ref[...]).astype(q_ref.dtype)
    k_ref[...] = (_dot(xp, wk_ref[...]) + bk_ref[...]).astype(k_ref.dtype)
    v_ref[...] = (_dot(x, wv_ref[...]) + bv_ref[...]).astype(v_ref.dtype)


def _kv_proj_kernel(x_ref, pos_ref, wk_ref, bk_ref, wv_ref, bv_ref, k_ref, v_ref):
    # k = (x+pos)@Wk + bk, v = x@Wv + bv.
    x = x_ref[...]
    k_ref[...] = (_dot(x + pos_ref[...], wk_ref[...]) + bk_ref[...]).astype(k_ref.dtype)
    v_ref[...] = (_dot(x, wv_ref[...]) + bv_ref[...]).astype(v_ref.dtype)


def _self_attn_out_ln_kernel(q_ref, k_ref, v_ref, res_ref, wo_ref, bo_ref,
                             g_ref, beta_ref, o_ref, *, n_heads, eps):
    # MHA + out-proj + residual + LayerNorm (norm2), per batch.  No attn bias
    # (self_attn_mask is None in this path).
    acc = res_ref[...].astype(jnp.float32) + bo_ref[...]
    acc = _attn_proj_acc(q_ref[...], k_ref[...], v_ref[...], None,
                         wo_ref[...], n_heads, acc)
    o_ref[...] = _layernorm(acc, g_ref[...], beta_ref[...], eps).astype(o_ref.dtype)


def _cross_attn_out_ln_kernel(q_ref, k_ref, v_ref, bias_ref, res_ref, wo_ref,
                              bo_ref, g_ref, beta_ref, o_ref, *, n_heads, eps):
    # MHA with additive -100*mask bias + out-proj + residual + LayerNorm (norm1).
    acc = res_ref[...].astype(jnp.float32) + bo_ref[...]
    acc = _attn_proj_acc(q_ref[...], k_ref[...], v_ref[...], bias_ref[...],
                         wo_ref[...], n_heads, acc)
    o_ref[...] = _layernorm(acc, g_ref[...], beta_ref[...], eps).astype(o_ref.dtype)


def _cross_attn_out_ln_nomask_kernel(q_ref, k_ref, v_ref, res_ref, wo_ref,
                                     bo_ref, g_ref, beta_ref, o_ref, *, n_heads, eps):
    # Bias-free specialization for src_padding_mask is None.
    acc = res_ref[...].astype(jnp.float32) + bo_ref[...]
    acc = _attn_proj_acc(q_ref[...], k_ref[...], v_ref[...], None,
                         wo_ref[...], n_heads, acc)
    o_ref[...] = _layernorm(acc, g_ref[...], beta_ref[...], eps).astype(o_ref.dtype)


def _ffn_add_ln_kernel(x_ref, w1_ref, b1_ref, w2_ref, b2_ref, g_ref, beta_ref,
                       o_ref, *, eps):
    # linear1 -> ReLU -> linear2 -> +residual(x) -> LayerNorm (norm3).
    x = x_ref[...]
    h = jnp.maximum(_dot(x, w1_ref[...]) + b1_ref[...], 0.0)
    y = _dot(h, w2_ref[...]) + b2_ref[...] + x
    o_ref[...] = _layernorm(y, g_ref[...], beta_ref[...], eps).astype(o_ref.dtype)


# ----------------------------------------------------------------------------
# Row tiling / VMEM budget helpers
# ----------------------------------------------------------------------------
def _round_up(x, m):
    return (x + m - 1) // m * m


def _choose_row_tile(m, cap=_ROW_TILE_CAP):
    """Row tile: `cap` for large M (M padded up to a multiple of it), otherwise
    M rounded up to a multiple of 16 (native bf16 sublane packing)."""
    if m >= cap:
        return cap
    return _round_up(m, 16)


def _pad_rows(x, mp):
    m = x.shape[0]
    if mp == m:
        return x
    return jnp.pad(x, ((0, mp - m), (0, 0)))


def _vmem_limit(weight_bytes, tile_bytes):
    # Resident weights + a few pipelined activation tiles + headroom; clamped
    # to 64 MiB so the same budget is legal on v7x (and generous on v5e/v6e).
    need = int(weight_bytes) + 6 * int(tile_bytes) + (4 << 20)
    return int(min(max(need, 32 << 20), 64 << 20))


def _nbytes(*arrs):
    return sum(a.size * a.dtype.itemsize for a in arrs)


# ----------------------------------------------------------------------------
# pallas_call wrappers (row-tiled over M, weights resident)
# ----------------------------------------------------------------------------
# TODO(synk): weight/bias specs with index_map -> (0, 0) never change block; if
#             profiling shows they are double-buffered, mark them
#             pipeline_mode=pl.Buffered(1) to reclaim the duplicate VMEM.
def posadd_linear(x, pos, w, b):
    m, c = x.shape
    n = w.shape[1]
    tm = _choose_row_tile(m)
    mp = _round_up(m, tm)
    xp, pp = _pad_rows(x, mp), _pad_rows(pos, mp)
    row = lambda i: (i, 0)
    const = lambda i: (0, 0)
    out = pl.pallas_call(
        _posadd_linear_kernel,
        out_shape=jax.ShapeDtypeStruct((mp, n), x.dtype),
        grid=(mp // tm,),
        in_specs=[
            pl.BlockSpec((tm, c), row),
            pl.BlockSpec((tm, c), row),
            pl.BlockSpec((c, n), const),
            pl.BlockSpec((1, n), const),
        ],
        out_specs=pl.BlockSpec((tm, n), row),
        compiler_params=pltpu.CompilerParams(
            dimension_semantics=("parallel",),
            vmem_limit_bytes=_vmem_limit(_nbytes(w, b), tm * (2 * c + n) * 4)),
    )(xp, pp, w, b.reshape(1, n))
    return out[:m]


def qkv_proj(x, pos, wq, bq, wk, bk, wv, bv):
    m, c = x.shape
    n = wq.shape[1]
    tm = _choose_row_tile(m)
    mp = _round_up(m, tm)
    xp, pp = _pad_rows(x, mp), _pad_rows(pos, mp)
    row = lambda i: (i, 0)
    const = lambda i: (0, 0)
    wsp = pl.BlockSpec((c, n), const)
    bsp = pl.BlockSpec((1, n), const)
    q, k, v = pl.pallas_call(
        _qkv_proj_kernel,
        out_shape=(jax.ShapeDtypeStruct((mp, n), x.dtype),) * 3,
        grid=(mp // tm,),
        in_specs=[pl.BlockSpec((tm, c), row), pl.BlockSpec((tm, c), row),
                  wsp, bsp, wsp, bsp, wsp, bsp],
        out_specs=(pl.BlockSpec((tm, n), row),) * 3,
        compiler_params=pltpu.CompilerParams(
            dimension_semantics=("parallel",),
            vmem_limit_bytes=_vmem_limit(_nbytes(wq, wk, wv, bq, bk, bv),
                                         tm * (2 * c + 3 * n) * 4)),
    )(xp, pp, wq, bq.reshape(1, n), wk, bk.reshape(1, n), wv, bv.reshape(1, n))
    return q[:m], k[:m], v[:m]


def kv_proj(x, pos, wk, bk, wv, bv):
    m, c = x.shape
    n = wk.shape[1]
    tm = _choose_row_tile(m)
    mp = _round_up(m, tm)
    xp, pp = _pad_rows(x, mp), _pad_rows(pos, mp)
    row = lambda i: (i, 0)
    const = lambda i: (0, 0)
    wsp = pl.BlockSpec((c, n), const)
    bsp = pl.BlockSpec((1, n), const)
    k, v = pl.pallas_call(
        _kv_proj_kernel,
        out_shape=(jax.ShapeDtypeStruct((mp, n), x.dtype),) * 2,
        grid=(mp // tm,),
        in_specs=[pl.BlockSpec((tm, c), row), pl.BlockSpec((tm, c), row),
                  wsp, bsp, wsp, bsp],
        out_specs=(pl.BlockSpec((tm, n), row),) * 2,
        compiler_params=pltpu.CompilerParams(
            dimension_semantics=("parallel",),
            vmem_limit_bytes=_vmem_limit(_nbytes(wk, wv, bk, bv),
                                         tm * (2 * c + 2 * n) * 4)),
    )(xp, pp, wk, bk.reshape(1, n), wv, bv.reshape(1, n))
    return k[:m], v[:m]


def ffn_add_ln(x, w1, b1, w2, b2, gamma, beta, eps=1e-5):
    m, c = x.shape
    f = w1.shape[1]
    tm = _choose_row_tile(m)
    mp = _round_up(m, tm)
    xp = _pad_rows(x, mp)
    row = lambda i: (i, 0)
    const = lambda i: (0, 0)
    kern = functools.partial(_ffn_add_ln_kernel, eps=eps)
    out = pl.pallas_call(
        kern,
        out_shape=jax.ShapeDtypeStruct((mp, c), x.dtype),
        grid=(mp // tm,),
        in_specs=[
            pl.BlockSpec((tm, c), row),
            pl.BlockSpec((c, f), const),
            pl.BlockSpec((1, f), const),
            pl.BlockSpec((f, c), const),
            pl.BlockSpec((1, c), const),
            pl.BlockSpec((1, c), const),
            pl.BlockSpec((1, c), const),
        ],
        out_specs=pl.BlockSpec((tm, c), row),
        compiler_params=pltpu.CompilerParams(
            dimension_semantics=("parallel",),
            vmem_limit_bytes=_vmem_limit(_nbytes(w1, w2, b1, b2),
                                         tm * (2 * c + f) * 4)),
    )(xp, w1, b1.reshape(1, f), w2, b2.reshape(1, c),
      gamma.reshape(1, c), beta.reshape(1, c))
    return out[:m]


def self_attn_out_ln(q, k, v, res, wo, bo, gamma, beta, n_heads, eps=1e-5):
    b, lq, c = q.shape
    act = pl.BlockSpec((None, lq, c), lambda i: (i, 0, 0))
    const2 = lambda i: (0, 0)
    kern = functools.partial(_self_attn_out_ln_kernel, n_heads=n_heads, eps=eps)
    return pl.pallas_call(
        kern,
        out_shape=jax.ShapeDtypeStruct((b, lq, c), q.dtype),
        grid=(b,),
        in_specs=[act, act, act, act,
                  pl.BlockSpec((c, c), const2),
                  pl.BlockSpec((1, c), const2),
                  pl.BlockSpec((1, c), const2),
                  pl.BlockSpec((1, c), const2)],
        out_specs=act,
        compiler_params=_PARALLEL_1D,
    )(q, k, v, res, wo, bo.reshape(1, c), gamma.reshape(1, c), beta.reshape(1, c))


def cross_attn_out_ln(q, k, v, bias, res, wo, bo, gamma, beta, n_heads, eps=1e-5):
    b, lq, c = q.shape
    ls = k.shape[1]
    qsp = pl.BlockSpec((None, lq, c), lambda i: (i, 0, 0))
    kvsp = pl.BlockSpec((None, ls, c), lambda i: (i, 0, 0))
    const2 = lambda i: (0, 0)
    args = [q, k, v]
    in_specs = [qsp, kvsp, kvsp]
    if bias is not None:
        kern = functools.partial(_cross_attn_out_ln_kernel, n_heads=n_heads, eps=eps)
        args.append(bias)
        in_specs.append(pl.BlockSpec((None, 1, ls), lambda i: (i, 0, 0)))
    else:
        kern = functools.partial(_cross_attn_out_ln_nomask_kernel, n_heads=n_heads, eps=eps)
    args.extend([res, wo, bo.reshape(1, c), gamma.reshape(1, c), beta.reshape(1, c)])
    in_specs.extend([qsp,
                     pl.BlockSpec((c, c), const2),
                     pl.BlockSpec((1, c), const2),
                     pl.BlockSpec((1, c), const2),
                     pl.BlockSpec((1, c), const2)])
    return pl.pallas_call(
        kern,
        out_shape=jax.ShapeDtypeStruct((b, lq, c), q.dtype),
        grid=(b,),
        in_specs=in_specs,
        out_specs=qsp,
        compiler_params=_PARALLEL_1D,
    )(*args)


# ----------------------------------------------------------------------------
# GlobalDecoderLayer.forward_post (dropout = eval-mode identity)
# ----------------------------------------------------------------------------
# TODO(synk): dropout1..4 / attn_drop / proj_drop are identity here (eval mode);
#             training-mode stochastic dropout is not implemented.
def global_decoder_layer(params, tgt, query_pos, src, src_pos_embed,
                         src_padding_mask, n_heads):
    B, Lq, C = tgt.shape
    Ls = src.shape[1]

    tgt2d = tgt.reshape(B * Lq, C)
    qpos2d = query_pos.reshape(B * Lq, C)
    src2d = src.reshape(B * Ls, C)
    spos2d = src_pos_embed.reshape(B * Ls, C)

    # ---- self-attention (nn.MultiheadAttention) + out-proj + residual + norm2 ----
    # q = k = with_pos_embed(tgt, query_pos); value = tgt; scale folded into Wq/bq.
    q, k, v = qkv_proj(tgt2d, qpos2d,
                       params["sa_wq_s"], params["sa_bq_s"],
                       params["sa_wk"], params["sa_bk"],
                       params["sa_wv"], params["sa_bv"])
    tgt_sa = self_attn_out_ln(q.reshape(B, Lq, C), k.reshape(B, Lq, C),
                              v.reshape(B, Lq, C), tgt,
                              params["sa_wo"], params["sa_bo"],
                              params["ln2_g"], params["ln2_b"], n_heads)
    tgt2d = tgt_sa.reshape(B * Lq, C)

    # ---- cross-attention (GlobalCrossAttention) + out-proj + residual + norm1 ----
    qc = posadd_linear(tgt2d, qpos2d, params["ca_wq_s"], params["ca_bq_s"])
    kc, vc = kv_proj(src2d, spos2d,
                     params["ca_wk"], params["ca_bk"],
                     params["ca_wv"], params["ca_bv"])
    if src_padding_mask is None:
        bias = None     # bias-free kernel variant; no zeros tensor materialized
    else:
        # attn += padding_mask[:, None, None] * -100 (broadcast over heads & queries)
        bias = src_padding_mask.astype(jnp.float32)[:, None, :] * (-100.0)
    tgt_ca = cross_attn_out_ln(qc.reshape(B, Lq, C), kc.reshape(B, Ls, C),
                               vc.reshape(B, Ls, C), bias, tgt_sa,
                               params["ca_wo"], params["ca_bo"],
                               params["ln1_g"], params["ln1_b"], n_heads)
    tgt2d = tgt_ca.reshape(B * Lq, C)

    # ---- FFN (linear1 -> ReLU -> linear2) + residual + norm3 ----
    out2d = ffn_add_ln(tgt2d, params["w1"], params["b1"],
                       params["w2"], params["b2"],
                       params["ln3_g"], params["ln3_b"])
    return out2d.reshape(B, Lq, C)


# ----------------------------------------------------------------------------
# Deterministic synthetic parameter init + fusion/scale-folding/bf16 prep
# ----------------------------------------------------------------------------
def init_params(key, d_model, d_ffn):
    keys = jax.random.split(key, 20)
    s = 0.05

    def w(k, shape):
        return jax.random.normal(k, shape, jnp.float32) * s

    p = {}
    # self_attn: nn.MultiheadAttention in_proj (split into q/k/v) + out_proj
    p["sa_wq"], p["sa_bq"] = w(keys[0], (d_model, d_model)), w(keys[1], (d_model,))
    p["sa_wk"], p["sa_bk"] = w(keys[2], (d_model, d_model)), w(keys[3], (d_model,))
    p["sa_wv"], p["sa_bv"] = w(keys[4], (d_model, d_model)), w(keys[5], (d_model,))
    p["sa_wo"], p["sa_bo"] = w(keys[6], (d_model, d_model)), w(keys[7], (d_model,))
    # cross_attn: GlobalCrossAttention q/k/v/proj Linears
    p["ca_wq"], p["ca_bq"] = w(keys[8], (d_model, d_model)), w(keys[9], (d_model,))
    p["ca_wk"], p["ca_bk"] = w(keys[10], (d_model, d_model)), w(keys[11], (d_model,))
    p["ca_wv"], p["ca_bv"] = w(keys[12], (d_model, d_model)), w(keys[13], (d_model,))
    p["ca_wo"], p["ca_bo"] = w(keys[14], (d_model, d_model)), w(keys[15], (d_model,))
    # FFN: linear1 (d_model->d_ffn), linear2 (d_ffn->d_model)
    p["w1"], p["b1"] = w(keys[16], (d_model, d_ffn)), w(keys[17], (d_ffn,))
    p["w2"], p["b2"] = w(keys[18], (d_ffn, d_model)), w(keys[19], (d_model,))
    # LayerNorms (PyTorch default init)
    for name in ("ln1", "ln2", "ln3"):
        p[name + "_g"] = jnp.ones((d_model,), jnp.float32)
        p[name + "_b"] = jnp.zeros((d_model,), jnp.float32)
    return p


def prepare_params(raw, d_model, n_heads):
    """Fold the attention scale into the Q projections; cast matmul weights to
    the MXU dtype (bf16).  Biases / LayerNorm params stay f32."""
    scale = (d_model // n_heads) ** (-0.5)
    wdt = _MATMUL_DTYPE
    p = {}
    p["sa_wq_s"] = (raw["sa_wq"] * scale).astype(wdt)
    p["sa_bq_s"] = raw["sa_bq"] * scale
    p["ca_wq_s"] = (raw["ca_wq"] * scale).astype(wdt)
    p["ca_bq_s"] = raw["ca_bq"] * scale
    for name in ("sa_wk", "sa_wv", "sa_wo", "ca_wk", "ca_wv", "ca_wo", "w1", "w2"):
        p[name] = raw[name].astype(wdt)
    for name in ("sa_bk", "sa_bv", "sa_bo", "ca_bk", "ca_bv", "ca_bo", "b1", "b2",
                 "ln1_g", "ln1_b", "ln2_g", "ln2_b", "ln3_g", "ln3_b"):
        p[name] = raw[name]
    return p


if __name__ == "__main__":
    B, Lq, Ls = 2, 8, 16
    d_model, n_heads, d_ffn = 32, 4, 64

    key = jax.random.PRNGKey(0)
    kp, k1, k2, k3, k4 = jax.random.split(key, 5)
    params = prepare_params(init_params(kp, d_model, d_ffn), d_model, n_heads)

    tgt = jax.random.normal(k1, (B, Lq, d_model), jnp.float32)
    query_pos = jax.random.normal(k2, (B, Lq, d_model), jnp.float32)
    src = jax.random.normal(k3, (B, Ls, d_model), jnp.float32)
    src_pos_embed = jax.random.normal(k4, (B, Ls, d_model), jnp.float32)
    lengths = jnp.array([12, 10])
    src_padding_mask = jnp.arange(Ls)[None, :] >= lengths[:, None]  # True = padding

    fwd = jax.jit(functools.partial(global_decoder_layer, n_heads=n_heads))
    out = fwd(params, tgt, query_pos, src, src_pos_embed, src_padding_mask)
    out = jax.block_until_ready(out)
    assert out.shape == (B, Lq, d_model)
    assert bool(jnp.all(jnp.isfinite(out)))
    print("KERNEL_OK")
</pallas_src>

<mosaic_0001>
module attributes {stable_mosaic.version = 11 : i64} {
  func.func @_posadd_linear_kernel(%arg0: i32, %arg1: memref<16x32xf32, #tpu.memory_space<vmem>>, %arg2: memref<16x32xf32, #tpu.memory_space<vmem>>, %arg3: memref<32x32xbf16, #tpu.memory_space<vmem>>, %arg4: memref<1x32xf32, #tpu.memory_space<vmem>>, %arg5: memref<16x32xf32, #tpu.memory_space<vmem>>) attributes {dimension_semantics = [#tpu.dimension_semantics<parallel>], iteration_bounds = array<i64: 1>, scalar_prefetch = 0 : i64, scratch_operands = 0 : i64, tpu.core_type = #tpu.core_type<tc>, window_params = [{transform_indices = @transform_0, window_bounds = array<i64: 16, 32>}, {transform_indices = @transform_1, window_bounds = array<i64: 16, 32>}, {pipeline_mode = #tpu.pipeline_mode<synchronous>, transform_indices = @transform_2, window_bounds = array<i64: 32, 32>}, {pipeline_mode = #tpu.pipeline_mode<synchronous>, transform_indices = @transform_3, window_bounds = array<i64: 1, 32>}, {transform_indices = @transform_4, window_bounds = array<i64: 16, 32>}]} {
    %c0 = arith.constant 0 : index
    %c0_0 = arith.constant 0 : index
    %0 = vector.load %arg1[%c0, %c0_0] : memref<16x32xf32, #tpu.memory_space<vmem>>, vector<16x32xf32>
    %c0_1 = arith.constant 0 : index
    %c0_2 = arith.constant 0 : index
    %1 = vector.load %arg2[%c0_1, %c0_2] : memref<16x32xf32, #tpu.memory_space<vmem>>, vector<16x32xf32>
    %2 = arith.addf %0, %1 : vector<16x32xf32>
    %c0_3 = arith.constant 0 : index
    %c0_4 = arith.constant 0 : index
    %3 = vector.load %arg3[%c0_3, %c0_4] : memref<32x32xbf16, #tpu.memory_space<vmem>>, vector<32x32xbf16>
    %4 = arith.truncf %2 : vector<16x32xf32> to vector<16x32xbf16>
    %cst = arith.constant dense<0.000000e+00> : vector<16x32xf32>
    %5 = tpu.matmul %4, %3, %cst {dimension_numbers = #tpu.dot_dimension_numbers<[1], [0], [0], [1], [0, 0, 1, 1], [], []>} : vector<16x32xbf16>, vector<32x32xbf16>, vector<16x32xf32> -> vector<16x32xf32>
    %c0_5 = arith.constant 0 : index
    %c0_6 = arith.constant 0 : index
    %6 = vector.load %arg4[%c0_5, %c0_6] : memref<1x32xf32, #tpu.memory_space<vmem>>, vector<1x32xf32>
    %7 = vector.broadcast %6 : vector<1x32xf32> to vector<16x32xf32>
    %8 = arith.addf %5, %7 : vector<16x32xf32>
    %c0_7 = arith.constant 0 : index
    %c0_8 = arith.constant 0 : index
    %9 = vector.load %arg5[%c0_7, %c0_8] : memref<16x32xf32, #tpu.memory_space<vmem>>, vector<16x32xf32>
    tpu.vector_store %arg5[%c0_7, %c0_8], %8 {strides = array<i32>} : memref<16x32xf32, #tpu.memory_space<vmem>>, vector<16x32xf32>,
    return
  }
  func.func @transform_0(%arg0: i32) -> (i32, i32) {
    %c0_i32 = arith.constant 0 : i32
    %c0_i32_0 = arith.constant 0 : i32
    return %arg0, %c0_i32 : i32, i32
  }
  func.func @transform_1(%arg0: i32) -> (i32, i32) {
    %c0_i32 = arith.constant 0 : i32
    %c0_i32_0 = arith.constant 0 : i32
    return %arg0, %c0_i32 : i32, i32
  }
  func.func @transform_2(%arg0: i32) -> (i32, i32) {
    %c0_i32 = arith.constant 0 : i32
    %c0_i32_0 = arith.constant 0 : i32
    %c0_i32_1 = arith.constant 0 : i32
    return %c0_i32, %c0_i32_0 : i32, i32
  }
  func.func @transform_3(%arg0: i32) -> (i32, i32) {
    %c0_i32 = arith.constant 0 : i32
    %c0_i32_0 = arith.constant 0 : i32
    %c0_i32_1 = arith.constant 0 : i32
    return %c0_i32, %c0_i32_0 : i32, i32
  }
  func.func @transform_4(%arg0: i32) -> (i32, i32) {
    %c0_i32 = arith.constant 0 : i32
    %c0_i32_0 = arith.constant 0 : i32
    return %arg0, %c0_i32 : i32, i32
  }
}

module attributes {stable_mosaic.version = 11 : i64} {
  func.func @_kv_proj_kernel(%arg0: i32, %arg1: memref<32x32xf32, #tpu.memory_space<vmem>>, %arg2: memref<32x32xf32, #tpu.memory_space<vmem>>, %arg3: memref<32x32xbf16, #tpu.memory_space<vmem>>, %arg4: memref<1x32xf32, #tpu.memory_space<vmem>>, %arg5: memref<32x32xbf16, #tpu.memory_space<vmem>>, %arg6: memref<1x32xf32, #tpu.memory_space<vmem>>, %arg7: memref<32x32xf32, #tpu.memory_space<vmem>>, %arg8: memref<32x32xf32, #tpu.memory_space<vmem>>) attributes {dimension_semantics = [#tpu.dimension_semantics<parallel>], iteration_bounds = array<i64: 1>, scalar_prefetch = 0 : i64, scratch_operands = 0 : i64, tpu.core_type = #tpu.core_type<tc>, window_params = [{transform_indices = @transform_0, window_bounds = array<i64: 32, 32>}, {transform_indices = @transform_1, window_bounds = array<i64: 32, 32>}, {pipeline_mode = #tpu.pipeline_mode<synchronous>, transform_indices = @transform_2, window_bounds = array<i64: 32, 32>}, {pipeline_mode = #tpu.pipeline_mode<synchronous>, transform_indices = @transform_3, window_bounds = array<i64: 1, 32>}, {pipeline_mode = #tpu.pipeline_mode<synchronous>, transform_indices = @transform_4, window_bounds = array<i64: 32, 32>}, {pipeline_mode = #tpu.pipeline_mode<synchronous>, transform_indices = @transform_5, window_bounds = array<i64: 1, 32>}, {transform_indices = @transform_6, window_bounds = array<i64: 32, 32>}, {transform_indices = @transform_7, window_bounds = array<i64: 32, 32>}]} {
    %c0 = arith.constant 0 : index
    %c0_0 = arith.constant 0 : index
    %0 = vector.load %arg1[%c0, %c0_0] : memref<32x32xf32, #tpu.memory_space<vmem>>, vector<32x32xf32>
    %c0_1 = arith.constant 0 : index
    %c0_2 = arith.constant 0 : index
    %1 = vector.load %arg2[%c0_1, %c0_2] : memref<32x32xf32, #tpu.memory_space<vmem>>, vector<32x32xf32>
    %2 = arith.addf %0, %1 : vector<32x32xf32>
    %c0_3 = arith.constant 0 : index
    %c0_4 = arith.constant 0 : index
    %3 = vector.load %arg3[%c0_3, %c0_4] : memref<32x32xbf16, #tpu.memory_space<vmem>>, vector<32x32xbf16>
    %4 = arith.truncf %2 : vector<32x32xf32> to vector<32x32xbf16>
    %cst = arith.constant dense<0.000000e+00> : vector<32x32xf32>
    %5 = tpu.matmul %4, %3, %cst {dimension_numbers = #tpu.dot_dimension_numbers<[1], [0], [0], [1], [0, 0, 1, 1], [], []>} : vector<32x32xbf16>, vector<32x32xbf16>, vector<32x32xf32> -> vector<32x32xf32>
    %c0_5 = arith.constant 0 : index
    %c0_6 = arith.constant 0 : index
    %6 = vector.load %arg4[%c0_5, %c0_6] : memref<1x32xf32, #tpu.memory_space<vmem>>, vector<1x32xf32>
    %7 = vector.broadcast %6 : vector<1x32xf32> to vector<32x32xf32>
    %8 = arith.addf %5, %7 : vector<32x32xf32>
    %c0_7 = arith.constant 0 : index
    %c0_8 = arith.constant 0 : index
    %9 = vector.load %arg7[%c0_7, %c0_8] : memref<32x32xf32, #tpu.memory_space<vmem>>, vector<32x32xf32>
    tpu.vector_store %arg7[%c0_7, %c0_8], %8 {strides = array<i32>} : memref<32x32xf32, #tpu.memory_space<vmem>>, vector<32x32xf32>,
    %c0_9 = arith.constant 0 : index
    %c0_10 = arith.constant 0 : index
    %10 = vector.load %arg5[%c0_9, %c0_10] : memref<32x32xbf16, #tpu.memory_space<vmem>>, vector<32x32xbf16>
    %11 = arith.truncf %0 : vector<32x32xf32> to vector<32x32xbf16>
    %cst_11 = arith.constant dense<0.000000e+00> : vector<32x32xf32>
    %12 = tpu.matmul %11, %10, %cst_11 {dimension_numbers = #tpu.dot_dimension_numbers<[1], [0], [0], [1], [0, 0, 1, 1], [], []>} : vector<32x32xbf16>, vector<32x32xbf16>, vector<32x32xf32> -> vector<32x32xf32>
    %c0_12 = arith.constant 0 : index
    %c0_13 = arith.constant 0 : index
    %13 = vector.load %arg6[%c0_12, %c0_13] : memref<1x32xf32, #tpu.memory_space<vmem>>, vector<1x32xf32>
    %14 = vector.broadcast %13 : vector<1x32xf32> to vector<32x32xf32>
    %15 = arith.addf %12, %14 : vector<32x32xf32>
    %c0_14 = arith.constant 0 : index
    %c0_15 = arith.constant 0 : index
    %16 = vector.load %arg8[%c0_14, %c0_15] : memref<32x32xf32, #tpu.memory_space<vmem>>, vector<32x32xf32>
    tpu.vector_store %arg8[%c0_14, %c0_15], %15 {strides = array<i32>} : memref<32x32xf32, #tpu.memory_space<vmem>>, vector<32x32xf32>,
    return
  }
  func.func @transform_0(%arg0: i32) -> (i32, i32) {
    %c0_i32 = arith.constant 0 : i32
    %c0_i32_0 = arith.constant 0 : i32
    return %arg0, %c0_i32 : i32, i32
  }
  func.func @transform_1(%arg0: i32) -> (i32, i32) {
    %c0_i32 = arith.constant 0 : i32
    %c0_i32_0 = arith.constant 0 : i32
    return %arg0, %c0_i32 : i32, i32
  }
  func.func @transform_2(%arg0: i32) -> (i32, i32) {
    %c0_i32 = arith.constant 0 : i32
    %c0_i32_0 = arith.constant 0 : i32
    %c0_i32_1 = arith.constant 0 : i32
    return %c0_i32, %c0_i32_0 : i32, i32
  }
  func.func @transform_3(%arg0: i32) -> (i32, i32) {
    %c0_i32 = arith.constant 0 : i32
    %c0_i32_0 = arith.constant 0 : i32
    %c0_i32_1 = arith.constant 0 : i32
    return %c0_i32, %c0_i32_0 : i32, i32
  }
  func.func @transform_4(%arg0: i32) -> (i32, i32) {
    %c0_i32 = arith.constant 0 : i32
    %c0_i32_0 = arith.constant 0 : i32
    %c0_i32_1 = arith.constant 0 : i32
    return %c0_i32, %c0_i32_0 : i32, i32
  }
  func.func @transform_5(%arg0: i32) -> (i32, i32) {
    %c0_i32 = arith.constant 0 : i32
    %c0_i32_0 = arith.constant 0 : i32
    %c0_i32_1 = arith.constant 0 : i32
    return %c0_i32, %c0_i32_0 : i32, i32
  }
  func.func @transform_6(%arg0: i32) -> (i32, i32) {
    %c0_i32 = arith.constant 0 : i32
    %c0_i32_0 = arith.constant 0 : i32
    return %arg0, %c0_i32 : i32, i32
  }
  func.func @transform_7(%arg0: i32) -> (i32, i32) {
    %c0_i32 = arith.constant 0 : i32
    %c0_i32_0 = arith.constant 0 : i32
    return %arg0, %c0_i32 : i32, i32
  }
}

module attributes {stable_mosaic.version = 11 : i64} {
  func.func @_self_attn_out_ln_kernel(%arg0: i32, %arg1: memref<1x8x32xf32, #tpu.memory_space<vmem>>, %arg2: memref<1x8x32xf32, #tpu.memory_space<vmem>>, %arg3: memref<1x8x32xf32, #tpu.memory_space<vmem>>, %arg4: memref<1x8x32xf32, #tpu.memory_space<vmem>>, %arg5: memref<32x32xbf16, #tpu.memory_space<vmem>>, %arg6: memref<1x32xf32, #tpu.memory_space<vmem>>, %arg7: memref<1x32xf32, #tpu.memory_space<vmem>>, %arg8: memref<1x32xf32, #tpu.memory_space<vmem>>, %arg9: memref<1x8x32xf32, #tpu.memory_space<vmem>>) attributes {dimension_semantics = [#tpu.dimension_semantics<parallel>], iteration_bounds = array<i64: 2>, scalar_prefetch = 0 : i64, scratch_operands = 0 : i64, tpu.core_type = #tpu.core_type<tc>, window_params = [{transform_indices = @transform_0, window_bounds = array<i64: 1, 8, 32>}, {transform_indices = @transform_1, window_bounds = array<i64: 1, 8, 32>}, {transform_indices = @transform_2, window_bounds = array<i64: 1, 8, 32>}, {transform_indices = @transform_3, window_bounds = array<i64: 1, 8, 32>}, {pipeline_mode = #tpu.pipeline_mode<synchronous>, transform_indices = @transform_4, window_bounds = array<i64: 32, 32>}, {pipeline_mode = #tpu.pipeline_mode<synchronous>, transform_indices = @transform_5, window_bounds = array<i64: 1, 32>}, {pipeline_mode = #tpu.pipeline_mode<synchronous>, transform_indices = @transform_6, window_bounds = array<i64: 1, 32>}, {pipeline_mode = #tpu.pipeline_mode<synchronous>, transform_indices = @transform_7, window_bounds = array<i64: 1, 32>}, {transform_indices = @transform_8, window_bounds = array<i64: 1, 8, 32>}]} {
    %c0 = arith.constant 0 : index
    %c0_0 = arith.constant 0 : index
    %c0_1 = arith.constant 0 : index
    %0 = vector.load %arg4[%c0, %c0_0, %c0_1] : memref<1x8x32xf32, #tpu.memory_space<vmem>>, vector<1x8x32xf32>
    %1 = vector.shape_cast %0 : vector<1x8x32xf32> to vector<8x32xf32>
    %c0_2 = arith.constant 0 : index
    %c0_3 = arith.constant 0 : index
    %2 = vector.load %arg6[%c0_2, %c0_3] : memref<1x32xf32, #tpu.memory_space<vmem>>, vector<1x32xf32>
    %3 = vector.broadcast %2 : vector<1x32xf32> to vector<8x32xf32>
    %4 = arith.addf %1, %3 : vector<8x32xf32>
    %c0_4 = arith.constant 0 : index
    %c0_5 = arith.constant 0 : index
    %c0_6 = arith.constant 0 : index
    %5 = vector.load %arg1[%c0_4, %c0_5, %c0_6] : memref<1x8x32xf32, #tpu.memory_space<vmem>>, vector<1x8x32xf32>
    %6 = vector.shape_cast %5 : vector<1x8x32xf32> to vector<8x32xf32>
    %c0_7 = arith.constant 0 : index
    %c0_8 = arith.constant 0 : index
    %c0_9 = arith.constant 0 : index
    %7 = vector.load %arg2[%c0_7, %c0_8, %c0_9] : memref<1x8x32xf32, #tpu.memory_space<vmem>>, vector<1x8x32xf32>
    %8 = vector.shape_cast %7 : vector<1x8x32xf32> to vector<8x32xf32>
    %c0_10 = arith.constant 0 : index
    %c0_11 = arith.constant 0 : index
    %c0_12 = arith.constant 0 : index
    %9 = vector.load %arg3[%c0_10, %c0_11, %c0_12] : memref<1x8x32xf32, #tpu.memory_space<vmem>>, vector<1x8x32xf32>
    %10 = vector.shape_cast %9 : vector<1x8x32xf32> to vector<8x32xf32>
    %c0_13 = arith.constant 0 : index
    %c0_14 = arith.constant 0 : index
    %11 = vector.load %arg5[%c0_13, %c0_14] : memref<32x32xbf16, #tpu.memory_space<vmem>>, vector<32x32xbf16>
    %12 = vector.extract_strided_slice %6 {offsets = [0, 0], sizes = [8, 8], strides = [1, 1]} : vector<8x32xf32> to vector<8x8xf32>
    %13 = vector.extract_strided_slice %8 {offsets = [0, 0], sizes = [8, 8], strides = [1, 1]} : vector<8x32xf32> to vector<8x8xf32>
    %14 = arith.truncf %12 : vector<8x8xf32> to vector<8x8xbf16>
    %15 = arith.truncf %13 : vector<8x8xf32> to vector<8x8xbf16>
    %cst = arith.constant dense<0.000000e+00> : vector<8x8xf32>
    %16 = tpu.matmul %14, %15, %cst {dimension_numbers = #tpu.dot_dimension_numbers<[1], [1], [0], [0], [0, 0, 1, 0], [], []>} : vector<8x8xbf16>, vector<8x8xbf16>, vector<8x8xf32> -> vector<8x8xf32>
    %cst_15 = arith.constant dense<0xFF800000> : vector<8xf32>
    %17 = vector.multi_reduction <maximumf>, %16, %cst_15 [1] : vector<8x8xf32> to vector<8xf32>
    %18 = vector.shape_cast %17 : vector<8xf32> to vector<8x1xf32>
    %19 = vector.broadcast %18 : vector<8x1xf32> to vector<8x8xf32>
    %20 = arith.subf %16, %19 : vector<8x8xf32>
    %21 = math.exp %20 : vector<8x8xf32>
    %cst_16 = arith.constant dense<0.000000e+00> : vector<8xf32>
    %22 = vector.multi_reduction <add>, %21, %cst_16 [1] : vector<8x8xf32> to vector<8xf32>
    %23 = vector.shape_cast %22 : vector<8xf32> to vector<8x1xf32>
    %24 = tpu.reciprocal %23 {approx = true} : vector<8x1xf32> -> vector<8x1xf32>
    %25 = vector.broadcast %24 : vector<8x1xf32> to vector<8x8xf32>
    %26 = arith.mulf %21, %25 : vector<8x8xf32>
    %27 = vector.extract_strided_slice %10 {offsets = [0, 0], sizes = [8, 8], strides = [1, 1]} : vector<8x32xf32> to vector<8x8xf32>
    %28 = arith.truncf %26 : vector<8x8xf32> to vector<8x8xbf16>
    %29 = arith.truncf %27 : vector<8x8xf32> to vector<8x8xbf16>
    %cst_17 = arith.constant dense<0.000000e+00> : vector<8x8xf32>
    %30 = tpu.matmul %28, %29, %cst_17 {dimension_numbers = #tpu.dot_dimension_numbers<[1], [0], [0], [1], [0, 0, 1, 1], [], []>} : vector<8x8xbf16>, vector<8x8xbf16>, vector<8x8xf32> -> vector<8x8xf32>
    %31 = vector.extract_strided_slice %11 {offsets = [0, 0], sizes = [8, 32], strides = [1, 1]} : vector<32x32xbf16> to vector<8x32xbf16>
    %32 = arith.truncf %30 : vector<8x8xf32> to vector<8x8xbf16>
    %cst_18 = arith.constant dense<0.000000e+00> : vector<8x32xf32>
    %33 = tpu.matmul %32, %31, %cst_18 {dimension_numbers = #tpu.dot_dimension_numbers<[1], [0], [0], [1], [0, 0, 1, 1], [], []>} : vector<8x8xbf16>, vector<8x32xbf16>, vector<8x32xf32> -> vector<8x32xf32>
    %34 = arith.addf %4, %33 : vector<8x32xf32>
    %35 = vector.extract_strided_slice %6 {offsets = [0, 8], sizes = [8, 8], strides = [1, 1]} : vector<8x32xf32> to vector<8x8xf32>
    %36 = vector.extract_strided_slice %8 {offsets = [0, 8], sizes = [8, 8], strides = [1, 1]} : vector<8x32xf32> to vector<8x8xf32>
    %37 = arith.truncf %35 : vector<8x8xf32> to vector<8x8xbf16>
    %38 = arith.truncf %36 : vector<8x8xf32> to vector<8x8xbf16>
    %cst_19 = arith.constant dense<0.000000e+00> : vector<8x8xf32>
    %39 = tpu.matmul %37, %38, %cst_19 {dimension_numbers = #tpu.dot_dimension_numbers<[1], [1], [0], [0], [0, 0, 1, 0], [], []>} : vector<8x8xbf16>, vector<8x8xbf16>, vector<8x8xf32> -> vector<8x8xf32>
    %cst_20 = arith.constant dense<0xFF800000> : vector<8xf32>
    %40 = vector.multi_reduction <maximumf>, %39, %cst_20 [1] : vector<8x8xf32> to vector<8xf32>
    %41 = vector.shape_cast %40 : vector<8xf32> to vector<8x1xf32>
    %42 = vector.broadcast %41 : vector<8x1xf32> to vector<8x8xf32>
    %43 = arith.subf %39, %42 : vector<8x8xf32>
    %44 = math.exp %43 : vector<8x8xf32>
    %cst_21 = arith.constant dense<0.000000e+00> : vector<8xf32>
    %45 = vector.multi_reduction <add>, %44, %cst_21 [1] : vector<8x8xf32> to vector<8xf32>
    %46 = vector.shape_cast %45 : vector<8xf32> to vector<8x1xf32>
    %47 = tpu.reciprocal %46 {approx = true} : vector<8x1xf32> -> vector<8x1xf32>
    %48 = vector.broadcast %47 : vector<8x1xf32> to vector<8x8xf32>
    %49 = arith.mulf %44, %48 : vector<8x8xf32>
    %50 = vector.extract_strided_slice %10 {offsets = [0, 8], sizes = [8, 8], strides = [1, 1]} : vector<8x32xf32> to vector<8x8xf32>
    %51 = arith.truncf %49 : vector<8x8xf32> to vector<8x8xbf16>
    %52 = arith.truncf %50 : vector<8x8xf32> to vector<8x8xbf16>
    %cst_22 = arith.constant dense<0.000000e+00> : vector<8x8xf32>
    %53 = tpu.matmul %51, %52, %cst_22 {dimension_numbers = #tpu.dot_dimension_numbers<[1], [0], [0], [1], [0, 0, 1, 1], [], []>} : vector<8x8xbf16>, vector<8x8xbf16>, vector<8x8xf32> -> vector<8x8xf32>
    %54 = vector.extract_strided_slice %11 {offsets = [8, 0], sizes = [8, 32], strides = [1, 1]} : vector<32x32xbf16> to vector<8x32xbf16>
    %55 = arith.truncf %53 : vector<8x8xf32> to vector<8x8xbf16>
    %cst_23 = arith.constant dense<0.000000e+00> : vector<8x32xf32>
    %56 = tpu.matmul %55, %54, %cst_23 {dimension_numbers = #tpu.dot_dimension_numbers<[1], [0], [0], [1], [0, 0, 1, 1], [], []>} : vector<8x8xbf16>, vector<8x32xbf16>, vector<8x32xf32> -> vector<8x32xf32>
    %57 = arith.addf %34, %56 : vector<8x32xf32>
    %58 = vector.extract_strided_slice %6 {offsets = [0, 16], sizes = [8, 8], strides = [1, 1]} : vector<8x32xf32> to vector<8x8xf32>
    %59 = vector.extract_strided_slice %8 {offsets = [0, 16], sizes = [8, 8], strides = [1, 1]} : vector<8x32xf32> to vector<8x8xf32>
    %60 = arith.truncf %58 : vector<8x8xf32> to vector<8x8xbf16>
    %61 = arith.truncf %59 : vector<8x8xf32> to vector<8x8xbf16>
    %cst_24 = arith.constant dense<0.000000e+00> : vector<8x8xf32>
    %62 = tpu.matmul %60, %61, %cst_24 {dimension_numbers = #tpu.dot_dimension_numbers<[1], [1], [0], [0], [0, 0, 1, 0], [], []>} : vector<8x8xbf16>, vector<8x8xbf16>, vector<8x8xf32> -> vector<8x8xf32>
    %cst_25 = arith.constant dense<0xFF800000> : vector<8xf32>
    %63 = vector.multi_reduction <maximumf>, %62, %cst_25 [1] : vector<8x8xf32> to vector<8xf32>
    %64 = vector.shape_cast %63 : vector<8xf32> to vector<8x1xf32>
    %65 = vector.broadcast %64 : vector<8x1xf32> to vector<8x8xf32>
    %66 = arith.subf %62, %65 : vector<8x8xf32>
    %67 = math.exp %66 : vector<8x8xf32>
    %cst_26 = arith.constant dense<0.000000e+00> : vector<8xf32>
    %68 = vector.multi_reduction <add>, %67, %cst_26 [1] : vector<8x8xf32> to vector<8xf32>
    %69 = vector.shape_cast %68 : vector<8xf32> to vector<8x1xf32>
    %70 = tpu.reciprocal %69 {approx = true} : vector<8x1xf32> -> vector<8x1xf32>
    %71 = vector.broadcast %70 : vector<8x1xf32> to vector<8x8xf32>
    %72 = arith.mulf %67, %71 : vector<8x8xf32>
    %73 = vector.extract_strided_slice %10 {offsets = [0, 16], sizes = [8, 8], strides = [1, 1]} : vector<8x32xf32> to vector<8x8xf32>
    %74 = arith.truncf %72 : vector<8x8xf32> to vector<8x8xbf16>
    %75 = arith.truncf %73 : vector<8x8xf32> to vector<8x8xbf16>
    %cst_27 = arith.constant dense<0.000000e+00> : vector<8x8xf32>
    %76 = tpu.matmul %74, %75, %cst_27 {dimension_numbers = #tpu.dot_dimension_numbers<[1], [0], [0], [1], [0, 0, 1, 1], [], []>} : vector<8x8xbf16>, vector<8x8xbf16>, vector<8x8xf32> -> vector<8x8xf32>
    %77 = vector.extract_strided_slice %11 {offsets = [16, 0], sizes = [8, 32], strides = [1, 1]} : vector<32x32xbf16> to vector<8x32xbf16>
    %78 = arith.truncf %76 : vector<8x8xf32> to vector<8x8xbf16>
    %cst_28 = arith.constant dense<0.000000e+00> : vector<8x32xf32>
    %79 = tpu.matmul %78, %77, %cst_28 {dimension_numbers = #tpu.dot_dimension_numbers<[1], [0], [0], [1], [0, 0, 1, 1], [], []>} : vector<8x8xbf16>, vector<8x32xbf16>, vector<8x32xf32> -> vector<8x32xf32>
    %80 = arith.addf %57, %79 : vector<8x32xf32>
    %81 = vector.extract_strided_slice %6 {offsets = [0, 24], sizes = [8, 8], strides = [1, 1]} : vector<8x32xf32> to vector<8x8xf32>
    %82 = vector.extract_strided_slice %8 {offsets = [0, 24], sizes = [8, 8], strides = [1, 1]} : vector<8x32xf32> to vector<8x8xf32>
    %83 = arith.truncf %81 : vector<8x8xf32> to vector<8x8xbf16>
    %84 = arith.truncf %82 : vector<8x8xf32> to vector<8x8xbf16>
    %cst_29 = arith.constant dense<0.000000e+00> : vector<8x8xf32>
    %85 = tpu.matmul %83, %84, %cst_29 {dimension_numbers = #tpu.dot_dimension_numbers<[1], [1], [0], [0], [0, 0, 1, 0], [], []>} : vector<8x8xbf16>, vector<8x8xbf16>, vector<8x8xf32> -> vector<8x8xf32>
    %cst_30 = arith.constant dense<0xFF800000> : vector<8xf32>
    %86 = vector.multi_reduction <maximumf>, %85, %cst_30 [1] : vector<8x8xf32> to vector<8xf32>
    %87 = vector.shape_cast %86 : vector<8xf32> to vector<8x1xf32>
    %88 = vector.broadcast %87 : vector<8x1xf32> to vector<8x8xf32>
    %89 = arith.subf %85, %88 : vector<8x8xf32>
    %90 = math.exp %89 : vector<8x8xf32>
    %cst_31 = arith.constant dense<0.000000e+00> : vector<8xf32>
    %91 = vector.multi_reduction <add>, %90, %cst_31 [1] : vector<8x8xf32> to vector<8xf32>
    %92 = vector.shape_cast %91 : vector<8xf32> to vector<8x1xf32>
    %93 = tpu.reciprocal %92 {approx = true} : vector<8x1xf32> -> vector<8x1xf32>
    %94 = vector.broadcast %93 : vector<8x1xf32> to vector<8x8xf32>
    %95 = arith.mulf %90, %94 : vector<8x8xf32>
    %96 = vector.extract_strided_slice %10 {offsets = [0, 24], sizes = [8, 8], strides = [1, 1]} : vector<8x32xf32> to vector<8x8xf32>
    %97 = arith.truncf %95 : vector<8x8xf32> to vector<8x8xbf16>
    %98 = arith.truncf %96 : vector<8x8xf32> to vector<8x8xbf16>
    %cst_32 = arith.constant dense<0.000000e+00> : vector<8x8xf32>
    %99 = tpu.matmul %97, %98, %cst_32 {dimension_numbers = #tpu.dot_dimension_numbers<[1], [0], [0], [1], [0, 0, 1, 1], [], []>} : vector<8x8xbf16>, vector<8x8xbf16>, vector<8x8xf32> -> vector<8x8xf32>
    %100 = vector.extract_strided_slice %11 {offsets = [24, 0], sizes = [8, 32], strides = [1, 1]} : vector<32x32xbf16> to vector<8x32xbf16>
    %101 = arith.truncf %99 : vector<8x8xf32> to vector<8x8xbf16>
    %cst_33 = arith.constant dense<0.000000e+00> : vector<8x32xf32>
    %102 = tpu.matmul %101, %100, %cst_33 {dimension_numbers = #tpu.dot_dimension_numbers<[1], [0], [0], [1], [0, 0, 1, 1], [], []>} : vector<8x8xbf16>, vector<8x32xbf16>, vector<8x32xf32> -> vector<8x32xf32>
    %103 = arith.addf %80, %102 : vector<8x32xf32>
    %c0_34 = arith.constant 0 : index
    %c0_35 = arith.constant 0 : index
    %104 = vector.load %arg7[%c0_34, %c0_35] : memref<1x32xf32, #tpu.memory_space<vmem>>, vector<1x32xf32>
    %c0_36 = arith.constant 0 : index
    %c0_37 = arith.constant 0 : index
    %105 = vector.load %arg8[%c0_36, %c0_37] : memref<1x32xf32, #tpu.memory_space<vmem>>, vector<1x32xf32>
    %cst_38 = arith.constant dense<0.000000e+00> : vector<8xf32>
    %106 = vector.multi_reduction <add>, %103, %cst_38 [1] : vector<8x32xf32> to vector<8xf32>
    %107 = vector.shape_cast %106 : vector<8xf32> to vector<8x1xf32>
    %cst_39 = arith.constant 3.200000e+01 : f32
    %108 = vector.broadcast %cst_39 : f32 to vector<8x1xf32>
    %109 = arith.divf %107, %108 : vector<8x1xf32>
    %110 = vector.broadcast %109 : vector<8x1xf32> to vector<8x32xf32>
    %111 = arith.subf %103, %110 : vector<8x32xf32>
    %112 = arith.mulf %111, %111 : vector<8x32xf32>
    %cst_40 = arith.constant dense<0.000000e+00> : vector<8xf32>
    %113 = vector.multi_reduction <add>, %112, %cst_40 [1] : vector<8x32xf32> to vector<8xf32>
    %114 = vector.shape_cast %113 : vector<8xf32> to vector<8x1xf32>
    %cst_41 = arith.constant 3.200000e+01 : f32
    %115 = vector.broadcast %cst_41 : f32 to vector<8x1xf32>
    %116 = arith.divf %114, %115 : vector<8x1xf32>
    %cst_42 = arith.constant 9.99999974E-6 : f32
    %117 = vector.broadcast %cst_42 : f32 to vector<8x1xf32>
    %118 = arith.addf %116, %117 : vector<8x1xf32>
    %119 = math.rsqrt %118 : vector<8x1xf32>
    %120 = vector.broadcast %119 : vector<8x1xf32> to vector<8x32xf32>
    %121 = arith.mulf %111, %120 : vector<8x32xf32>
    %122 = vector.broadcast %104 : vector<1x32xf32> to vector<8x32xf32>
    %123 = arith.mulf %121, %122 : vector<8x32xf32>
    %124 = vector.broadcast %105 : vector<1x32xf32> to vector<8x32xf32>
    %125 = arith.addf %123, %124 : vector<8x32xf32>
    %c0_43 = arith.constant 0 : index
    %c0_44 = arith.constant 0 : index
    %c0_45 = arith.constant 0 : index
    %126 = vector.load %arg9[%c0_43, %c0_44, %c0_45] : memref<1x8x32xf32, #tpu.memory_space<vmem>>, vector<1x8x32xf32>
    %127 = vector.shape_cast %126 : vector<1x8x32xf32> to vector<8x32xf32>
    %128 = vector.shape_cast %125 : vector<8x32xf32> to vector<1x8x32xf32>
    tpu.vector_store %arg9[%c0_43, %c0_44, %c0_45], %128 {strides = array<i32>} : memref<1x8x32xf32, #tpu.memory_space<vmem>>, vector<1x8x32xf32>,
    return
  }
  func.func @transform_0(%arg0: i32) -> (i32, i32, i32) {
    %c0_i32 = arith.constant 0 : i32
    %c0_i32_0 = arith.constant 0 : i32
    %c0_i32_1 = arith.constant 0 : i32
    return %arg0, %c0_i32, %c0_i32_0 : i32, i32, i32
  }
  func.func @transform_1(%arg0: i32) -> (i32, i32, i32) {
    %c0_i32 = arith.constant 0 : i32
    %c0_i32_0 = arith.constant 0 : i32
    %c0_i32_1 = arith.constant 0 : i32
    return %arg0, %c0_i32, %c0_i32_0 : i32, i32, i32
  }
  func.func @transform_2(%arg0: i32) -> (i32, i32, i32) {
    %c0_i32 = arith.constant 0 : i32
    %c0_i32_0 = arith.constant 0 : i32
    %c0_i32_1 = arith.constant 0 : i32
    return %arg0, %c0_i32, %c0_i32_0 : i32, i32, i32
  }
  func.func @transform_3(%arg0: i32) -> (i32, i32, i32) {
    %c0_i32 = arith.constant 0 : i32
    %c0_i32_0 = arith.constant 0 : i32
    %c0_i32_1 = arith.constant 0 : i32
    return %arg0, %c0_i32, %c0_i32_0 : i32, i32, i32
  }
  func.func @transform_4(%arg0: i32) -> (i32, i32) {
    %c0_i32 = arith.constant 0 : i32
    %c0_i32_0 = arith.constant 0 : i32
    %c0_i32_1 = arith.constant 0 : i32
    return %c0_i32, %c0_i32_0 : i32, i32
  }
  func.func @transform_5(%arg0: i32) -> (i32, i32) {
    %c0_i32 = arith.constant 0 : i32
    %c0_i32_0 = arith.constant 0 : i32
    %c0_i32_1 = arith.constant 0 : i32
    return %c0_i32, %c0_i32_0 : i32, i32
  }
  func.func @transform_6(%arg0: i32) -> (i32, i32) {
    %c0_i32 = arith.constant 0 : i32
    %c0_i32_0 = arith.constant 0 : i32
    %c0_i32_1 = arith.constant 0 : i32
    return %c0_i32, %c0_i32_0 : i32, i32
  }
  func.func @transform_7(%arg0: i32) -> (i32, i32) {
    %c0_i32 = arith.constant 0 : i32
    %c0_i32_0 = arith.constant 0 : i32
    %c0_i32_1 = arith.constant 0 : i32
    return %c0_i32, %c0_i32_0 : i32, i32
  }
  func.func @transform_8(%arg0: i32) -> (i32, i32, i32) {
    %c0_i32 = arith.constant 0 : i32
    %c0_i32_0 = arith.constant 0 : i32
    %c0_i32_1 = arith.constant 0 : i32
    return %arg0, %c0_i32, %c0_i32_0 : i32, i32, i32
  }
}

module attributes {stable_mosaic.version = 11 : i64} {
  func.func @_qkv_proj_kernel(%arg0: i32, %arg1: memref<16x32xf32, #tpu.memory_space<vmem>>, %arg2: memref<16x32xf32, #tpu.memory_space<vmem>>, %arg3: memref<32x32xbf16, #tpu.memory_space<vmem>>, %arg4: memref<1x32xf32, #tpu.memory_space<vmem>>, %arg5: memref<32x32xbf16, #tpu.memory_space<vmem>>, %arg6: memref<1x32xf32, #tpu.memory_space<vmem>>, %arg7: memref<32x32xbf16, #tpu.memory_space<vmem>>, %arg8: memref<1x32xf32, #tpu.memory_space<vmem>>, %arg9: memref<16x32xf32, #tpu.memory_space<vmem>>, %arg10: memref<16x32xf32, #tpu.memory_space<vmem>>, %arg11: memref<16x32xf32, #tpu.memory_space<vmem>>) attributes {dimension_semantics = [#tpu.dimension_semantics<parallel>], iteration_bounds = array<i64: 1>, scalar_prefetch = 0 : i64, scratch_operands = 0 : i64, tpu.core_type = #tpu.core_type<tc>, window_params = [{transform_indices = @transform_0, window_bounds = array<i64: 16, 32>}, {transform_indices = @transform_1, window_bounds = array<i64: 16, 32>}, {pipeline_mode = #tpu.pipeline_mode<synchronous>, transform_indices = @transform_2, window_bounds = array<i64: 32, 32>}, {pipeline_mode = #tpu.pipeline_mode<synchronous>, transform_indices = @transform_3, window_bounds = array<i64: 1, 32>}, {pipeline_mode = #tpu.pipeline_mode<synchronous>, transform_indices = @transform_4, window_bounds = array<i64: 32, 32>}, {pipeline_mode = #tpu.pipeline_mode<synchronous>, transform_indices = @transform_5, window_bounds = array<i64: 1, 32>}, {pipeline_mode = #tpu.pipeline_mode<synchronous>, transform_indices = @transform_6, window_bounds = array<i64: 32, 32>}, {pipeline_mode = #tpu.pipeline_mode<synchronous>, transform_indices = @transform_7, window_bounds = array<i64: 1, 32>}, {transform_indices = @transform_8, window_bounds = array<i64: 16, 32>}, {transform_indices = @transform_9, window_bounds = array<i64: 16, 32>}, {transform_indices = @transform_10, window_bounds = array<i64: 16, 32>}]} {
    %c0 = arith.constant 0 : index
    %c0_0 = arith.constant 0 : index
    %0 = vector.load %arg1[%c0, %c0_0] : memref<16x32xf32, #tpu.memory_space<vmem>>, vector<16x32xf32>
    %c0_1 = arith.constant 0 : index
    %c0_2 = arith.constant 0 : index
    %1 = vector.load %arg2[%c0_1, %c0_2] : memref<16x32xf32, #tpu.memory_space<vmem>>, vector<16x32xf32>
    %2 = arith.addf %0, %1 : vector<16x32xf32>
    %c0_3 = arith.constant 0 : index
    %c0_4 = arith.constant 0 : index
    %3 = vector.load %arg3[%c0_3, %c0_4] : memref<32x32xbf16, #tpu.memory_space<vmem>>, vector<32x32xbf16>
    %4 = arith.truncf %2 : vector<16x32xf32> to vector<16x32xbf16>
    %cst = arith.constant dense<0.000000e+00> : vector<16x32xf32>
    %5 = tpu.matmul %4, %3, %cst {dimension_numbers = #tpu.dot_dimension_numbers<[1], [0], [0], [1], [0, 0, 1, 1], [], []>} : vector<16x32xbf16>, vector<32x32xbf16>, vector<16x32xf32> -> vector<16x32xf32>
    %c0_5 = arith.constant 0 : index
    %c0_6 = arith.constant 0 : index
    %6 = vector.load %arg4[%c0_5, %c0_6] : memref<1x32xf32, #tpu.memory_space<vmem>>, vector<1x32xf32>
    %7 = vector.broadcast %6 : vector<1x32xf32> to vector<16x32xf32>
    %8 = arith.addf %5, %7 : vector<16x32xf32>
    %c0_7 = arith.constant 0 : index
    %c0_8 = arith.constant 0 : index
    %9 = vector.load %arg9[%c0_7, %c0_8] : memref<16x32xf32, #tpu.memory_space<vmem>>, vector<16x32xf32>
    tpu.vector_store %arg9[%c0_7, %c0_8], %8 {strides = array<i32>} : memref<16x32xf32, #tpu.memory_space<vmem>>, vector<16x32xf32>,
    %c0_9 = arith.constant 0 : index
    %c0_10 = arith.constant 0 : index
    %10 = vector.load %arg5[%c0_9, %c0_10] : memref<32x32xbf16, #tpu.memory_space<vmem>>, vector<32x32xbf16>
    %11 = arith.truncf %2 : vector<16x32xf32> to vector<16x32xbf16>
    %cst_11 = arith.constant dense<0.000000e+00> : vector<16x32xf32>
    %12 = tpu.matmul %11, %10, %cst_11 {dimension_numbers = #tpu.dot_dimension_numbers<[1], [0], [0], [1], [0, 0, 1, 1], [], []>} : vector<16x32xbf16>, vector<32x32xbf16>, vector<16x32xf32> -> vector<16x32xf32>
    %c0_12 = arith.constant 0 : index
    %c0_13 = arith.constant 0 : index
    %13 = vector.load %arg6[%c0_12, %c0_13] : memref<1x32xf32, #tpu.memory_space<vmem>>, vector<1x32xf32>
    %14 = vector.broadcast %13 : vector<1x32xf32> to vector<16x32xf32>
    %15 = arith.addf %12, %14 : vector<16x32xf32>
    %c0_14 = arith.constant 0 : index
    %c0_15 = arith.constant 0 : index
    %16 = vector.load %arg10[%c0_14, %c0_15] : memref<16x32xf32, #tpu.memory_space<vmem>>, vector<16x32xf32>
    tpu.vector_store %arg10[%c0_14, %c0_15], %15 {strides = array<i32>} : memref<16x32xf32, #tpu.memory_space<vmem>>, vector<16x32xf32>,
    %c0_16 = arith.constant 0 : index
    %c0_17 = arith.constant 0 : index
    %17 = vector.load %arg7[%c0_16, %c0_17] : memref<32x32xbf16, #tpu.memory_space<vmem>>, vector<32x32xbf16>
    %18 = arith.truncf %0 : vector<16x32xf32> to vector<16x32xbf16>
    %cst_18 = arith.constant dense<0.000000e+00> : vector<16x32xf32>
    %19 = tpu.matmul %18, %17, %cst_18 {dimension_numbers = #tpu.dot_dimension_numbers<[1], [0], [0], [1], [0, 0, 1, 1], [], []>} : vector<16x32xbf16>, vector<32x32xbf16>, vector<16x32xf32> -> vector<16x32xf32>
    %c0_19 = arith.constant 0 : index
    %c0_20 = arith.constant 0 : index
    %20 = vector.load %arg8[%c0_19, %c0_20] : memref<1x32xf32, #tpu.memory_space<vmem>>, vector<1x32xf32>
    %21 = vector.broadcast %20 : vector<1x32xf32> to vector<16x32xf32>
    %22 = arith.addf %19, %21 : vector<16x32xf32>
    %c0_21 = arith.constant 0 : index
    %c0_22 = arith.constant 0 : index
    %23 = vector.load %arg11[%c0_21, %c0_22] : memref<16x32xf32, #tpu.memory_space<vmem>>, vector<16x32xf32>
    tpu.vector_store %arg11[%c0_21, %c0_22], %22 {strides = array<i32>} : memref<16x32xf32, #tpu.memory_space<vmem>>, vector<16x32xf32>,
    return
  }
  func.func @transform_0(%arg0: i32) -> (i32, i32) {
    %c0_i32 = arith.constant 0 : i32
    %c0_i32_0 = arith.constant 0 : i32
    return %arg0, %c0_i32 : i32, i32
  }
  func.func @transform_1(%arg0: i32) -> (i32, i32) {
    %c0_i32 = arith.constant 0 : i32
    %c0_i32_0 = arith.constant 0 : i32
    return %arg0, %c0_i32 : i32, i32
  }
  func.func @transform_2(%arg0: i32) -> (i32, i32) {
    %c0_i32 = arith.constant 0 : i32
    %c0_i32_0 = arith.constant 0 : i32
    %c0_i32_1 = arith.constant 0 : i32
    return %c0_i32, %c0_i32_0 : i32, i32
  }
  func.func @transform_3(%arg0: i32) -> (i32, i32) {
    %c0_i32 = arith.constant 0 : i32
    %c0_i32_0 = arith.constant 0 : i32
    %c0_i32_1 = arith.constant 0 : i32
    return %c0_i32, %c0_i32_0 : i32, i32
  }
  func.func @transform_4(%arg0: i32) -> (i32, i32) {
    %c0_i32 = arith.constant 0 : i32
    %c0_i32_0 = arith.constant 0 : i32
    %c0_i32_1 = arith.constant 0 : i32
    return %c0_i32, %c0_i32_0 : i32, i32
  }
  func.func @transform_5(%arg0: i32) -> (i32, i32) {
    %c0_i32 = arith.constant 0 : i32
    %c0_i32_0 = arith.constant 0 : i32
    %c0_i32_1 = arith.constant 0 : i32
    return %c0_i32, %c0_i32_0 : i32, i32
  }
  func.func @transform_6(%arg0: i32) -> (i32, i32) {
    %c0_i32 = arith.constant 0 : i32
    %c0_i32_0 = arith.constant 0 : i32
    %c0_i32_1 = arith.constant 0 : i32
    return %c0_i32, %c0_i32_0 : i32, i32
  }
  func.func @transform_7(%arg0: i32) -> (i32, i32) {
    %c0_i32 = arith.constant 0 : i32
    %c0_i32_0 = arith.constant 0 : i32
    %c0_i32_1 = arith.constant 0 : i32
    return %c0_i32, %c0_i32_0 : i32, i32
  }
  func.func @transform_8(%arg0: i32) -> (i32, i32) {
    %c0_i32 = arith.constant 0 : i32
    %c0_i32_0 = arith.constant 0 : i32
    return %arg0, %c0_i32 : i32, i32
  }
  func.func @transform_9(%arg0: i32) -> (i32, i32) {
    %c0_i32 = arith.constant 0 : i32
    %c0_i32_0 = arith.constant 0 : i32
    return %arg0, %c0_i32 : i32, i32
  }
  func.func @transform_10(%arg0: i32) -> (i32, i32) {
    %c0_i32 = arith.constant 0 : i32
    %c0_i32_0 = arith.constant 0 : i32
    return %arg0, %c0_i32 : i32, i32
  }
}

module attributes {stable_mosaic.version = 11 : i64} {
  func.func @_ffn_add_ln_kernel(%arg0: i32, %arg1: memref<16x32xf32, #tpu.memory_space<vmem>>, %arg2: memref<32x64xbf16, #tpu.memory_space<vmem>>, %arg3: memref<1x64xf32, #tpu.memory_space<vmem>>, %arg4: memref<64x32xbf16, #tpu.memory_space<vmem>>, %arg5: memref<1x32xf32, #tpu.memory_space<vmem>>, %arg6: memref<1x32xf32, #tpu.memory_space<vmem>>, %arg7: memref<1x32xf32, #tpu.memory_space<vmem>>, %arg8: memref<16x32xf32, #tpu.memory_space<vmem>>) attributes {dimension_semantics = [#tpu.dimension_semantics<parallel>], iteration_bounds = array<i64: 1>, scalar_prefetch = 0 : i64, scratch_operands = 0 : i64, tpu.core_type = #tpu.core_type<tc>, window_params = [{transform_indices = @transform_0, window_bounds = array<i64: 16, 32>}, {pipeline_mode = #tpu.pipeline_mode<synchronous>, transform_indices = @transform_1, window_bounds = array<i64: 32, 64>}, {pipeline_mode = #tpu.pipeline_mode<synchronous>, transform_indices = @transform_2, window_bounds = array<i64: 1, 64>}, {pipeline_mode = #tpu.pipeline_mode<synchronous>, transform_indices = @transform_3, window_bounds = array<i64: 64, 32>}, {pipeline_mode = #tpu.pipeline_mode<synchronous>, transform_indices = @transform_4, window_bounds = array<i64: 1, 32>}, {pipeline_mode = #tpu.pipeline_mode<synchronous>, transform_indices = @transform_5, window_bounds = array<i64: 1, 32>}, {pipeline_mode = #tpu.pipeline_mode<synchronous>, transform_indices = @transform_6, window_bounds = array<i64: 1, 32>}, {transform_indices = @transform_7, window_bounds = array<i64: 16, 32>}]} {
    %c0 = arith.constant 0 : index
    %c0_0 = arith.constant 0 : index
    %0 = vector.load %arg1[%c0, %c0_0] : memref<16x32xf32, #tpu.memory_space<vmem>>, vector<16x32xf32>
    %c0_1 = arith.constant 0 : index
    %c0_2 = arith.constant 0 : index
    %1 = vector.load %arg2[%c0_1, %c0_2] : memref<32x64xbf16, #tpu.memory_space<vmem>>, vector<32x64xbf16>
    %2 = arith.truncf %0 : vector<16x32xf32> to vector<16x32xbf16>
    %cst = arith.constant dense<0.000000e+00> : vector<16x64xf32>
    %3 = tpu.matmul %2, %1, %cst {dimension_numbers = #tpu.dot_dimension_numbers<[1], [0], [0], [1], [0, 0, 1, 1], [], []>} : vector<16x32xbf16>, vector<32x64xbf16>, vector<16x64xf32> -> vector<16x64xf32>
    %c0_3 = arith.constant 0 : index
    %c0_4 = arith.constant 0 : index
    %4 = vector.load %arg3[%c0_3, %c0_4] : memref<1x64xf32, #tpu.memory_space<vmem>>, vector<1x64xf32>
    %5 = vector.broadcast %4 : vector<1x64xf32> to vector<16x64xf32>
    %6 = arith.addf %3, %5 : vector<16x64xf32>
    %cst_5 = arith.constant 0.000000e+00 : f32
    %7 = vector.broadcast %cst_5 : f32 to vector<16x64xf32>
    %8 = arith.maximumf %6, %7 : vector<16x64xf32>
    %c0_6 = arith.constant 0 : index
    %c0_7 = arith.constant 0 : index
    %9 = vector.load %arg4[%c0_6, %c0_7] : memref<64x32xbf16, #tpu.memory_space<vmem>>, vector<64x32xbf16>
    %10 = arith.truncf %8 : vector<16x64xf32> to vector<16x64xbf16>
    %cst_8 = arith.constant dense<0.000000e+00> : vector<16x32xf32>
    %11 = tpu.matmul %10, %9, %cst_8 {dimension_numbers = #tpu.dot_dimension_numbers<[1], [0], [0], [1], [0, 0, 1, 1], [], []>} : vector<16x64xbf16>, vector<64x32xbf16>, vector<16x32xf32> -> vector<16x32xf32>
    %c0_9 = arith.constant 0 : index
    %c0_10 = arith.constant 0 : index
    %12 = vector.load %arg5[%c0_9, %c0_10] : memref<1x32xf32, #tpu.memory_space<vmem>>, vector<1x32xf32>
    %13 = vector.broadcast %12 : vector<1x32xf32> to vector<16x32xf32>
    %14 = arith.addf %11, %13 : vector<16x32xf32>
    %15 = arith.addf %14, %0 : vector<16x32xf32>
    %c0_11 = arith.constant 0 : index
    %c0_12 = arith.constant 0 : index
    %16 = vector.load %arg6[%c0_11, %c0_12] : memref<1x32xf32, #tpu.memory_space<vmem>>, vector<1x32xf32>
    %c0_13 = arith.constant 0 : index
    %c0_14 = arith.constant 0 : index
    %17 = vector.load %arg7[%c0_13, %c0_14] : memref<1x32xf32, #tpu.memory_space<vmem>>, vector<1x32xf32>
    %cst_15 = arith.constant dense<0.000000e+00> : vector<16xf32>
    %18 = vector.multi_reduction <add>, %15, %cst_15 [1] : vector<16x32xf32> to vector<16xf32>
    %19 = vector.shape_cast %18 : vector<16xf32> to vector<16x1xf32>
    %cst_16 = arith.constant 3.200000e+01 : f32
    %20 = vector.broadcast %cst_16 : f32 to vector<16x1xf32>
    %21 = arith.divf %19, %20 : vector<16x1xf32>
    %22 = vector.broadcast %21 : vector<16x1xf32> to vector<16x32xf32>
    %23 = arith.subf %15, %22 : vector<16x32xf32>
    %24 = arith.mulf %23, %23 : vector<16x32xf32>
    %cst_17 = arith.constant dense<0.000000e+00> : vector<16xf32>
    %25 = vector.multi_reduction <add>, %24, %cst_17 [1] : vector<16x32xf32> to vector<16xf32>
    %26 = vector.shape_cast %25 : vector<16xf32> to vector<16x1xf32>
    %cst_18 = arith.constant 3.200000e+01 : f32
    %27 = vector.broadcast %cst_18 : f32 to vector<16x1xf32>
    %28 = arith.divf %26, %27 : vector<16x1xf32>
    %cst_19 = arith.constant 9.99999974E-6 : f32
    %29 = vector.broadcast %cst_19 : f32 to vector<16x1xf32>
    %30 = arith.addf %28, %29 : vector<16x1xf32>
    %31 = math.rsqrt %30 : vector<16x1xf32>
    %32 = vector.broadcast %31 : vector<16x1xf32> to vector<16x32xf32>
    %33 = arith.mulf %23, %32 : vector<16x32xf32>
    %34 = vector.broadcast %16 : vector<1x32xf32> to vector<16x32xf32>
    %35 = arith.mulf %33, %34 : vector<16x32xf32>
    %36 = vector.broadcast %17 : vector<1x32xf32> to vector<16x32xf32>
    %37 = arith.addf %35, %36 : vector<16x32xf32>
    %c0_20 = arith.constant 0 : index
    %c0_21 = arith.constant 0 : index
    %38 = vector.load %arg8[%c0_20, %c0_21] : memref<16x32xf32, #tpu.memory_space<vmem>>, vector<16x32xf32>
    tpu.vector_store %arg8[%c0_20, %c0_21], %37 {strides = array<i32>} : memref<16x32xf32, #tpu.memory_space<vmem>>, vector<16x32xf32>,
    return
  }
  func.func @transform_0(%arg0: i32) -> (i32, i32) {
    %c0_i32 = arith.constant 0 : i32
    %c0_i32_0 = arith.constant 0 : i32
    return %arg0, %c0_i32 : i32, i32
  }
  func.func @transform_1(%arg0: i32) -> (i32, i32) {
    %c0_i32 = arith.constant 0 : i32
    %c0_i32_0 = arith.constant 0 : i32
    %c0_i32_1 = arith.constant 0 : i32
    return %c0_i32, %c0_i32_0 : i32, i32
  }
  func.func @transform_2(%arg0: i32) -> (i32, i32) {
    %c0_i32 = arith.constant 0 : i32
    %c0_i32_0 = arith.constant 0 : i32
    %c0_i32_1 = arith.constant 0 : i32
    return %c0_i32, %c0_i32_0 : i32, i32
  }
  func.func @transform_3(%arg0: i32) -> (i32, i32) {
    %c0_i32 = arith.constant 0 : i32
    %c0_i32_0 = arith.constant 0 : i32
    %c0_i32_1 = arith.constant 0 : i32
    return %c0_i32, %c0_i32_0 : i32, i32
  }
  func.func @transform_4(%arg0: i32) -> (i32, i32) {
    %c0_i32 = arith.constant 0 : i32
    %c0_i32_0 = arith.constant 0 : i32
    %c0_i32_1 = arith.constant 0 : i32
    return %c0_i32, %c0_i32_0 : i32, i32
  }
  func.func @transform_5(%arg0: i32) -> (i32, i32) {
    %c0_i32 = arith.constant 0 : i32
    %c0_i32_0 = arith.constant 0 : i32
    %c0_i32_1 = arith.constant 0 : i32
    return %c0_i32, %c0_i32_0 : i32, i32
  }
  func.func @transform_6(%arg0: i32) -> (i32, i32) {
    %c0_i32 = arith.constant 0 : i32
    %c0_i32_0 = arith.constant 0 : i32
    %c0_i32_1 = arith.constant 0 : i32
    return %c0_i32, %c0_i32_0 : i32, i32
  }
  func.func @transform_7(%arg0: i32) -> (i32, i32) {
    %c0_i32 = arith.constant 0 : i32
    %c0_i32_0 = arith.constant 0 : i32
    return %arg0, %c0_i32 : i32, i32
  }
}

module attributes {stable_mosaic.version = 11 : i64} {
  func.func @_cross_attn_out_ln_kernel(%arg0: i32, %arg1: memref<1x8x32xf32, #tpu.memory_space<vmem>>, %arg2: memref<1x16x32xf32, #tpu.memory_space<vmem>>, %arg3: memref<1x16x32xf32, #tpu.memory_space<vmem>>, %arg4: memref<1x1x16xf32, #tpu.memory_space<vmem>>, %arg5: memref<1x8x32xf32, #tpu.memory_space<vmem>>, %arg6: memref<32x32xbf16, #tpu.memory_space<vmem>>, %arg7: memref<1x32xf32, #tpu.memory_space<vmem>>, %arg8: memref<1x32xf32, #tpu.memory_space<vmem>>, %arg9: memref<1x32xf32, #tpu.memory_space<vmem>>, %arg10: memref<1x8x32xf32, #tpu.memory_space<vmem>>) attributes {dimension_semantics = [#tpu.dimension_semantics<parallel>], iteration_bounds = array<i64: 2>, scalar_prefetch = 0 : i64, scratch_operands = 0 : i64, tpu.core_type = #tpu.core_type<tc>, window_params = [{transform_indices = @transform_0, window_bounds = array<i64: 1, 8, 32>}, {transform_indices = @transform_1, window_bounds = array<i64: 1, 16, 32>}, {transform_indices = @transform_2, window_bounds = array<i64: 1, 16, 32>}, {transform_indices = @transform_3, window_bounds = array<i64: 1, 1, 16>}, {transform_indices = @transform_4, window_bounds = array<i64: 1, 8, 32>}, {pipeline_mode = #tpu.pipeline_mode<synchronous>, transform_indices = @transform_5, window_bounds = array<i64: 32, 32>}, {pipeline_mode = #tpu.pipeline_mode<synchronous>, transform_indices = @transform_6, window_bounds = array<i64: 1, 32>}, {pipeline_mode = #tpu.pipeline_mode<synchronous>, transform_indices = @transform_7, window_bounds = array<i64: 1, 32>}, {pipeline_mode = #tpu.pipeline_mode<synchronous>, transform_indices = @transform_8, window_bounds = array<i64: 1, 32>}, {transform_indices = @transform_9, window_bounds = array<i64: 1, 8, 32>}]} {
    %c0 = arith.constant 0 : index
    %c0_0 = arith.constant 0 : index
    %c0_1 = arith.constant 0 : index
    %0 = vector.load %arg5[%c0, %c0_0, %c0_1] : memref<1x8x32xf32, #tpu.memory_space<vmem>>, vector<1x8x32xf32>
    %1 = vector.shape_cast %0 : vector<1x8x32xf32> to vector<8x32xf32>
    %c0_2 = arith.constant 0 : index
    %c0_3 = arith.constant 0 : index
    %2 = vector.load %arg7[%c0_2, %c0_3] : memref<1x32xf32, #tpu.memory_space<vmem>>, vector<1x32xf32>
    %3 = vector.broadcast %2 : vector<1x32xf32> to vector<8x32xf32>
    %4 = arith.addf %1, %3 : vector<8x32xf32>
    %c0_4 = arith.constant 0 : index
    %c0_5 = arith.constant 0 : index
    %c0_6 = arith.constant 0 : index
    %5 = vector.load %arg1[%c0_4, %c0_5, %c0_6] : memref<1x8x32xf32, #tpu.memory_space<vmem>>, vector<1x8x32xf32>
    %6 = vector.shape_cast %5 : vector<1x8x32xf32> to vector<8x32xf32>
    %c0_7 = arith.constant 0 : index
    %c0_8 = arith.constant 0 : index
    %c0_9 = arith.constant 0 : index
    %7 = vector.load %arg2[%c0_7, %c0_8, %c0_9] : memref<1x16x32xf32, #tpu.memory_space<vmem>>, vector<1x16x32xf32>
    %8 = vector.shape_cast %7 : vector<1x16x32xf32> to vector<16x32xf32>
    %c0_10 = arith.constant 0 : index
    %c0_11 = arith.constant 0 : index
    %c0_12 = arith.constant 0 : index
    %9 = vector.load %arg3[%c0_10, %c0_11, %c0_12] : memref<1x16x32xf32, #tpu.memory_space<vmem>>, vector<1x16x32xf32>
    %10 = vector.shape_cast %9 : vector<1x16x32xf32> to vector<16x32xf32>
    %c0_13 = arith.constant 0 : index
    %c0_14 = arith.constant 0 : index
    %c0_15 = arith.constant 0 : index
    %11 = vector.load %arg4[%c0_13, %c0_14, %c0_15] : memref<1x1x16xf32, #tpu.memory_space<vmem>>, vector<1x1x16xf32>
    %12 = vector.shape_cast %11 : vector<1x1x16xf32> to vector<1x16xf32>
    %c0_16 = arith.constant 0 : index
    %c0_17 = arith.constant 0 : index
    %13 = vector.load %arg6[%c0_16, %c0_17] : memref<32x32xbf16, #tpu.memory_space<vmem>>, vector<32x32xbf16>
    %14 = vector.extract_strided_slice %6 {offsets = [0, 0], sizes = [8, 8], strides = [1, 1]} : vector<8x32xf32> to vector<8x8xf32>
    %15 = vector.extract_strided_slice %8 {offsets = [0, 0], sizes = [16, 8], strides = [1, 1]} : vector<16x32xf32> to vector<16x8xf32>
    %16 = arith.truncf %14 : vector<8x8xf32> to vector<8x8xbf16>
    %17 = arith.truncf %15 : vector<16x8xf32> to vector<16x8xbf16>
    %cst = arith.constant dense<0.000000e+00> : vector<8x16xf32>
    %18 = tpu.matmul %16, %17, %cst {dimension_numbers = #tpu.dot_dimension_numbers<[1], [1], [0], [0], [0, 0, 1, 0], [], []>} : vector<8x8xbf16>, vector<16x8xbf16>, vector<8x16xf32> -> vector<8x16xf32>
    %19 = vector.broadcast %12 : vector<1x16xf32> to vector<8x16xf32>
    %20 = arith.addf %18, %19 : vector<8x16xf32>
    %cst_18 = arith.constant dense<0xFF800000> : vector<8xf32>
    %21 = vector.multi_reduction <maximumf>, %20, %cst_18 [1] : vector<8x16xf32> to vector<8xf32>
    %22 = vector.shape_cast %21 : vector<8xf32> to vector<8x1xf32>
    %23 = vector.broadcast %22 : vector<8x1xf32> to vector<8x16xf32>
    %24 = arith.subf %20, %23 : vector<8x16xf32>
    %25 = math.exp %24 : vector<8x16xf32>
    %cst_19 = arith.constant dense<0.000000e+00> : vector<8xf32>
    %26 = vector.multi_reduction <add>, %25, %cst_19 [1] : vector<8x16xf32> to vector<8xf32>
    %27 = vector.shape_cast %26 : vector<8xf32> to vector<8x1xf32>
    %28 = tpu.reciprocal %27 {approx = true} : vector<8x1xf32> -> vector<8x1xf32>
    %29 = vector.broadcast %28 : vector<8x1xf32> to vector<8x16xf32>
    %30 = arith.mulf %25, %29 : vector<8x16xf32>
    %31 = vector.extract_strided_slice %10 {offsets = [0, 0], sizes = [16, 8], strides = [1, 1]} : vector<16x32xf32> to vector<16x8xf32>
    %32 = arith.truncf %30 : vector<8x16xf32> to vector<8x16xbf16>
    %33 = arith.truncf %31 : vector<16x8xf32> to vector<16x8xbf16>
    %cst_20 = arith.constant dense<0.000000e+00> : vector<8x8xf32>
    %34 = tpu.matmul %32, %33, %cst_20 {dimension_numbers = #tpu.dot_dimension_numbers<[1], [0], [0], [1], [0, 0, 1, 1], [], []>} : vector<8x16xbf16>, vector<16x8xbf16>, vector<8x8xf32> -> vector<8x8xf32>
    %35 = vector.extract_strided_slice %13 {offsets = [0, 0], sizes = [8, 32], strides = [1, 1]} : vector<32x32xbf16> to vector<8x32xbf16>
    %36 = arith.truncf %34 : vector<8x8xf32> to vector<8x8xbf16>
    %cst_21 = arith.constant dense<0.000000e+00> : vector<8x32xf32>
    %37 = tpu.matmul %36, %35, %cst_21 {dimension_numbers = #tpu.dot_dimension_numbers<[1], [0], [0], [1], [0, 0, 1, 1], [], []>} : vector<8x8xbf16>, vector<8x32xbf16>, vector<8x32xf32> -> vector<8x32xf32>
    %38 = arith.addf %4, %37 : vector<8x32xf32>
    %39 = vector.extract_strided_slice %6 {offsets = [0, 8], sizes = [8, 8], strides = [1, 1]} : vector<8x32xf32> to vector<8x8xf32>
    %40 = vector.extract_strided_slice %8 {offsets = [0, 8], sizes = [16, 8], strides = [1, 1]} : vector<16x32xf32> to vector<16x8xf32>
    %41 = arith.truncf %39 : vector<8x8xf32> to vector<8x8xbf16>
    %42 = arith.truncf %40 : vector<16x8xf32> to vector<16x8xbf16>
    %cst_22 = arith.constant dense<0.000000e+00> : vector<8x16xf32>
    %43 = tpu.matmul %41, %42, %cst_22 {dimension_numbers = #tpu.dot_dimension_numbers<[1], [1], [0], [0], [0, 0, 1, 0], [], []>} : vector<8x8xbf16>, vector<16x8xbf16>, vector<8x16xf32> -> vector<8x16xf32>
    %44 = vector.broadcast %12 : vector<1x16xf32> to vector<8x16xf32>
    %45 = arith.addf %43, %44 : vector<8x16xf32>
    %cst_23 = arith.constant dense<0xFF800000> : vector<8xf32>
    %46 = vector.multi_reduction <maximumf>, %45, %cst_23 [1] : vector<8x16xf32> to vector<8xf32>
    %47 = vector.shape_cast %46 : vector<8xf32> to vector<8x1xf32>
    %48 = vector.broadcast %47 : vector<8x1xf32> to vector<8x16xf32>
    %49 = arith.subf %45, %48 : vector<8x16xf32>
    %50 = math.exp %49 : vector<8x16xf32>
    %cst_24 = arith.constant dense<0.000000e+00> : vector<8xf32>
    %51 = vector.multi_reduction <add>, %50, %cst_24 [1] : vector<8x16xf32> to vector<8xf32>
    %52 = vector.shape_cast %51 : vector<8xf32> to vector<8x1xf32>
    %53 = tpu.reciprocal %52 {approx = true} : vector<8x1xf32> -> vector<8x1xf32>
    %54 = vector.broadcast %53 : vector<8x1xf32> to vector<8x16xf32>
    %55 = arith.mulf %50, %54 : vector<8x16xf32>
    %56 = vector.extract_strided_slice %10 {offsets = [0, 8], sizes = [16, 8], strides = [1, 1]} : vector<16x32xf32> to vector<16x8xf32>
    %57 = arith.truncf %55 : vector<8x16xf32> to vector<8x16xbf16>
    %58 = arith.truncf %56 : vector<16x8xf32> to vector<16x8xbf16>
    %cst_25 = arith.constant dense<0.000000e+00> : vector<8x8xf32>
    %59 = tpu.matmul %57, %58, %cst_25 {dimension_numbers = #tpu.dot_dimension_numbers<[1], [0], [0], [1], [0, 0, 1, 1], [], []>} : vector<8x16xbf16>, vector<16x8xbf16>, vector<8x8xf32> -> vector<8x8xf32>
    %60 = vector.extract_strided_slice %13 {offsets = [8, 0], sizes = [8, 32], strides = [1, 1]} : vector<32x32xbf16> to vector<8x32xbf16>
    %61 = arith.truncf %59 : vector<8x8xf32> to vector<8x8xbf16>
    %cst_26 = arith.constant dense<0.000000e+00> : vector<8x32xf32>
    %62 = tpu.matmul %61, %60, %cst_26 {dimension_numbers = #tpu.dot_dimension_numbers<[1], [0], [0], [1], [0, 0, 1, 1], [], []>} : vector<8x8xbf16>, vector<8x32xbf16>, vector<8x32xf32> -> vector<8x32xf32>
    %63 = arith.addf %38, %62 : vector<8x32xf32>
    %64 = vector.extract_strided_slice %6 {offsets = [0, 16], sizes = [8, 8], strides = [1, 1]} : vector<8x32xf32> to vector<8x8xf32>
    %65 = vector.extract_strided_slice %8 {offsets = [0, 16], sizes = [16, 8], strides = [1, 1]} : vector<16x32xf32> to vector<16x8xf32>
    %66 = arith.truncf %64 : vector<8x8xf32> to vector<8x8xbf16>
    %67 = arith.truncf %65 : vector<16x8xf32> to vector<16x8xbf16>
    %cst_27 = arith.constant dense<0.000000e+00> : vector<8x16xf32>
    %68 = tpu.matmul %66, %67, %cst_27 {dimension_numbers = #tpu.dot_dimension_numbers<[1], [1], [0], [0], [0, 0, 1, 0], [], []>} : vector<8x8xbf16>, vector<16x8xbf16>, vector<8x16xf32> -> vector<8x16xf32>
    %69 = vector.broadcast %12 : vector<1x16xf32> to vector<8x16xf32>
    %70 = arith.addf %68, %69 : vector<8x16xf32>
    %cst_28 = arith.constant dense<0xFF800000> : vector<8xf32>
    %71 = vector.multi_reduction <maximumf>, %70, %cst_28 [1] : vector<8x16xf32> to vector<8xf32>
    %72 = vector.shape_cast %71 : vector<8xf32> to vector<8x1xf32>
    %73 = vector.broadcast %72 : vector<8x1xf32> to vector<8x16xf32>
    %74 = arith.subf %70, %73 : vector<8x16xf32>
    %75 = math.exp %74 : vector<8x16xf32>
    %cst_29 = arith.constant dense<0.000000e+00> : vector<8xf32>
    %76 = vector.multi_reduction <add>, %75, %cst_29 [1] : vector<8x16xf32> to vector<8xf32>
    %77 = vector.shape_cast %76 : vector<8xf32> to vector<8x1xf32>
    %78 = tpu.reciprocal %77 {approx = true} : vector<8x1xf32> -> vector<8x1xf32>
    %79 = vector.broadcast %78 : vector<8x1xf32> to vector<8x16xf32>
    %80 = arith.mulf %75, %79 : vector<8x16xf32>
    %81 = vector.extract_strided_slice %10 {offsets = [0, 16], sizes = [16, 8], strides = [1, 1]} : vector<16x32xf32> to vector<16x8xf32>
    %82 = arith.truncf %80 : vector<8x16xf32> to vector<8x16xbf16>
    %83 = arith.truncf %81 : vector<16x8xf32> to vector<16x8xbf16>
    %cst_30 = arith.constant dense<0.000000e+00> : vector<8x8xf32>
    %84 = tpu.matmul %82, %83, %cst_30 {dimension_numbers = #tpu.dot_dimension_numbers<[1], [0], [0], [1], [0, 0, 1, 1], [], []>} : vector<8x16xbf16>, vector<16x8xbf16>, vector<8x8xf32> -> vector<8x8xf32>
    %85 = vector.extract_strided_slice %13 {offsets = [16, 0], sizes = [8, 32], strides = [1, 1]} : vector<32x32xbf16> to vector<8x32xbf16>
    %86 = arith.truncf %84 : vector<8x8xf32> to vector<8x8xbf16>
    %cst_31 = arith.constant dense<0.000000e+00> : vector<8x32xf32>
    %87 = tpu.matmul %86, %85, %cst_31 {dimension_numbers = #tpu.dot_dimension_numbers<[1], [0], [0], [1], [0, 0, 1, 1], [], []>} : vector<8x8xbf16>, vector<8x32xbf16>, vector<8x32xf32> -> vector<8x32xf32>
    %88 = arith.addf %63, %87 : vector<8x32xf32>
    %89 = vector.extract_strided_slice %6 {offsets = [0, 24], sizes = [8, 8], strides = [1, 1]} : vector<8x32xf32> to vector<8x8xf32>
    %90 = vector.extract_strided_slice %8 {offsets = [0, 24], sizes = [16, 8], strides = [1, 1]} : vector<16x32xf32> to vector<16x8xf32>
    %91 = arith.truncf %89 : vector<8x8xf32> to vector<8x8xbf16>
    %92 = arith.truncf %90 : vector<16x8xf32> to vector<16x8xbf16>
    %cst_32 = arith.constant dense<0.000000e+00> : vector<8x16xf32>
    %93 = tpu.matmul %91, %92, %cst_32 {dimension_numbers = #tpu.dot_dimension_numbers<[1], [1], [0], [0], [0, 0, 1, 0], [], []>} : vector<8x8xbf16>, vector<16x8xbf16>, vector<8x16xf32> -> vector<8x16xf32>
    %94 = vector.broadcast %12 : vector<1x16xf32> to vector<8x16xf32>
    %95 = arith.addf %93, %94 : vector<8x16xf32>
    %cst_33 = arith.constant dense<0xFF800000> : vector<8xf32>
    %96 = vector.multi_reduction <maximumf>, %95, %cst_33 [1] : vector<8x16xf32> to vector<8xf32>
    %97 = vector.shape_cast %96 : vector<8xf32> to vector<8x1xf32>
    %98 = vector.broadcast %97 : vector<8x1xf32> to vector<8x16xf32>
    %99 = arith.subf %95, %98 : vector<8x16xf32>
    %100 = math.exp %99 : vector<8x16xf32>
    %cst_34 = arith.constant dense<0.000000e+00> : vector<8xf32>
    %101 = vector.multi_reduction <add>, %100, %cst_34 [1] : vector<8x16xf32> to vector<8xf32>
    %102 = vector.shape_cast %101 : vector<8xf32> to vector<8x1xf32>
    %103 = tpu.reciprocal %102 {approx = true} : vector<8x1xf32> -> vector<8x1xf32>
    %104 = vector.broadcast %103 : vector<8x1xf32> to vector<8x16xf32>
    %105 = arith.mulf %100, %104 : vector<8x16xf32>
    %106 = vector.extract_strided_slice %10 {offsets = [0, 24], sizes = [16, 8], strides = [1, 1]} : vector<16x32xf32> to vector<16x8xf32>
    %107 = arith.truncf %105 : vector<8x16xf32> to vector<8x16xbf16>
    %108 = arith.truncf %106 : vector<16x8xf32> to vector<16x8xbf16>
    %cst_35 = arith.constant dense<0.000000e+00> : vector<8x8xf32>
    %109 = tpu.matmul %107, %108, %cst_35 {dimension_numbers = #tpu.dot_dimension_numbers<[1], [0], [0], [1], [0, 0, 1, 1], [], []>} : vector<8x16xbf16>, vector<16x8xbf16>, vector<8x8xf32> -> vector<8x8xf32>
    %110 = vector.extract_strided_slice %13 {offsets = [24, 0], sizes = [8, 32], strides = [1, 1]} : vector<32x32xbf16> to vector<8x32xbf16>
    %111 = arith.truncf %109 : vector<8x8xf32> to vector<8x8xbf16>
    %cst_36 = arith.constant dense<0.000000e+00> : vector<8x32xf32>
    %112 = tpu.matmul %111, %110, %cst_36 {dimension_numbers = #tpu.dot_dimension_numbers<[1], [0], [0], [1], [0, 0, 1, 1], [], []>} : vector<8x8xbf16>, vector<8x32xbf16>, vector<8x32xf32> -> vector<8x32xf32>
    %113 = arith.addf %88, %112 : vector<8x32xf32>
    %c0_37 = arith.constant 0 : index
    %c0_38 = arith.constant 0 : index
    %114 = vector.load %arg8[%c0_37, %c0_38] : memref<1x32xf32, #tpu.memory_space<vmem>>, vector<1x32xf32>
    %c0_39 = arith.constant 0 : index
    %c0_40 = arith.constant 0 : index
    %115 = vector.load %arg9[%c0_39, %c0_40] : memref<1x32xf32, #tpu.memory_space<vmem>>, vector<1x32xf32>
    %cst_41 = arith.constant dense<0.000000e+00> : vector<8xf32>
    %116 = vector.multi_reduction <add>, %113, %cst_41 [1] : vector<8x32xf32> to vector<8xf32>
    %117 = vector.shape_cast %116 : vector<8xf32> to vector<8x1xf32>
    %cst_42 = arith.constant 3.200000e+01 : f32
    %118 = vector.broadcast %cst_42 : f32 to vector<8x1xf32>
    %119 = arith.divf %117, %118 : vector<8x1xf32>
    %120 = vector.broadcast %119 : vector<8x1xf32> to vector<8x32xf32>
    %121 = arith.subf %113, %120 : vector<8x32xf32>
    %122 = arith.mulf %121, %121 : vector<8x32xf32>
    %cst_43 = arith.constant dense<0.000000e+00> : vector<8xf32>
    %123 = vector.multi_reduction <add>, %122, %cst_43 [1] : vector<8x32xf32> to vector<8xf32>
    %124 = vector.shape_cast %123 : vector<8xf32> to vector<8x1xf32>
    %cst_44 = arith.constant 3.200000e+01 : f32
    %125 = vector.broadcast %cst_44 : f32 to vector<8x1xf32>
    %126 = arith.divf %124, %125 : vector<8x1xf32>
    %cst_45 = arith.constant 9.99999974E-6 : f32
    %127 = vector.broadcast %cst_45 : f32 to vector<8x1xf32>
    %128 = arith.addf %126, %127 : vector<8x1xf32>
    %129 = math.rsqrt %128 : vector<8x1xf32>
    %130 = vector.broadcast %129 : vector<8x1xf32> to vector<8x32xf32>
    %131 = arith.mulf %121, %130 : vector<8x32xf32>
    %132 = vector.broadcast %114 : vector<1x32xf32> to vector<8x32xf32>
    %133 = arith.mulf %131, %132 : vector<8x32xf32>
    %134 = vector.broadcast %115 : vector<1x32xf32> to vector<8x32xf32>
    %135 = arith.addf %133, %134 : vector<8x32xf32>
    %c0_46 = arith.constant 0 : index
    %c0_47 = arith.constant 0 : index
    %c0_48 = arith.constant 0 : index
    %136 = vector.load %arg10[%c0_46, %c0_47, %c0_48] : memref<1x8x32xf32, #tpu.memory_space<vmem>>, vector<1x8x32xf32>
    %137 = vector.shape_cast %136 : vector<1x8x32xf32> to vector<8x32xf32>
    %138 = vector.shape_cast %135 : vector<8x32xf32> to vector<1x8x32xf32>
    tpu.vector_store %arg10[%c0_46, %c0_47, %c0_48], %138 {strides = array<i32>} : memref<1x8x32xf32, #tpu.memory_space<vmem>>, vector<1x8x32xf32>,
    return
  }
  func.func @transform_0(%arg0: i32) -> (i32, i32, i32) {
    %c0_i32 = arith.constant 0 : i32
    %c0_i32_0 = arith.constant 0 : i32
    %c0_i32_1 = arith.constant 0 : i32
    return %arg0, %c0_i32, %c0_i32_0 : i32, i32, i32
  }
  func.func @transform_1(%arg0: i32) -> (i32, i32, i32) {
    %c0_i32 = arith.constant 0 : i32
    %c0_i32_0 = arith.constant 0 : i32
    %c0_i32_1 = arith.constant 0 : i32
    return %arg0, %c0_i32, %c0_i32_0 : i32, i32, i32
  }
  func.func @transform_2(%arg0: i32) -> (i32, i32, i32) {
    %c0_i32 = arith.constant 0 : i32
    %c0_i32_0 = arith.constant 0 : i32
    %c0_i32_1 = arith.constant 0 : i32
    return %arg0, %c0_i32, %c0_i32_0 : i32, i32, i32
  }
  func.func @transform_3(%arg0: i32) -> (i32, i32, i32) {
    %c0_i32 = arith.constant 0 : i32
    %c0_i32_0 = arith.constant 0 : i32
    %c0_i32_1 = arith.constant 0 : i32
    return %arg0, %c0_i32, %c0_i32_0 : i32, i32, i32
  }
  func.func @transform_4(%arg0: i32) -> (i32, i32, i32) {
    %c0_i32 = arith.constant 0 : i32
    %c0_i32_0 = arith.constant 0 : i32
    %c0_i32_1 = arith.constant 0 : i32
    return %arg0, %c0_i32, %c0_i32_0 : i32, i32, i32
  }
  func.func @transform_5(%arg0: i32) -> (i32, i32) {
    %c0_i32 = arith.constant 0 : i32
    %c0_i32_0 = arith.constant 0 : i32
    %c0_i32_1 = arith.constant 0 : i32
    return %c0_i32, %c0_i32_0 : i32, i32
  }
  func.func @transform_6(%arg0: i32) -> (i32, i32) {
    %c0_i32 = arith.constant 0 : i32
    %c0_i32_0 = arith.constant 0 : i32
    %c0_i32_1 = arith.constant 0 : i32
    return %c0_i32, %c0_i32_0 : i32, i32
  }
  func.func @transform_7(%arg0: i32) -> (i32, i32) {
    %c0_i32 = arith.constant 0 : i32
    %c0_i32_0 = arith.constant 0 : i32
    %c0_i32_1 = arith.constant 0 : i32
    return %c0_i32, %c0_i32_0 : i32, i32
  }
  func.func @transform_8(%arg0: i32) -> (i32, i32) {
    %c0_i32 = arith.constant 0 : i32
    %c0_i32_0 = arith.constant 0 : i32
    %c0_i32_1 = arith.constant 0 : i32
    return %c0_i32, %c0_i32_0 : i32, i32
  }
  func.func @transform_9(%arg0: i32) -> (i32, i32, i32) {
    %c0_i32 = arith.constant 0 : i32
    %c0_i32_0 = arith.constant 0 : i32
    %c0_i32_1 = arith.constant 0 : i32
    return %arg0, %c0_i32, %c0_i32_0 : i32, i32, i32
  }
}

</mosaic_0001>

<llo_original>
// kernel: global_decoder_layer.9
$region0: #{global_decoder_layer.9}
  #allocation0 [shape = 'u32[]', space=smem, size = 0x4, offset = 0x4, fixed_abs, tag = 'smem constant byte address 0x4 - core index']
  #allocation1 [shape = 'u32[144,128]{1,0:T(1,128)}', space=vmem, size = 0x12000, scoped, tag = 'internal scratch']
  %s0 = inlined_call_operand.vmem [shape: f32[32,32], index: 0, kind: input, shape index: {}]
  %s1 = inlined_call_operand.vmem [shape: f32[32,32], index: 1, kind: input, shape index: {}]
  %s2 = inlined_call_operand.vmem [shape: bf16[32,32], index: 2, kind: input, shape index: {}]
  %s3 = inlined_call_operand.vmem [shape: f32[1,32], index: 3, kind: input, shape index: {}]
  %s4 = inlined_call_operand.vmem [shape: bf16[32,32], index: 4, kind: input, shape index: {}]
  %s5 = inlined_call_operand.vmem [shape: f32[1,32], index: 5, kind: input, shape index: {}]
  %s6 = inlined_call_operand.vmem [shape: f32[32,32], index: 6, kind: output, shape index: {0}]
  %s7 = inlined_call_operand.vmem [shape: f32[32,32], index: 7, kind: output, shape index: {1}]
  %8 = xla_tuple %s6, %s7
  %s9 = sld [smem:[#allocation0]]
  $region42: #{global_decoder_layer.9} parent=0
    _
  %s11 = ssub.s32 1, %s9
  %s12 = scalar_select 0, %s11, %s9
  // Predicated region
  $region2: #{global_decoder_layer.9} parent=0 // pred_check
    _
  $region3: #{global_decoder_layer.9} parent=0 // pred_check_branch
    %14 = sbr.rel (0) target = $region5
  $region4: #{global_decoder_layer.9} parent=0 // pred_region
    _
  $region5: #{global_decoder_layer.9} parent=0 // pred_fallthru
    _
  // Predicated region
  $region6: #{global_decoder_layer.9} parent=0 // pred_check
    _
  $region7: #{global_decoder_layer.9} parent=0 // pred_check_branch
    %16 = sbr.rel (0) target = $region9
  $region8: #{global_decoder_layer.9} parent=0 // pred_region
    _
  $region9: #{global_decoder_layer.9} parent=0 // pred_fallthru
    _
  // Predicated region
  $region10: #{global_decoder_layer.9} parent=0 // pred_check
    _
  $region11: #{global_decoder_layer.9} parent=0 // pred_check_branch
    %18 = sbr.rel (0) target = $region13
  $region12: #{global_decoder_layer.9} parent=0 // pred_region
    _
  $region13: #{global_decoder_layer.9} parent=0 // pred_fallthru
    _
  // Predicated region
  $region14: #{global_decoder_layer.9} parent=0 // pred_check
    _
  $region15: #{global_decoder_layer.9} parent=0 // pred_check_branch
    %20 = sbr.rel (0) target = $region17
  $region16: #{global_decoder_layer.9} parent=0 // pred_region
    _
  $region17: #{global_decoder_layer.9} parent=0 // pred_fallthru
    _
  // Predicated region
  $region18: #{global_decoder_layer.9} parent=0 // pred_check
    _
  $region19: #{global_decoder_layer.9} parent=0 // pred_check_branch
    %22 = sbr.rel (0) target = $region21
  $region20: #{global_decoder_layer.9} parent=0 // pred_region
    _
  $region21: #{global_decoder_layer.9} parent=0 // pred_fallthru
    _
  // Predicated region
  $region22: #{global_decoder_layer.9} parent=0 // pred_check
    _
  $region23: #{global_decoder_layer.9} parent=0 // pred_check_branch
    %24 = sbr.rel (0) target = $region25
  $region24: #{global_decoder_layer.9} parent=0 // pred_region
    _
  $region25: #{global_decoder_layer.9} parent=0 // pred_fallthru
    _
  %v26 = vld [vmem:[%s0] sm:$0xff]
  %v27 = vld [vmem:[%s0 + $0x8] sm:$0xff]
  %v28 = vld [vmem:[%s0 + $0x10] sm:$0xff]
  %v29 = vld [vmem:[%s0 + $0x18] sm:$0xff]
  %v30 = vld [vmem:[%s1] sm:$0xff]
  %v31 = vld [vmem:[%s1 + $0x8] sm:$0xff]
  %v32 = vld [vmem:[%s1 + $0x10] sm:$0xff]
  %v33 = vld [vmem:[%s1 + $0x18] sm:$0xff]
  %v34 = vadd.f32 %v26, %v30
  %v35 = vadd.f32 %v27, %v31
  %v36 = vadd.f32 %v28, %v32
  %v37 = vadd.f32 %v29, %v33
  %v38 = vld [vmem:[%s2] sm:$0xf]
  %v39 = vld [vmem:[%s2 + $0x4] sm:$0xf]
  %v40 = vld [vmem:[%s2 + $0x8] sm:$0xf]
  %v41 = vld [vmem:[%s2 + $0xc] sm:$0xf]
  %v42 = vpack.c.bf16 %v35, %v34
  %v43 = vpack.c.bf16 %v37, %v36
  %v44 = vld [vmem:[%s3] sm:$0x1]
  %v46 = vlaneseq
  %v47 = vshrl.u32 %v46, 7
  %v48 = vsub.s32 0, %v47
  %v49 = vrot.slane %v44, %v48
  %v55 = vunpack.c.l.b16 %v38
  %v56 = vunpack.c.l.b16 %v39
  %v57 = vunpack.c.l.b16 %v40
  %v58 = vunpack.c.l.b16 %v41
  %v59 = vpack.c.b16 %v56, %v55
  %v60 = vpack.c.b16 %v58, %v57
  %vm63 = vcmask 261120
  %v65 = vsel %vm63, %v42, 0
  %v68 = vsel %vm63, %v43, 0
  %70 = vmatprep.subr.bf16.mxu0 0
  %71 = vmatpush1.bf16.msra.mxu0 %v59
  %72 = vmatprep.subr.bf16.mxu0 0
  %73 = vmatpush1.bf16.msra.mxu0 %v60
  %74 = vmatprep.subr.bf16.mxu0 0
  %75 = vmatpush1.bf16.msra.mxu0 0
  %76 = vmatprep.subr.bf16.mxu0 0
  %77 = vmatpush1.bf16.msra.mxu0 0
  %78 = vmatprep.subr.bf16.mxu0 0
  %79 = vmatpush1.bf16.msra.mxu0 0
  %80 = vmatprep.subr.bf16.mxu0 0
  %81 = vmatpush1.bf16.msra.mxu0 0
  %82 = vmatprep.subr.bf16.mxu0 0
  %83 = vmatpush1.bf16.msra.mxu0 0
  %84 = vmatprep.subr.bf16.mxu0 0
  %85 = vmatpush1.bf16.msra.mxu0 0
  %86 = vmatprep.subr.bf16.mxu0 0
  %87 = vmatpush1.bf16.msra.mxu0 0
  %88 = vmatprep.subr.bf16.mxu0 0
  %89 = vmatpush1.bf16.msra.mxu0 0
  %90 = vmatprep.subr.bf16.mxu0 0
  %91 = vmatpush1.bf16.msra.mxu0 0
  %92 = vmatprep.subr.bf16.mxu0 0
  %93 = vmatpush1.bf16.msra.mxu0 0
  %94 = vmatprep.subr.bf16.mxu0 0
  %95 = vmatpush1.bf16.msra.mxu0 0
  %96 = vmatprep.subr.bf16.mxu0 0
  %97 = vmatpush1.bf16.msra.mxu0 0
  %98 = vmatprep.subr.bf16.mxu0 0
  %99 = vmatpush1.bf16.msra.mxu0 0
  %100 = vmatprep.subr.bf16.mxu0 0
  %101 = vmatpush1.bf16.msra.mxu0 0
  %102 = vmatprep.mubr.bf16.mxu0 0
  %103 = vmatmul.mubr.bf16.gmra.mrb[0].mxu0 %v65
  %v104 = vpop.f32.mrb[0].mxu0
  %v105 = vadd.f32 %v49, %v104
  %v106 = vpop.f32.mrb[0].mxu0
  %v107 = vpop.f32.mrb[0].mxu0
  %v108 = vadd.f32 %v49, %v107
  %v109 = vpop.f32.mrb[0].mxu0
  %110 = vmatprep.mubr.bf16.mxu0 0
  %111 = vmatmul.mubr.bf16.gmra.mrb[0].mxu0 %v68
  %v112 = vpop.f32.mrb[0].mxu0
  %v113 = vadd.f32 %v49, %v112
  %v114 = vpop.f32.mrb[0].mxu0
  %v115 = vpop.f32.mrb[0].mxu0
  %v116 = vadd.f32 %v49, %v115
  %v117 = vpop.f32.mrb[0].mxu0
  %118 = vdwg.mxu0
  %119 = vst.msk [vmem:[%s6] sm:$0xff] %vm63, %v105
  %120 = vst.msk [vmem:[%s6 + $0x8] sm:$0xff] %vm63, %v108
  %121 = vst.msk [vmem:[%s6 + $0x10] sm:$0xff] %vm63, %v113
  %122 = vst.msk [vmem:[%s6 + $0x18] sm:$0xff] %vm63, %v116
  %v123 = vld [vmem:[%s4] sm:$0xf]
  %v124 = vld [vmem:[%s4 + $0x4] sm:$0xf]
  %v125 = vld [vmem:[%s4 + $0x8] sm:$0xf]
  %v126 = vld [vmem:[%s4 + $0xc] sm:$0xf]
  %v127 = vpack.c.bf16 %v27, %v26
  %v128 = vpack.c.bf16 %v29, %v28
  %v129 = vld [vmem:[%s5] sm:$0x1]
  %v131 = vlaneseq
  %v132 = vshrl.u32 %v131, 7
  %v133 = vsub.s32 0, %v132
  %v134 = vrot.slane %v129, %v133
  %v140 = vunpack.c.l.b16 %v123
  %v141 = vunpack.c.l.b16 %v124
  %v142 = vunpack.c.l.b16 %v125
  %v143 = vunpack.c.l.b16 %v126
  %v144 = vpack.c.b16 %v141, %v140
  %v145 = vpack.c.b16 %v143, %v142
  %v149 = vsel %vm63, %v127, 0
  %v152 = vsel %vm63, %v128, 0
  %154 = vmatprep.subr.bf16.mxu0 0
  %155 = vmatpush1.bf16.msra.mxu0 %v144
  %156 = vmatprep.subr.bf16.mxu0 0
  %157 = vmatpush1.bf16.msra.mxu0 %v145
  %158 = vmatprep.subr.bf16.mxu0 0
  %159 = vmatpush1.bf16.msra.mxu0 0
  %160 = vmatprep.subr.bf16.mxu0 0
  %161 = vmatpush1.bf16.msra.mxu0 0
  %162 = vmatprep.subr.bf16.mxu0 0
  %163 = vmatpush1.bf16.msra.mxu0 0
  %164 = vmatprep.subr.bf16.mxu0 0
  %165 = vmatpush1.bf16.msra.mxu0 0
  %166 = vmatprep.subr.bf16.mxu0 0
  %167 = vmatpush1.bf16.msra.mxu0 0
  %168 = vmatprep.subr.bf16.mxu0 0
  %169 = vmatpush1.bf16.msra.mxu0 0
  %170 = vmatprep.subr.bf16.mxu0 0
  %171 = vmatpush1.bf16.msra.mxu0 0
  %172 = vmatprep.subr.bf16.mxu0 0
  %173 = vmatpush1.bf16.msra.mxu0 0
  %174 = vmatprep.subr.bf16.mxu0 0
  %175 = vmatpush1.bf16.msra.mxu0 0
  %176 = vmatprep.subr.bf16.mxu0 0
  %177 = vmatpush1.bf16.msra.mxu0 0
  %178 = vmatprep.subr.bf16.mxu0 0
  %179 = vmatpush1.bf16.msra.mxu0 0
  %180 = vmatprep.subr.bf16.mxu0 0
  %181 = vmatpush1.bf16.msra.mxu0 0
  %182 = vmatprep.subr.bf16.mxu0 0
  %183 = vmatpush1.bf16.msra.mxu0 0
  %184 = vmatprep.subr.bf16.mxu0 0
  %185 = vmatpush1.bf16.msra.mxu0 0
  %186 = vmatprep.mubr.bf16.mxu0 0
  %187 = vmatmul.mubr.bf16.gmra.mrb[0].mxu0 %v149
  %v188 = vpop.f32.mrb[0].mxu0
  %v189 = vadd.f32 %v134, %v188
  %v190 = vpop.f32.mrb[0].mxu0
  %v191 = vpop.f32.mrb[0].mxu0
  %v192 = vadd.f32 %v134, %v191
  %v193 = vpop.f32.mrb[0].mxu0
  %194 = vmatprep.mubr.bf16.mxu0 0
  %195 = vmatmul.mubr.bf16.gmra.mrb[0].mxu0 %v152
  %v196 = vpop.f32.mrb[0].mxu0
  %v197 = vadd.f32 %v134, %v196
  %v198 = vpop.f32.mrb[0].mxu0
  %v199 = vpop.f32.mrb[0].mxu0
  %v200 = vadd.f32 %v134, %v199
  %v201 = vpop.f32.mrb[0].mxu0
  %202 = vdwg.mxu0
  %203 = vst.msk [vmem:[%s7] sm:$0xff] %vm63, %v189
  %204 = vst.msk [vmem:[%s7 + $0x8] sm:$0xff] %vm63, %v192
  %205 = vst.msk [vmem:[%s7 + $0x10] sm:$0xff] %vm63, %v197
  %206 = vst.msk [vmem:[%s7 + $0x18] sm:$0xff] %vm63, %v200
  // Predicated region
  $region26: #{global_decoder_layer.9} parent=0 // pred_check
    _
  $region27: #{global_decoder_layer.9} parent=0 // pred_check_branch
    %208 = sbr.rel (0) target = $region29
  $region28: #{global_decoder_layer.9} parent=0 // pred_region
    _
  $region29: #{global_decoder_layer.9} parent=0 // pred_fallthru
    _
  // Predicated region
  $region30: #{global_decoder_layer.9} parent=0 // pred_check
    _
  $region31: #{global_decoder_layer.9} parent=0 // pred_check_branch
    %210 = sbr.rel (0) target = $region33
  $region32: #{global_decoder_layer.9} parent=0 // pred_region
    _
  $region33: #{global_decoder_layer.9} parent=0 // pred_fallthru
    _
  // Predicated region
  $region34: #{global_decoder_layer.9} parent=0 // pred_check
    _
  $region35: #{global_decoder_layer.9} parent=0 // pred_check_branch
    %212 = sbr.rel (0) target = $region37
  $region36: #{global_decoder_layer.9} parent=0 // pred_region
    _
  $region37: #{global_decoder_layer.9} parent=0 // pred_fallthru
    _
  // Predicated region
  $region38: #{global_decoder_layer.9} parent=0 // pred_check
    _
  $region39: #{global_decoder_layer.9} parent=0 // pred_check_branch
    %214 = sbr.rel (0) target = $region41
  $region40: #{global_decoder_layer.9} parent=0 // pred_region
    _
  $region41: #{global_decoder_layer.9} parent=0 // pred_fallthru
    _

// kernel: global_decoder_layer.8
$region0: #{global_decoder_layer.8}
  #allocation0 [shape = 'u32[]', space=smem, size = 0x4, offset = 0x4, fixed_abs, tag = 'smem constant byte address 0x4 - core index']
  #allocation1 [shape = 'u32[144,128]{1,0:T(1,128)}', space=vmem, size = 0x12000, scoped, tag = 'internal scratch']
  %s0 = inlined_call_operand.vmem [shape: f32[16,32], index: 0, kind: input, shape index: {}]
  %s1 = inlined_call_operand.vmem [shape: f32[16,32], index: 1, kind: input, shape index: {}]
  %s2 = inlined_call_operand.vmem [shape: bf16[32,32], index: 2, kind: input, shape index: {}]
  %s3 = inlined_call_operand.vmem [shape: f32[1,32], index: 3, kind: input, shape index: {}]
  %s4 = inlined_call_operand.vmem [shape: f32[16,32], index: 4, kind: output, shape index: {}]
  %s5 = sld [smem:[#allocation0]]
  $region26: #{global_decoder_layer.8} parent=0
    _
  %s7 = ssub.s32 1, %s5
  %s8 = scalar_select 0, %s7, %s5
  // Predicated region
  $region2: #{global_decoder_layer.8} parent=0 // pred_check
    _
  $region3: #{global_decoder_layer.8} parent=0 // pred_check_branch
    %10 = sbr.rel (0) target = $region5
  $region4: #{global_decoder_layer.8} parent=0 // pred_region
    _
  $region5: #{global_decoder_layer.8} parent=0 // pred_fallthru
    _
  // Predicated region
  $region6: #{global_decoder_layer.8} parent=0 // pred_check
    _
  $region7: #{global_decoder_layer.8} parent=0 // pred_check_branch
    %12 = sbr.rel (0) target = $region9
  $region8: #{global_decoder_layer.8} parent=0 // pred_region
    _
  $region9: #{global_decoder_layer.8} parent=0 // pred_fallthru
    _
  // Predicated region
  $region10: #{global_decoder_layer.8} parent=0 // pred_check
    _
  $region11: #{global_decoder_layer.8} parent=0 // pred_check_branch
    %14 = sbr.rel (0) target = $region13
  $region12: #{global_decoder_layer.8} parent=0 // pred_region
    _
  $region13: #{global_decoder_layer.8} parent=0 // pred_fallthru
    _
  // Predicated region
  $region14: #{global_decoder_layer.8} parent=0 // pred_check
    _
  $region15: #{global_decoder_layer.8} parent=0 // pred_check_branch
    %16 = sbr.rel (0) target = $region17
  $region16: #{global_decoder_layer.8} parent=0 // pred_region
    _
  $region17: #{global_decoder_layer.8} parent=0 // pred_fallthru
    _
  %v18 = vld [vmem:[%s0] sm:$0xff]
  %v19 = vld [vmem:[%s0 + $0x8] sm:$0xff]
  %v20 = vld [vmem:[%s1] sm:$0xff]
  %v21 = vld [vmem:[%s1 + $0x8] sm:$0xff]
  %v22 = vadd.f32 %v18, %v20
  %v23 = vadd.f32 %v19, %v21
  %v24 = vld [vmem:[%s2] sm:$0xf]
  %v25 = vld [vmem:[%s2 + $0x4] sm:$0xf]
  %v26 = vld [vmem:[%s2 + $0x8] sm:$0xf]
  %v27 = vld [vmem:[%s2 + $0xc] sm:$0xf]
  %v28 = vpack.c.bf16 %v23, %v22
  %v29 = vld [vmem:[%s3] sm:$0x1]
  %v31 = vlaneseq
  %v32 = vshrl.u32 %v31, 7
  %v33 = vsub.s32 0, %v32
  %v34 = vrot.slane %v29, %v33
  %v40 = vunpack.c.l.b16 %v24
  %v41 = vunpack.c.l.b16 %v25
  %v42 = vunpack.c.l.b16 %v26
  %v43 = vunpack.c.l.b16 %v27
  %v44 = vpack.c.b16 %v41, %v40
  %v45 = vpack.c.b16 %v43, %v42
  %vm48 = vcmask 261120
  %v50 = vsel %vm48, %v28, 0
  %52 = vmatprep.subr.bf16.mxu0 0
  %53 = vmatpush1.bf16.msra.mxu0 %v44
  %54 = vmatprep.subr.bf16.mxu0 0
  %55 = vmatpush1.bf16.msra.mxu0 %v45
  %56 = vmatprep.subr.bf16.mxu0 0
  %57 = vmatpush1.bf16.msra.mxu0 0
  %58 = vmatprep.subr.bf16.mxu0 0
  %59 = vmatpush1.bf16.msra.mxu0 0
  %60 = vmatprep.subr.bf16.mxu0 0
  %61 = vmatpush1.bf16.msra.mxu0 0
  %62 = vmatprep.subr.bf16.mxu0 0
  %63 = vmatpush1.bf16.msra.mxu0 0
  %64 = vmatprep.subr.bf16.mxu0 0
  %65 = vmatpush1.bf16.msra.mxu0 0
  %66 = vmatprep.subr.bf16.mxu0 0
  %67 = vmatpush1.bf16.msra.mxu0 0
  %68 = vmatprep.subr.bf16.mxu0 0
  %69 = vmatpush1.bf16.msra.mxu0 0
  %70 = vmatprep.subr.bf16.mxu0 0
  %71 = vmatpush1.bf16.msra.mxu0 0
  %72 = vmatprep.subr.bf16.mxu0 0
  %73 = vmatpush1.bf16.msra.mxu0 0
  %74 = vmatprep.subr.bf16.mxu0 0
  %75 = vmatpush1.bf16.msra.mxu0 0
  %76 = vmatprep.subr.bf16.mxu0 0
  %77 = vmatpush1.bf16.msra.mxu0 0
  %78 = vmatprep.subr.bf16.mxu0 0
  %79 = vmatpush1.bf16.msra.mxu0 0
  %80 = vmatprep.subr.bf16.mxu0 0
  %81 = vmatpush1.bf16.msra.mxu0 0
  %82 = vmatprep.subr.bf16.mxu0 0
  %83 = vmatpush1.bf16.msra.mxu0 0
  %84 = vmatprep.mubr.bf16.mxu0 0
  %85 = vmatmul.mubr.bf16.gmra.mrb[0].mxu0 %v50
  %v86 = vpop.f32.mrb[0].mxu0
  %v87 = vadd.f32 %v34, %v86
  %v88 = vpop.f32.mrb[0].mxu0
  %v89 = vpop.f32.mrb[0].mxu0
  %v90 = vadd.f32 %v34, %v89
  %v91 = vpop.f32.mrb[0].mxu0
  %92 = vdwg.mxu0
  %93 = vst.msk [vmem:[%s4] sm:$0xff] %vm48, %v87
  %94 = vst.msk [vmem:[%s4 + $0x8] sm:$0xff] %vm48, %v90
  // Predicated region
  $region18: #{global_decoder_layer.8} parent=0 // pred_check
    _
  $region19: #{global_decoder_layer.8} parent=0 // pred_check_branch
    %96 = sbr.rel (0) target = $region21
  $region20: #{global_decoder_layer.8} parent=0 // pred_region
    _
  $region21: #{global_decoder_layer.8} parent=0 // pred_fallthru
    _
  // Predicated region
  $region22: #{global_decoder_layer.8} parent=0 // pred_check
    _
  $region23: #{global_decoder_layer.8} parent=0 // pred_check_branch
    %98 = sbr.rel (0) target = $region25
  $region24: #{global_decoder_layer.8} parent=0 // pred_region
    _
  $region25: #{global_decoder_layer.8} parent=0 // pred_fallthru
    _

// kernel: global_decoder_layer.6
$region0: #{global_decoder_layer.6}
  #allocation0 [shape = 'u32[]', space=smem, size = 0x4, offset = 0x4, fixed_abs, tag = 'smem constant byte address 0x4 - core index']
  #allocation1 [shape = 'u32[144,128]{1,0:T(1,128)}', space=vmem, size = 0x12000, scoped, tag = 'internal scratch']
  %s0 = inlined_call_operand.vmem [shape: f32[16,32], index: 0, kind: input, shape index: {}]
  %s1 = inlined_call_operand.vmem [shape: f32[16,32], index: 1, kind: input, shape index: {}]
  %s2 = inlined_call_operand.vmem [shape: bf16[32,32], index: 2, kind: input, shape index: {}]
  %s3 = inlined_call_operand.vmem [shape: f32[1,32], index: 3, kind: input, shape index: {}]
  %s4 = inlined_call_operand.vmem [shape: bf16[32,32], index: 4, kind: input, shape index: {}]
  %s5 = inlined_call_operand.vmem [shape: f32[1,32], index: 5, kind: input, shape index: {}]
  %s6 = inlined_call_operand.vmem [shape: bf16[32,32], index: 6, kind: input, shape index: {}]
  %s7 = inlined_call_operand.vmem [shape: f32[1,32], index: 7, kind: input, shape index: {}]
  %s8 = inlined_call_operand.vmem [shape: f32[16,32], index: 8, kind: output, shape index: {0}]
  %s9 = inlined_call_operand.vmem [shape: f32[16,32], index: 9, kind: output, shape index: {1}]
  %s10 = inlined_call_operand.vmem [shape: f32[16,32], index: 10, kind: output, shape index: {2}]
  %11 = xla_tuple %s8, %s9, %s10
  %s12 = sld [smem:[#allocation0]]
  $region58: #{global_decoder_layer.6} parent=0
    _
  %s14 = ssub.s32 1, %s12
  %s15 = scalar_select 0, %s14, %s12
  // Predicated region
  $region2: #{global_decoder_layer.6} parent=0 // pred_check
    _
  $region3: #{global_decoder_layer.6} parent=0 // pred_check_branch
    %17 = sbr.rel (0) target = $region5
  $region4: #{global_decoder_layer.6} parent=0 // pred_region
    _
  $region5: #{global_decoder_layer.6} parent=0 // pred_fallthru
    _
  // Predicated region
  $region6: #{global_decoder_layer.6} parent=0 // pred_check
    _
  $region7: #{global_decoder_layer.6} parent=0 // pred_check_branch
    %19 = sbr.rel (0) target = $region9
  $region8: #{global_decoder_layer.6} parent=0 // pred_region
    _
  $region9: #{global_decoder_layer.6} parent=0 // pred_fallthru
    _
  // Predicated region
  $region10: #{global_decoder_layer.6} parent=0 // pred_check
    _
  $region11: #{global_decoder_layer.6} parent=0 // pred_check_branch
    %21 = sbr.rel (0) target = $region13
  $region12: #{global_decoder_layer.6} parent=0 // pred_region
    _
  $region13: #{global_decoder_layer.6} parent=0 // pred_fallthru
    _
  // Predicated region
  $region14: #{global_decoder_layer.6} parent=0 // pred_check
    _
  $region15: #{global_decoder_layer.6} parent=0 // pred_check_branch
    %23 = sbr.rel (0) target = $region17
  $region16: #{global_decoder_layer.6} parent=0 // pred_region
    _
  $region17: #{global_decoder_layer.6} parent=0 // pred_fallthru
    _
  // Predicated region
  $region18: #{global_decoder_layer.6} parent=0 // pred_check
    _
  $region19: #{global_decoder_layer.6} parent=0 // pred_check_branch
    %25 = sbr.rel (0) target = $region21
  $region20: #{global_decoder_layer.6} parent=0 // pred_region
    _
  $region21: #{global_decoder_layer.6} parent=0 // pred_fallthru
    _
  // Predicated region
  $region22: #{global_decoder_layer.6} parent=0 // pred_check
    _
  $region23: #{global_decoder_layer.6} parent=0 // pred_check_branch
    %27 = sbr.rel (0) target = $region25
  $region24: #{global_decoder_layer.6} parent=0 // pred_region
    _
  $region25: #{global_decoder_layer.6} parent=0 // pred_fallthru
    _
  // Predicated region
  $region26: #{global_decoder_layer.6} parent=0 // pred_check
    _
  $region27: #{global_decoder_layer.6} parent=0 // pred_check_branch
    %29 = sbr.rel (0) target = $region29
  $region28: #{global_decoder_layer.6} parent=0 // pred_region
    _
  $region29: #{global_decoder_layer.6} parent=0 // pred_fallthru
    _
  // Predicated region
  $region30: #{global_decoder_layer.6} parent=0 // pred_check
    _
  $region31: #{global_decoder_layer.6} parent=0 // pred_check_branch
    %31 = sbr.rel (0) target = $region33
  $region32: #{global_decoder_layer.6} parent=0 // pred_region
    _
  $region33: #{global_decoder_layer.6} parent=0 // pred_fallthru
    _
  %v33 = vld [vmem:[%s0] sm:$0xff]
  %v34 = vld [vmem:[%s0 + $0x8] sm:$0xff]
  %v35 = vld [vmem:[%s1] sm:$0xff]
  %v36 = vld [vmem:[%s1 + $0x8] sm:$0xff]
  %v37 = vadd.f32 %v33, %v35
  %v38 = vadd.f32 %v34, %v36
  %v39 = vld [vmem:[%s2] sm:$0xf]
  %v40 = vld [vmem:[%s2 + $0x4] sm:$0xf]
  %v41 = vld [vmem:[%s2 + $0x8] sm:$0xf]
  %v42 = vld [vmem:[%s2 + $0xc] sm:$0xf]
  %v43 = vpack.c.bf16 %v38, %v37
  %v44 = vld [vmem:[%s3] sm:$0x1]
  %v46 = vlaneseq
  %v47 = vshrl.u32 %v46, 7
  %v48 = vsub.s32 0, %v47
  %v49 = vrot.slane %v44, %v48
  %v55 = vunpack.c.l.b16 %v39
  %v56 = vunpack.c.l.b16 %v40
  %v57 = vunpack.c.l.b16 %v41
  %v58 = vunpack.c.l.b16 %v42
  %v59 = vpack.c.b16 %v56, %v55
  %v60 = vpack.c.b16 %v58, %v57
  %vm63 = vcmask 261120
  %v65 = vsel %vm63, %v43, 0
  %67 = vmatprep.subr.bf16.mxu0 0
  %68 = vmatpush1.bf16.msra.mxu0 %v59
  %69 = vmatprep.subr.bf16.mxu0 0
  %70 = vmatpush1.bf16.msra.mxu0 %v60
  %71 = vmatprep.subr.bf16.mxu0 0
  %72 = vmatpush1.bf16.msra.mxu0 0
  %73 = vmatprep.subr.bf16.mxu0 0
  %74 = vmatpush1.bf16.msra.mxu0 0
  %75 = vmatprep.subr.bf16.mxu0 0
  %76 = vmatpush1.bf16.msra.mxu0 0
  %77 = vmatprep.subr.bf16.mxu0 0
  %78 = vmatpush1.bf16.msra.mxu0 0
  %79 = vmatprep.subr.bf16.mxu0 0
  %80 = vmatpush1.bf16.msra.mxu0 0
  %81 = vmatprep.subr.bf16.mxu0 0
  %82 = vmatpush1.bf16.msra.mxu0 0
  %83 = vmatprep.subr.bf16.mxu0 0
  %84 = vmatpush1.bf16.msra.mxu0 0
  %85 = vmatprep.subr.bf16.mxu0 0
  %86 = vmatpush1.bf16.msra.mxu0 0
  %87 = vmatprep.subr.bf16.mxu0 0
  %88 = vmatpush1.bf16.msra.mxu0 0
  %89 = vmatprep.subr.bf16.mxu0 0
  %90 = vmatpush1.bf16.msra.mxu0 0
  %91 = vmatprep.subr.bf16.mxu0 0
  %92 = vmatpush1.bf16.msra.mxu0 0
  %93 = vmatprep.subr.bf16.mxu0 0
  %94 = vmatpush1.bf16.msra.mxu0 0
  %95 = vmatprep.subr.bf16.mxu0 0
  %96 = vmatpush1.bf16.msra.mxu0 0
  %97 = vmatprep.subr.bf16.mxu0 0
  %98 = vmatpush1.bf16.msra.mxu0 0
  %99 = vmatprep.mubr.bf16.mxu0 0
  %100 = vmatmul.mubr.bf16.gmra.mrb[0].mxu0 %v65
  %v101 = vpop.f32.mrb[0].mxu0
  %v102 = vadd.f32 %v49, %v101
  %v103 = vpop.f32.mrb[0].mxu0
  %v104 = vpop.f32.mrb[0].mxu0
  %v105 = vadd.f32 %v49, %v104
  %v106 = vpop.f32.mrb[0].mxu0
  %107 = vdwg.mxu0
  %108 = vst.msk [vmem:[%s8] sm:$0xff] %vm63, %v102
  %109 = vst.msk [vmem:[%s8 + $0x8] sm:$0xff] %vm63, %v105
  %v110 = vld [vmem:[%s4] sm:$0xf]
  %v111 = vld [vmem:[%s4 + $0x4] sm:$0xf]
  %v112 = vld [vmem:[%s4 + $0x8] sm:$0xf]
  %v113 = vld [vmem:[%s4 + $0xc] sm:$0xf]
  %v114 = vld [vmem:[%s5] sm:$0x1]
  %v116 = vlaneseq
  %v117 = vshrl.u32 %v116, 7
  %v118 = vsub.s32 0, %v117
  %v119 = vrot.slane %v114, %v118
  %v125 = vunpack.c.l.b16 %v110
  %v126 = vunpack.c.l.b16 %v111
  %v127 = vunpack.c.l.b16 %v112
  %v128 = vunpack.c.l.b16 %v113
  %v129 = vpack.c.b16 %v126, %v125
  %v130 = vpack.c.b16 %v128, %v127
  %133 = vmatprep.subr.bf16.mxu0 0
  %134 = vmatpush1.bf16.msra.mxu0 %v129
  %135 = vmatprep.subr.bf16.mxu0 0
  %136 = vmatpush1.bf16.msra.mxu0 %v130
  %137 = vmatprep.subr.bf16.mxu0 0
  %138 = vmatpush1.bf16.msra.mxu0 0
  %139 = vmatprep.subr.bf16.mxu0 0
  %140 = vmatpush1.bf16.msra.mxu0 0
  %141 = vmatprep.subr.bf16.mxu0 0
  %142 = vmatpush1.bf16.msra.mxu0 0
  %143 = vmatprep.subr.bf16.mxu0 0
  %144 = vmatpush1.bf16.msra.mxu0 0
  %145 = vmatprep.subr.bf16.mxu0 0
  %146 = vmatpush1.bf16.msra.mxu0 0
  %147 = vmatprep.subr.bf16.mxu0 0
  %148 = vmatpush1.bf16.msra.mxu0 0
  %149 = vmatprep.subr.bf16.mxu0 0
  %150 = vmatpush1.bf16.msra.mxu0 0
  %151 = vmatprep.subr.bf16.mxu0 0
  %152 = vmatpush1.bf16.msra.mxu0 0
  %153 = vmatprep.subr.bf16.mxu0 0
  %154 = vmatpush1.bf16.msra.mxu0 0
  %155 = vmatprep.subr.bf16.mxu0 0
  %156 = vmatpush1.bf16.msra.mxu0 0
  %157 = vmatprep.subr.bf16.mxu0 0
  %158 = vmatpush1.bf16.msra.mxu0 0
  %159 = vmatprep.subr.bf16.mxu0 0
  %160 = vmatpush1.bf16.msra.mxu0 0
  %161 = vmatprep.subr.bf16.mxu0 0
  %162 = vmatpush1.bf16.msra.mxu0 0
  %163 = vmatprep.subr.bf16.mxu0 0
  %164 = vmatpush1.bf16.msra.mxu0 0
  %165 = vmatprep.mubr.bf16.mxu0 0
  %166 = vmatmul.mubr.bf16.gmra.mrb[0].mxu0 %v65
  %v167 = vpop.f32.mrb[0].mxu0
  %v168 = vadd.f32 %v119, %v167
  %v169 = vpop.f32.mrb[0].mxu0
  %v170 = vpop.f32.mrb[0].mxu0
  %v171 = vadd.f32 %v119, %v170
  %v172 = vpop.f32.mrb[0].mxu0
  %173 = vdwg.mxu0
  %174 = vst.msk [vmem:[%s9] sm:$0xff] %vm63, %v168
  %175 = vst.msk [vmem:[%s9 + $0x8] sm:$0xff] %vm63, %v171
  %v176 = vld [vmem:[%s6] sm:$0xf]
  %v177 = vld [vmem:[%s6 + $0x4] sm:$0xf]
  %v178 = vld [vmem:[%s6 + $0x8] sm:$0xf]
  %v179 = vld [vmem:[%s6 + $0xc] sm:$0xf]
  %v180 = vpack.c.bf16 %v34, %v33
  %v181 = vld [vmem:[%s7] sm:$0x1]
  %v183 = vlaneseq
  %v184 = vshrl.u32 %v183, 7
  %v185 = vsub.s32 0, %v184
  %v186 = vrot.slane %v181, %v185
  %v192 = vunpack.c.l.b16 %v176
  %v193 = vunpack.c.l.b16 %v177
  %v194 = vunpack.c.l.b16 %v178
  %v195 = vunpack.c.l.b16 %v179
  %v196 = vpack.c.b16 %v193, %v192
  %v197 = vpack.c.b16 %v195, %v194
  %v201 = vsel %vm63, %v180, 0
  %203 = vmatprep.subr.bf16.mxu0 0
  %204 = vmatpush1.bf16.msra.mxu0 %v196
  %205 = vmatprep.subr.bf16.mxu0 0
  %206 = vmatpush1.bf16.msra.mxu0 %v197
  %207 = vmatprep.subr.bf16.mxu0 0
  %208 = vmatpush1.bf16.msra.mxu0 0
  %209 = vmatprep.subr.bf16.mxu0 0
  %210 = vmatpush1.bf16.msra.mxu0 0
  %211 = vmatprep.subr.bf16.mxu0 0
  %212 = vmatpush1.bf16.msra.mxu0 0
  %213 = vmatprep.subr.bf16.mxu0 0
  %214 = vmatpush1.bf16.msra.mxu0 0
  %215 = vmatprep.subr.bf16.mxu0 0
  %216 = vmatpush1.bf16.msra.mxu0 0
  %217 = vmatprep.subr.bf16.mxu0 0
  %218 = vmatpush1.bf16.msra.mxu0 0
  %219 = vmatprep.subr.bf16.mxu0 0
  %220 = vmatpush1.bf16.msra.mxu0 0
  %221 = vmatprep.subr.bf16.mxu0 0
  %222 = vmatpush1.bf16.msra.mxu0 0
  %223 = vmatprep.subr.bf16.mxu0 0
  %224 = vmatpush1.bf16.msra.mxu0 0
  %225 = vmatprep.subr.bf16.mxu0 0
  %226 = vmatpush1.bf16.msra.mxu0 0
  %227 = vmatprep.subr.bf16.mxu0 0
  %228 = vmatpush1.bf16.msra.mxu0 0
  %229 = vmatprep.subr.bf16.mxu0 0
  %230 = vmatpush1.bf16.msra.mxu0 0
  %231 = vmatprep.subr.bf16.mxu0 0
  %232 = vmatpush1.bf16.msra.mxu0 0
  %233 = vmatprep.subr.bf16.mxu0 0
  %234 = vmatpush1.bf16.msra.mxu0 0
  %235 = vmatprep.mubr.bf16.mxu0 0
  %236 = vmatmul.mubr.bf16.gmra.mrb[0].mxu0 %v201
  %v237 = vpop.f32.mrb[0].mxu0
  %v238 = vadd.f32 %v186, %v237
  %v239 = vpop.f32.mrb[0].mxu0
  %v240 = vpop.f32.mrb[0].mxu0
  %v241 = vadd.f32 %v186, %v240
  %v242 = vpop.f32.mrb[0].mxu0
  %243 = vdwg.mxu0
  %244 = vst.msk [vmem:[%s10] sm:$0xff] %vm63, %v238
  %245 = vst.msk [vmem:[%s10 + $0x8] sm:$0xff] %vm63, %v241
  // Predicated region
  $region34: #{global_decoder_layer.6} parent=0 // pred_check
    _
  $region35: #{global_decoder_layer.6} parent=0 // pred_check_branch
    %247 = sbr.rel (0) target = $region37
  $region36: #{global_decoder_layer.6} parent=0 // pred_region
    _
  $region37: #{global_decoder_layer.6} parent=0 // pred_fallthru
    _
  // Predicated region
  $region38: #{global_decoder_layer.6} parent=0 // pred_check
    _
  $region39: #{global_decoder_layer.6} parent=0 // pred_check_branch
    %249 = sbr.rel (0) target = $region41
  $region40: #{global_decoder_layer.6} parent=0 // pred_region
    _
  $region41: #{global_decoder_layer.6} parent=0 // pred_fallthru
    _
  // Predicated region
  $region42: #{global_decoder_layer.6} parent=0 // pred_check
    _
  $region43: #{global_decoder_layer.6} parent=0 // pred_check_branch
    %251 = sbr.rel (0) target = $region45
  $region44: #{global_decoder_layer.6} parent=0 // pred_region
    _
  $region45: #{global_decoder_layer.6} parent=0 // pred_fallthru
    _
  // Predicated region
  $region46: #{global_decoder_layer.6} parent=0 // pred_check
    _
  $region47: #{global_decoder_layer.6} parent=0 // pred_check_branch
    %253 = sbr.rel (0) target = $region49
  $region48: #{global_decoder_layer.6} parent=0 // pred_region
    _
  $region49: #{global_decoder_layer.6} parent=0 // pred_fallthru
    _
  // Predicated region
  $region50: #{global_decoder_layer.6} parent=0 // pred_check
    _
  $region51: #{global_decoder_layer.6} parent=0 // pred_check_branch
    %255 = sbr.rel (0) target = $region53
  $region52: #{global_decoder_layer.6} parent=0 // pred_region
    _
  $region53: #{global_decoder_layer.6} parent=0 // pred_fallthru
    _
  // Predicated region
  $region54: #{global_decoder_layer.6} parent=0 // pred_check
    _
  $region55: #{global_decoder_layer.6} parent=0 // pred_check_branch
    %257 = sbr.rel (0) target = $region57
  $region56: #{global_decoder_layer.6} parent=0 // pred_region
    _
  $region57: #{global_decoder_layer.6} parent=0 // pred_fallthru
    _

// kernel: global_decoder_layer.7
$region0: #{global_decoder_layer.7}
  #allocation0 [shape = 'u32[]', space=smem, size = 0x4, offset = 0x4, fixed_abs, tag = 'smem constant byte address 0x4 - core index']
  #allocation1 [shape = 'u32[144,128]{1,0:T(1,128)}', space=vmem, size = 0x12000, scoped, tag = 'internal scratch']
  %s0 = inlined_call_operand.vmem [shape: f32[2,8,32], index: 0, kind: input, shape index: {}]
  %s1 = inlined_call_operand.vmem [shape: f32[2,8,32], index: 1, kind: input, shape index: {}]
  %s2 = inlined_call_operand.vmem [shape: f32[2,8,32], index: 2, kind: input, shape index: {}]
  %s3 = inlined_call_operand.vmem [shape: f32[2,8,32], index: 3, kind: input, shape index: {}]
  %s4 = inlined_call_operand.vmem [shape: bf16[32,32], index: 4, kind: input, shape index: {}]
  %s5 = inlined_call_operand.vmem [shape: f32[1,32], index: 5, kind: input, shape index: {}]
  %s6 = inlined_call_operand.vmem [shape: f32[1,32], index: 6, kind: input, shape index: {}]
  %s7 = inlined_call_operand.vmem [shape: f32[1,32], index: 7, kind: input, shape index: {}]
  %s8 = inlined_call_operand.vmem [shape: f32[2,8,32], index: 8, kind: output, shape index: {}]
  %s9 = sld [smem:[#allocation0]]
  $region65: #{global_decoder_layer.7} parent=0
    _
  %s11 = ssub.s32 1, %s9
  %s12 = scalar_select 0, %s11, %s9
  loop: start=0, step=1, limit=4
  $region2: #{global_decoder_layer.7} parent=0 // loop_pre_header
    _
  $region3: #{global_decoder_layer.7} parent=0 // loop_header
    %s14 = sphi 0, %s18
    %p15 = scmp.ge.s32.totalorder %s14, 4
    %s24 = sphi 0, %s26
    %s27 = sphi 0, %s24
    %s28 = sphi 0, %s27
    %s44 = sphi 0, %s28
    %s50 = sphi 0, %s52
    %s53 = sphi 0, %s50
    %s54 = sphi 0, %s53
    %s70 = sphi 0, %s54
    %s76 = sphi 0, %s78
    %s79 = sphi 0, %s76
    %s80 = sphi 0, %s79
    %s96 = sphi 0, %s80
    %s102 = sphi 0, %s104
    %s105 = sphi 0, %s102
    %s106 = sphi 0, %s105
    %s122 = sphi 0, %s106
    %s126 = sphi 0, %s126
    %s128 = sphi 0, %s126
    %s129 = sphi 0, %s128
    %s143 = sphi 0, %s129
    %s147 = sphi 0, %s147
    %s149 = sphi 0, %s147
    %s150 = sphi 0, %s149
    %s164 = sphi 0, %s150
    %s168 = sphi 0, %s168
    %s170 = sphi 0, %s168
    %s171 = sphi 0, %s170
    %s185 = sphi 0, %s171
    %s189 = sphi 0, %s189
    %s191 = sphi 0, %s189
    %s192 = sphi 0, %s191
    %s206 = sphi 0, %s192
    %s212 = sphi 0, %s214
    %s215 = sphi 0, %s212
    %s216 = sphi 0, %s215
    %s232 = sphi 0, %s216
  $region4: #{global_decoder_layer.7} parent=0 // loop_header_branch
    %17 = sbr.rel (%p15) target = $region8
  $region5: #{global_decoder_layer.7} parent=0 // loop_body
    %s19 = ssub.s32 %s14, 1
    %s20 = ssub.s32 %s14, 2
    %s21 = sadd.s32 %s14, 1
    %s22 = ssub.s32 %s14, %s21
    %p23 = scmp.eq.s32.totalorder %s22, 0
    %s25 = sadd.s32 %s24, 1
    %s26 = scalar_select %p23, %s24, %s25
    %p29 = pneg %p23
    %p30 = scmp.eq.s32.totalorder %s14, 1
    %p31 = por %p29, %p30
    %p32 = scmp.ne.s32.totalorder %s24, %s27
    %p33 = scmp.eq.s32.totalorder %s14, 0
    %p34 = por %p32, %p33
    %p35 = scmp.ne.s32.totalorder %s24, %s27
    %p36 = scmp.eq.s32.totalorder %s19, 1
    %p37 = por %p35, %p36
    %p38 = scmp.ne.s32.totalorder %s27, %s28
    %p39 = scmp.eq.s32.totalorder %s19, 0
    %p40 = por %p38, %p39
    %p41 = scmp.ne.s32.totalorder %s27, %s28
    %p42 = scmp.eq.s32.totalorder %s20, 1
    %p43 = por %p41, %p42
    %p45 = scmp.ne.s32.totalorder %s28, %s44
    %p46 = scmp.eq.s32.totalorder %s20, 0
    %p47 = por %p45, %p46
    %s48 = ssub.s32 %s14, %s21
    %p49 = scmp.eq.s32.totalorder %s48, 0
    %s51 = sadd.s32 %s50, 1
    %s52 = scalar_select %p49, %s50, %s51
    %p55 = pneg %p49
    %p56 = scmp.eq.s32.totalorder %s14, 1
    %p57 = por %p55, %p56
    %p58 = scmp.ne.s32.totalorder %s50, %s53
    %p59 = scmp.eq.s32.totalorder %s14, 0
    %p60 = por %p58, %p59
    %p61 = scmp.ne.s32.totalorder %s50, %s53
    %p62 = scmp.eq.s32.totalorder %s19, 1
    %p63 = por %p61, %p62
    %p64 = scmp.ne.s32.totalorder %s53, %s54
    %p65 = scmp.eq.s32.totalorder %s19, 0
    %p66 = por %p64, %p65
    %p67 = scmp.ne.s32.totalorder %s53, %s54
    %p68 = scmp.eq.s32.totalorder %s20, 1
    %p69 = por %p67, %p68
    %p71 = scmp.ne.s32.totalorder %s54, %s70
    %p72 = scmp.eq.s32.totalorder %s20, 0
    %p73 = por %p71, %p72
    %s74 = ssub.s32 %s14, %s21
    %p75 = scmp.eq.s32.totalorder %s74, 0
    %s77 = sadd.s32 %s76, 1
    %s78 = scalar_select %p75, %s76, %s77
    %p81 = pneg %p75
    %p82 = scmp.eq.s32.totalorder %s14, 1
    %p83 = por %p81, %p82
    %p84 = scmp.ne.s32.totalorder %s76, %s79
    %p85 = scmp.eq.s32.totalorder %s14, 0
    %p86 = por %p84, %p85
    %p87 = scmp.ne.s32.totalorder %s76, %s79
    %p88 = scmp.eq.s32.totalorder %s19, 1
    %p89 = por %p87, %p88
    %p90 = scmp.ne.s32.totalorder %s79, %s80
    %p91 = scmp.eq.s32.totalorder %s19, 0
    %p92 = por %p90, %p91
    %p93 = scmp.ne.s32.totalorder %s79, %s80
    %p94 = scmp.eq.s32.totalorder %s20, 1
    %p95 = por %p93, %p94
    %p97 = scmp.ne.s32.totalorder %s80, %s96
    %p98 = scmp.eq.s32.totalorder %s20, 0
    %p99 = por %p97, %p98
    %s100 = ssub.s32 %s14, %s21
    %p101 = scmp.eq.s32.totalorder %s100, 0
    %s103 = sadd.s32 %s102, 1
    %s104 = scalar_select %p101, %s102, %s103
    %p107 = pneg %p101
    %p108 = scmp.eq.s32.totalorder %s14, 1
    %p109 = por %p107, %p108
    %p110 = scmp.ne.s32.totalorder %s102, %s105
    %p111 = scmp.eq.s32.totalorder %s14, 0
    %p112 = por %p110, %p111
    %p113 = scmp.ne.s32.totalorder %s102, %s105
    %p114 = scmp.eq.s32.totalorder %s19, 1
    %p115 = por %p113, %p114
    %p116 = scmp.ne.s32.totalorder %s105, %s106
    %p117 = scmp.eq.s32.totalorder %s19, 0
    %p118 = por %p116, %p117
    %p119 = scmp.ne.s32.totalorder %s105, %s106
    %p120 = scmp.eq.s32.totalorder %s20, 1
    %p121 = por %p119, %p120
    %p123 = scmp.ne.s32.totalorder %s106, %s122
    %p124 = scmp.eq.s32.totalorder %s20, 0
    %p125 = por %p123, %p124
    %s127 = sadd.s32 %s126, 1
    %p130 = scmp.eq.s32.totalorder %s14, 1
    %p131 = scmp.ne.s32.totalorder %s126, %s128
    %p132 = scmp.eq.s32.totalorder %s14, 0
    %p133 = por %p131, %p132
    %p134 = scmp.ne.s32.totalorder %s126, %s128
    %p135 = scmp.eq.s32.totalorder %s19, 1
    %p136 = por %p134, %p135
    %p137 = scmp.ne.s32.totalorder %s128, %s129
    %p138 = scmp.eq.s32.totalorder %s19, 0
    %p139 = por %p137, %p138
    %p140 = scmp.ne.s32.totalorder %s128, %s129
    %p141 = scmp.eq.s32.totalorder %s20, 1
    %p142 = por %p140, %p141
    %p144 = scmp.ne.s32.totalorder %s129, %s143
    %p145 = scmp.eq.s32.totalorder %s20, 0
    %p146 = por %p144, %p145
    %s148 = sadd.s32 %s147, 1
    %p151 = scmp.eq.s32.totalorder %s14, 1
    %p152 = scmp.ne.s32.totalorder %s147, %s149
    %p153 = scmp.eq.s32.totalorder %s14, 0
    %p154 = por %p152, %p153
    %p155 = scmp.ne.s32.totalorder %s147, %s149
    %p156 = scmp.eq.s32.totalorder %s19, 1
    %p157 = por %p155, %p156
    %p158 = scmp.ne.s32.totalorder %s149, %s150
    %p159 = scmp.eq.s32.totalorder %s19, 0
    %p160 = por %p158, %p159
    %p161 = scmp.ne.s32.totalorder %s149, %s150
    %p162 = scmp.eq.s32.totalorder %s20, 1
    %p163 = por %p161, %p162
    %p165 = scmp.ne.s32.totalorder %s150, %s164
    %p166 = scmp.eq.s32.totalorder %s20, 0
    %p167 = por %p165, %p166
    %s169 = sadd.s32 %s168, 1
    %p172 = scmp.eq.s32.totalorder %s14, 1
    %p173 = scmp.ne.s32.totalorder %s168, %s170
    %p174 = scmp.eq.s32.totalorder %s14, 0
    %p175 = por %p173, %p174
    %p176 = scmp.ne.s32.totalorder %s168, %s170
    %p177 = scmp.eq.s32.totalorder %s19, 1
    %p178 = por %p176, %p177
    %p179 = scmp.ne.s32.totalorder %s170, %s171
    %p180 = scmp.eq.s32.totalorder %s19, 0
    %p181 = por %p179, %p180
    %p182 = scmp.ne.s32.totalorder %s170, %s171
    %p183 = scmp.eq.s32.totalorder %s20, 1
    %p184 = por %p182, %p183
    %p186 = scmp.ne.s32.totalorder %s171, %s185
    %p187 = scmp.eq.s32.totalorder %s20, 0
    %p188 = por %p186, %p187
    %s190 = sadd.s32 %s189, 1
    %p193 = scmp.eq.s32.totalorder %s14, 1
    %p194 = scmp.ne.s32.totalorder %s189, %s191
    %p195 = scmp.eq.s32.totalorder %s14, 0
    %p196 = por %p194, %p195
    %p197 = scmp.ne.s32.totalorder %s189, %s191
    %p198 = scmp.eq.s32.totalorder %s19, 1
    %p199 = por %p197, %p198
    %p200 = scmp.ne.s32.totalorder %s191, %s192
    %p201 = scmp.eq.s32.totalorder %s19, 0
    %p202 = por %p200, %p201
    %p203 = scmp.ne.s32.totalorder %s191, %s192
    %p204 = scmp.eq.s32.totalorder %s20, 1
    %p205 = por %p203, %p204
    %p207 = scmp.ne.s32.totalorder %s192, %s206
    %p208 = scmp.eq.s32.totalorder %s20, 0
    %p209 = por %p207, %p208
    %s210 = ssub.s32 %s14, %s21
    %p211 = scmp.eq.s32.totalorder %s210, 0
    %s213 = sadd.s32 %s212, 1
    %s214 = scalar_select %p211, %s212, %s213
    %p217 = pneg %p211
    %p218 = scmp.eq.s32.totalorder %s14, 1
    %p219 = por %p217, %p218
    %p220 = scmp.ne.s32.totalorder %s212, %s215
    %p221 = scmp.eq.s32.totalorder %s14, 0
    %p222 = por %p220, %p221
    %p223 = scmp.ne.s32.totalorder %s212, %s215
    %p224 = scmp.eq.s32.totalorder %s19, 1
    %p225 = por %p223, %p224
    %p226 = scmp.ne.s32.totalorder %s215, %s216
    %p227 = scmp.eq.s32.totalorder %s19, 0
    %p228 = por %p226, %p227
    %p229 = scmp.ne.s32.totalorder %s215, %s216
    %p230 = scmp.eq.s32.totalorder %s20, 1
    %p231 = por %p229, %p230
    %p233 = scmp.ne.s32.totalorder %s216, %s232
    %p234 = scmp.eq.s32.totalorder %s20, 0
    %p235 = por %p233, %p234
    %p236 = scmp.le.s32.totalorder 1, %s14
    %p237 = scmp.lt.s32.totalorder %s14, 3
    %p238 = pnand %p236, %p237
    %p239 = pneg %p238
    // Predicated region
    $region9: #{global_decoder_layer.7} parent=5 // pred_check
      _
    $region10: #{global_decoder_layer.7} parent=5 // pred_check_branch
      %241 = sbr.rel (%p238) target = $region12
    $region11: #{global_decoder_layer.7} parent=5 // pred_region
      %s242 = ssub.s32 %s14, 1
      // Predicated region
      $region13: #{global_decoder_layer.7} parent=11 // pred_check
        %p243 = pneg %p139
      $region14: #{global_decoder_layer.7} parent=11 // pred_check_branch
        %245 = sbr.rel (%p243) target = $region16
      $region15: #{global_decoder_layer.7} parent=11 // pred_region
        _
      $region16: #{global_decoder_layer.7} parent=11 // pred_fallthru
        _
      // Predicated region
      $region17: #{global_decoder_layer.7} parent=11 // pred_check
        %p246 = pneg %p160
      $region18: #{global_decoder_layer.7} parent=11 // pred_check_branch
        %248 = sbr.rel (%p246) target = $region20
      $region19: #{global_decoder_layer.7} parent=11 // pred_region
        _
      $region20: #{global_decoder_layer.7} parent=11 // pred_fallthru
        _
      // Predicated region
      $region21: #{global_decoder_layer.7} parent=11 // pred_check
        %p249 = pneg %p181
      $region22: #{global_decoder_layer.7} parent=11 // pred_check_branch
        %251 = sbr.rel (%p249) target = $region24
      $region23: #{global_decoder_layer.7} parent=11 // pred_region
        _
      $region24: #{global_decoder_layer.7} parent=11 // pred_fallthru
        _
      // Predicated region
      $region25: #{global_decoder_layer.7} parent=11 // pred_check
        %p252 = pneg %p202
      $region26: #{global_decoder_layer.7} parent=11 // pred_check_branch
        %254 = sbr.rel (%p252) target = $region28
      $region27: #{global_decoder_layer.7} parent=11 // pred_region
        _
      $region28: #{global_decoder_layer.7} parent=11 // pred_fallthru
        _
    $region12: #{global_decoder_layer.7} parent=5 // pred_fallthru
      _
    %p255 = scmp.lt.s32.totalorder %s14, 2
    // Predicated region
    $region29: #{global_decoder_layer.7} parent=5 // pred_check
      %p256 = pneg %p255
    $region30: #{global_decoder_layer.7} parent=5 // pred_check_branch
      %258 = sbr.rel (%p256) target = $region32
    $region31: #{global_decoder_layer.7} parent=5 // pred_region
      // Predicated region
      $region33: #{global_decoder_layer.7} parent=31 // pred_check
        %p259 = pneg %p34
      $region34: #{global_decoder_layer.7} parent=31 // pred_check_branch
        %261 = sbr.rel (%p259) target = $region36
      $region35: #{global_decoder_layer.7} parent=31 // pred_region
        %p262 = scmp.lt.s32.totalorder %s14, 1
        %s263 = scalar_select %p262, %s14, 1
        %s264 = smul.addr %s263, 8
        %s265 = scalar_lea.vmem %s0, %s264
      $region36: #{global_decoder_layer.7} parent=31 // pred_fallthru
        _
      // Predicated region
      $region37: #{global_decoder_layer.7} parent=31 // pred_check
        %p266 = pneg %p60
      $region38: #{global_decoder_layer.7} parent=31 // pred_check_branch
        %268 = sbr.rel (%p266) target = $region40
      $region39: #{global_decoder_layer.7} parent=31 // pred_region
        %p269 = scmp.lt.s32.totalorder %s14, 1
        %s270 = scalar_select %p269, %s14, 1
        %s271 = smul.addr %s270, 8
        %s272 = scalar_lea.vmem %s1, %s271
      $region40: #{global_decoder_layer.7} parent=31 // pred_fallthru
        _
      // Predicated region
      $region41: #{global_decoder_layer.7} parent=31 // pred_check
        %p273 = pneg %p86
      $region42: #{global_decoder_layer.7} parent=31 // pred_check_branch
        %275 = sbr.rel (%p273) target = $region44
      $region43: #{global_decoder_layer.7} parent=31 // pred_region
        %p276 = scmp.lt.s32.totalorder %s14, 1
        %s277 = scalar_select %p276, %s14, 1
        %s278 = smul.addr %s277, 8
        %s279 = scalar_lea.vmem %s2, %s278
      $region44: #{global_decoder_layer.7} parent=31 // pred_fallthru
        _
      // Predicated region
      $region45: #{global_decoder_layer.7} parent=31 // pred_check
        %p280 = pneg %p112
      $region46: #{global_decoder_layer.7} parent=31 // pred_check_branch
        %282 = sbr.rel (%p280) target = $region48
      $region47: #{global_decoder_layer.7} parent=31 // pred_region
        %p283 = scmp.lt.s32.totalorder %s14, 1
        %s284 = scalar_select %p283, %s14, 1
        %s285 = smul.addr %s284, 8
        %s286 = scalar_lea.vmem %s3, %s285
      $region48: #{global_decoder_layer.7} parent=31 // pred_fallthru
        _
    $region32: #{global_decoder_layer.7} parent=5 // pred_fallthru
      _
    %p287 = scmp.le.s32.totalorder 1, %s14
    %p288 = scmp.lt.s32.totalorder %s14, 3
    %p289 = pnand %p287, %p288
    %p290 = pneg %p289
    // Predicated region
    $region49: #{global_decoder_layer.7} parent=5 // pred_check
      _
    $region50: #{global_decoder_layer.7} parent=5 // pred_check_branch
      %292 = sbr.rel (%p289) target = $region52
    $region51: #{global_decoder_layer.7} parent=5 // pred_region
      %s293 = ssub.s32 %s14, 1
      %p294 = scmp.lt.s32.totalorder %s19, 1
      %s295 = scalar_select %p294, %s19, 1
      %s296 = smul.addr %s295, 8
      %s297 = scalar_lea.vmem %s0, %s296
      %p298 = pneg %p40
      %p299 = pneg %p37
      %p300 = scmp.lt.s32.totalorder %s19, 1
      %s301 = scalar_select %p300, %s19, 1
      %s302 = smul.addr %s301, 8
      %s303 = scalar_lea.vmem %s1, %s302
      %p304 = pneg %p66
      %p305 = pneg %p63
      %p306 = scmp.lt.s32.totalorder %s19, 1
      %s307 = scalar_select %p306, %s19, 1
      %s308 = smul.addr %s307, 8
      %s309 = scalar_lea.vmem %s2, %s308
      %p310 = pneg %p92
      %p311 = pneg %p89
      %p312 = scmp.lt.s32.totalorder %s19, 1
      %s313 = scalar_select %p312, %s19, 1
      %s314 = smul.addr %s313, 8
      %s315 = scalar_lea.vmem %s3, %s314
      %p316 = pneg %p118
      %p317 = pneg %p115
      %p318 = pneg %p139
      %p319 = pneg %p136
      %p320 = pneg %p160
      %p321 = pneg %p157
      %p322 = pneg %p181
      %p323 = pneg %p178
      %p324 = pneg %p202
      %p325 = pneg %p199
      %p326 = pneg %p228
      %p327 = pneg %p225
      %p328 = scmp.lt.s32.totalorder %s19, 1
      %s329 = scalar_select %p328, %s19, 1
      %s330 = smul.addr %s329, 8
      %s331 = scalar_lea.vmem %s8, %s330
      %p332 = scmp.lt.s32.totalorder %s19, 1
      %s333 = scalar_select %p332, %s19, 1
      %s334 = smul.addr %s333, 8
      %s335 = scalar_lea.vmem %s0, %s334
      %p336 = scmp.lt.s32.totalorder %s19, 1
      %s337 = scalar_select %p336, %s19, 1
      %s338 = smul.addr %s337, 8
      %s339 = scalar_lea.vmem %s1, %s338
      %p340 = scmp.lt.s32.totalorder %s19, 1
      %s341 = scalar_select %p340, %s19, 1
      %s342 = smul.addr %s341, 8
      %s343 = scalar_lea.vmem %s2, %s342
      %p344 = scmp.lt.s32.totalorder %s19, 1
      %s345 = scalar_select %p344, %s19, 1
      %s346 = smul.addr %s345, 8
      %s347 = scalar_lea.vmem %s3, %s346
      %p348 = scmp.lt.s32.totalorder %s19, 1
      %s349 = scalar_select %p348, %s19, 1
      %s350 = smul.addr %s349, 8
      %s351 = scalar_lea.vmem %s8, %s350
      %v353 = vld [vmem:[%s347] sm:$0xff]
      %v354 = vld [vmem:[%s5] sm:$0x1]
      %v356 = vlaneseq
      %v357 = vshrl.u32 %v356, 7
      %v358 = vsub.s32 0, %v357
      %v359 = vrot.slane %v354, %v358
      %v361 = vadd.f32 %v353, %v359
      %v362 = vld [vmem:[%s335] sm:$0xff]
      %v363 = vld [vmem:[%s339] sm:$0xff]
      %v364 = vld [vmem:[%s343] sm:$0xff]
      %v365 = vld [vmem:[%s4] sm:$0xf]
      %v366 = vld [vmem:[%s4 + $0x4] sm:$0xf]
      %v367 = vld [vmem:[%s4 + $0x8] sm:$0xf]
      %v368 = vld [vmem:[%s4 + $0xc] sm:$0xf]
      %v369 = vpack.c.bf16 %v362, %v362
      %v370 = vpack.c.bf16 %v363, %v363
      %vm371 = vcmask 64512
      %v373 = vsel %vm371, %v369, 0
      %v376 = vsel %vm371, %v370, 0
      %378 = vmatprep.subr.bf16.mxu0 0
      %379 = vmatpush1.bf16.xpose.msra.mxu0 %v376
      %380 = vmatprep.subr.bf16.mxu0 0
      %381 = vmatpush1.bf16.xpose.msra.mxu0 0
      %382 = vmatprep.subr.bf16.mxu0 0
      %383 = vmatpush1.bf16.xpose.msra.mxu0 0
      %384 = vmatprep.subr.bf16.mxu0 0
      %385 = vmatpush1.bf16.xpose.msra.mxu0 0
      %386 = vmatprep.subr.bf16.mxu0 0
      %387 = vmatpush1.bf16.xpose.msra.mxu0 0
      %388 = vmatprep.subr.bf16.mxu0 0
      %389 = vmatpush1.bf16.xpose.msra.mxu0 0
      %390 = vmatprep.subr.bf16.mxu0 0
      %391 = vmatpush1.bf16.xpose.msra.mxu0 0
      %392 = vmatprep.subr.bf16.mxu0 0
      %393 = vmatpush1.bf16.xpose.msra.mxu0 0
      %394 = vmatprep.subr.bf16.mxu0 0
      %395 = vmatpush1.bf16.xpose.msra.mxu0 0
      %396 = vmatprep.subr.bf16.mxu0 0
      %397 = vmatpush1.bf16.xpose.msra.mxu0 0
      %398 = vmatprep.subr.bf16.mxu0 0
      %399 = vmatpush1.bf16.xpose.msra.mxu0 0
      %400 = vmatprep.subr.bf16.mxu0 0
      %401 = vmatpush1.bf16.xpose.msra.mxu0 0
      %402 = vmatprep.subr.bf16.mxu0 0
      %403 = vmatpush1.bf16.xpose.msra.mxu0 0
      %404 = vmatprep.subr.bf16.mxu0 0
      %405 = vmatpush1.bf16.xpose.msra.mxu0 0
      %406 = vmatprep.subr.bf16.mxu0 0
      %407 = vmatpush1.bf16.xpose.msra.mxu0 0
      %408 = vmatprep.subr.bf16.mxu0 0
      %409 = vmatpush1.bf16.xpose.msra.mxu0 0
      %410 = vmatprep.mubr.bf16.mxu0 0
      %411 = vmatmul.mubr.bf16.gmra.mrb[0].mxu0 %v373
      %v412 = vpop.f32.mrb[0].mxu0
      %v413 = vadd.f32 0.0, %v412
      %v414 = vpop.f32.mrb[0].mxu0
      %v415 = vpop.f32.mrb[0].mxu0
      %v416 = vpop.f32.mrb[0].mxu0
      %417 = vdwg.mxu0
      %v418 = vsel %vm371, %v413, -inf
      %419 = vmax.xlane.f32.xlu0 %v418
      %v420 = vpop.xlane.xlu0 %419
      %v421 = vsub.f32 %v413, %v420
      %v422 = vmul.f32 %v421, 1.442695
      %v423 = vpow.pop %v422
      %v424 = vsel %vm371, %v423, 0.0
      %425 = vadd.xlane.f32.xlu0 %v424
      %v426 = vpop.xlane.xlu0 %425
      %v427 = vrcp.pop %v426
      %v428 = vmul.f32 %v423, %v427
      %v429 = vpack.c.bf16 %v428, %v428
      %v430 = vpack.c.bf16 %v364, %v364
      %v432 = vsel %vm371, %v429, 0
      %vm434 = vcmask 1043456
      %v436 = vsel %vm434, %v430, 0
      %438 = vmatprep.subr.bf16.mxu0 0
      %439 = vmatpush1.bf16.msra.mxu0 %v436
      %440 = vmatprep.subr.bf16.mxu0 0
      %441 = vmatpush1.bf16.msra.mxu0 0
      %442 = vmatprep.subr.bf16.mxu0 0
      %443 = vmatpush1.bf16.msra.mxu0 0
      %444 = vmatprep.subr.bf16.mxu0 0
      %445 = vmatpush1.bf16.msra.mxu0 0
      %446 = vmatprep.subr.bf16.mxu0 0
      %447 = vmatpush1.bf16.msra.mxu0 0
      %448 = vmatprep.subr.bf16.mxu0 0
      %449 = vmatpush1.bf16.msra.mxu0 0
      %450 = vmatprep.subr.bf16.mxu0 0
      %451 = vmatpush1.bf16.msra.mxu0 0
      %452 = vmatprep.subr.bf16.mxu0 0
      %453 = vmatpush1.bf16.msra.mxu0 0
      %454 = vmatprep.subr.bf16.mxu0 0
      %455 = vmatpush1.bf16.msra.mxu0 0
      %456 = vmatprep.subr.bf16.mxu0 0
      %457 = vmatpush1.bf16.msra.mxu0 0
      %458 = vmatprep.subr.bf16.mxu0 0
      %459 = vmatpush1.bf16.msra.mxu0 0
      %460 = vmatprep.subr.bf16.mxu0 0
      %461 = vmatpush1.bf16.msra.mxu0 0
      %462 = vmatprep.subr.bf16.mxu0 0
      %463 = vmatpush1.bf16.msra.mxu0 0
      %464 = vmatprep.subr.bf16.mxu0 0
      %465 = vmatpush1.bf16.msra.mxu0 0
      %466 = vmatprep.subr.bf16.mxu0 0
      %467 = vmatpush1.bf16.msra.mxu0 0
      %468 = vmatprep.subr.bf16.mxu0 0
      %469 = vmatpush1.bf16.msra.mxu0 0
      %470 = vmatprep.mubr.bf16.mxu0 0
      %471 = vmatmul.mubr.bf16.gmra.mrb[0].mxu0 %v432
      %v472 = vpop.f32.mrb[0].mxu0
      %v473 = vadd.f32 0.0, %v472
      %v474 = vpop.f32.mrb[0].mxu0
      %v475 = vpop.f32.mrb[0].mxu0
      %v476 = vpop.f32.mrb[0].mxu0
      %477 = vdwg.mxu0
      %v478 = vpack.c.bf16 %v473, %v473
      %v480 = vsel %vm371, %v478, 0
      %v483 = vsel %vm434, %v365, 0
      %485 = vmatprep.subr.bf16.mxu0 0
      %486 = vmatpush1.bf16.msra.mxu0 %v483
      %487 = vmatprep.subr.bf16.mxu0 0
      %488 = vmatpush1.bf16.msra.mxu0 0
      %489 = vmatprep.subr.bf16.mxu0 0
      %490 = vmatpush1.bf16.msra.mxu0 0
      %491 = vmatprep.subr.bf16.mxu0 0
      %492 = vmatpush1.bf16.msra.mxu0 0
      %493 = vmatprep.subr.bf16.mxu0 0
      %494 = vmatpush1.bf16.msra.mxu0 0
      %495 = vmatprep.subr.bf16.mxu0 0
      %496 = vmatpush1.bf16.msra.mxu0 0
      %497 = vmatprep.subr.bf16.mxu0 0
      %498 = vmatpush1.bf16.msra.mxu0 0
      %499 = vmatprep.subr.bf16.mxu0 0
      %500 = vmatpush1.bf16.msra.mxu0 0
      %501 = vmatprep.subr.bf16.mxu0 0
      %502 = vmatpush1.bf16.msra.mxu0 0
      %503 = vmatprep.subr.bf16.mxu0 0
      %504 = vmatpush1.bf16.msra.mxu0 0
      %505 = vmatprep.subr.bf16.mxu0 0
      %506 = vmatpush1.bf16.msra.mxu0 0
      %507 = vmatprep.subr.bf16.mxu0 0
      %508 = vmatpush1.bf16.msra.mxu0 0
      %509 = vmatprep.subr.bf16.mxu0 0
      %510 = vmatpush1.bf16.msra.mxu0 0
      %511 = vmatprep.subr.bf16.mxu0 0
      %512 = vmatpush1.bf16.msra.mxu0 0
      %513 = vmatprep.subr.bf16.mxu0 0
      %514 = vmatpush1.bf16.msra.mxu0 0
      %515 = vmatprep.subr.bf16.mxu0 0
      %516 = vmatpush1.bf16.msra.mxu0 0
      %517 = vmatprep.mubr.bf16.mxu0 0
      %518 = vmatmul.mubr.bf16.gmra.mrb[0].mxu0 %v480
      %v519 = vpop.f32.mrb[0].mxu0
      %v520 = vadd.f32 0.0, %v519
      %v521 = vpop.f32.mrb[0].mxu0
      %v522 = vpop.f32.mrb[0].mxu0
      %v523 = vpop.f32.mrb[0].mxu0
      %524 = vdwg.mxu0
      %v525 = vadd.f32 %v361, %v520
      %527 = vrot.lane.b32.xlu0 %v369, 120
      %v528 = vpop.permute.xlu0 %527
      %530 = vrot.lane.b32.xlu0 %v370, 120
      %v531 = vpop.permute.xlu0 %530
      %v533 = vsel %vm371, %v528, 0
      %v536 = vsel %vm371, %v531, 0
      %538 = vmatprep.subr.bf16.mxu0 0
      %539 = vmatpush1.bf16.xpose.msra.mxu0 %v536
      %540 = vmatprep.subr.bf16.mxu0 0
      %541 = vmatpush1.bf16.xpose.msra.mxu0 0
      %542 = vmatprep.subr.bf16.mxu0 0
      %543 = vmatpush1.bf16.xpose.msra.mxu0 0
      %544 = vmatprep.subr.bf16.mxu0 0
      %545 = vmatpush1.bf16.xpose.msra.mxu0 0
      %546 = vmatprep.subr.bf16.mxu0 0
      %547 = vmatpush1.bf16.xpose.msra.mxu0 0
      %548 = vmatprep.subr.bf16.mxu0 0
      %549 = vmatpush1.bf16.xpose.msra.mxu0 0
      %550 = vmatprep.subr.bf16.mxu0 0
      %551 = vmatpush1.bf16.xpose.msra.mxu0 0
      %552 = vmatprep.subr.bf16.mxu0 0
      %553 = vmatpush1.bf16.xpose.msra.mxu0 0
      %554 = vmatprep.subr.bf16.mxu0 0
      %555 = vmatpush1.bf16.xpose.msra.mxu0 0
      %556 = vmatprep.subr.bf16.mxu0 0
      %557 = vmatpush1.bf16.xpose.msra.mxu0 0
      %558 = vmatprep.subr.bf16.mxu0 0
      %559 = vmatpush1.bf16.xpose.msra.mxu0 0
      %560 = vmatprep.subr.bf16.mxu0 0
      %561 = vmatpush1.bf16.xpose.msra.mxu0 0
      %562 = vmatprep.subr.bf16.mxu0 0
      %563 = vmatpush1.bf16.xpose.msra.mxu0 0
      %564 = vmatprep.subr.bf16.mxu0 0
      %565 = vmatpush1.bf16.xpose.msra.mxu0 0
      %566 = vmatprep.subr.bf16.mxu0 0
      %567 = vmatpush1.bf16.xpose.msra.mxu0 0
      %568 = vmatprep.subr.bf16.mxu0 0
      %569 = vmatpush1.bf16.xpose.msra.mxu0 0
      %570 = vmatprep.mubr.bf16.mxu0 0
      %571 = vmatmul.mubr.bf16.gmra.mrb[0].mxu0 %v533
      %v572 = vpop.f32.mrb[0].mxu0
      %v573 = vadd.f32 0.0, %v572
      %v574 = vpop.f32.mrb[0].mxu0
      %v575 = vpop.f32.mrb[0].mxu0
      %v576 = vpop.f32.mrb[0].mxu0
      %577 = vdwg.mxu0
      %v578 = vsel %vm371, %v573, -inf
      %579 = vmax.xlane.f32.xlu0 %v578
      %v580 = vpop.xlane.xlu0 %579
      %v581 = vsub.f32 %v573, %v580
      %v582 = vmul.f32 %v581, 1.442695
      %v583 = vpow.pop %v582
      %v584 = vsel %vm371, %v583, 0.0
      %585 = vadd.xlane.f32.xlu0 %v584
      %v586 = vpop.xlane.xlu0 %585
      %v587 = vrcp.pop %v586
      %v588 = vmul.f32 %v583, %v587
      %v589 = vpack.c.bf16 %v588, %v588
      %591 = vrot.lane.b32.xlu0 %v430, 120
      %v592 = vpop.permute.xlu0 %591
      %v594 = vsel %vm371, %v589, 0
      %v597 = vsel %vm434, %v592, 0
      %599 = vmatprep.subr.bf16.mxu0 0
      %600 = vmatpush1.bf16.msra.mxu0 %v597
      %601 = vmatprep.subr.bf16.mxu0 0
      %602 = vmatpush1.bf16.msra.mxu0 0
      %603 = vmatprep.subr.bf16.mxu0 0
      %604 = vmatpush1.bf16.msra.mxu0 0
      %605 = vmatprep.subr.bf16.mxu0 0
      %606 = vmatpush1.bf16.msra.mxu0 0
      %607 = vmatprep.subr.bf16.mxu0 0
      %608 = vmatpush1.bf16.msra.mxu0 0
      %609 = vmatprep.subr.bf16.mxu0 0
      %610 = vmatpush1.bf16.msra.mxu0 0
      %611 = vmatprep.subr.bf16.mxu0 0
      %612 = vmatpush1.bf16.msra.mxu0 0
      %613 = vmatprep.subr.bf16.mxu0 0
      %614 = vmatpush1.bf16.msra.mxu0 0
      %615 = vmatprep.subr.bf16.mxu0 0
      %616 = vmatpush1.bf16.msra.mxu0 0
      %617 = vmatprep.subr.bf16.mxu0 0
      %618 = vmatpush1.bf16.msra.mxu0 0
      %619 = vmatprep.subr.bf16.mxu0 0
      %620 = vmatpush1.bf16.msra.mxu0 0
      %621 = vmatprep.subr.bf16.mxu0 0
      %622 = vmatpush1.bf16.msra.mxu0 0
      %623 = vmatprep.subr.bf16.mxu0 0
      %624 = vmatpush1.bf16.msra.mxu0 0
      %625 = vmatprep.subr.bf16.mxu0 0
      %626 = vmatpush1.bf16.msra.mxu0 0
      %627 = vmatprep.subr.bf16.mxu0 0
      %628 = vmatpush1.bf16.msra.mxu0 0
      %629 = vmatprep.subr.bf16.mxu0 0
      %630 = vmatpush1.bf16.msra.mxu0 0
      %631 = vmatprep.mubr.bf16.mxu0 0
      %632 = vmatmul.mubr.bf16.gmra.mrb[0].mxu0 %v594
      %v633 = vpop.f32.mrb[0].mxu0
      %v634 = vadd.f32 0.0, %v633
      %v635 = vpop.f32.mrb[0].mxu0
      %v636 = vpop.f32.mrb[0].mxu0
      %v637 = vpop.f32.mrb[0].mxu0
      %638 = vdwg.mxu0
      %v639 = vpack.c.bf16 %v634, %v634
      %v641 = vsel %vm371, %v639, 0
      %v644 = vsel %vm434, %v366, 0
      %646 = vmatprep.subr.bf16.mxu0 0
      %647 = vmatpush1.bf16.msra.mxu0 %v644
      %648 = vmatprep.subr.bf16.mxu0 0
      %649 = vmatpush1.bf16.msra.mxu0 0
      %650 = vmatprep.subr.bf16.mxu0 0
      %651 = vmatpush1.bf16.msra.mxu0 0
      %652 = vmatprep.subr.bf16.mxu0 0
      %653 = vmatpush1.bf16.msra.mxu0 0
      %654 = vmatprep.subr.bf16.mxu0 0
      %655 = vmatpush1.bf16.msra.mxu0 0
      %656 = vmatprep.subr.bf16.mxu0 0
      %657 = vmatpush1.bf16.msra.mxu0 0
      %658 = vmatprep.subr.bf16.mxu0 0
      %659 = vmatpush1.bf16.msra.mxu0 0
      %660 = vmatprep.subr.bf16.mxu0 0
      %661 = vmatpush1.bf16.msra.mxu0 0
      %662 = vmatprep.subr.bf16.mxu0 0
      %663 = vmatpush1.bf16.msra.mxu0 0
      %664 = vmatprep.subr.bf16.mxu0 0
      %665 = vmatpush1.bf16.msra.mxu0 0
      %666 = vmatprep.subr.bf16.mxu0 0
      %667 = vmatpush1.bf16.msra.mxu0 0
      %668 = vmatprep.subr.bf16.mxu0 0
      %669 = vmatpush1.bf16.msra.mxu0 0
      %670 = vmatprep.subr.bf16.mxu0 0
      %671 = vmatpush1.bf16.msra.mxu0 0
      %672 = vmatprep.subr.bf16.mxu0 0
      %673 = vmatpush1.bf16.msra.mxu0 0
      %674 = vmatprep.subr.bf16.mxu0 0
      %675 = vmatpush1.bf16.msra.mxu0 0
      %676 = vmatprep.subr.bf16.mxu0 0
      %677 = vmatpush1.bf16.msra.mxu0 0
      %678 = vmatprep.mubr.bf16.mxu0 0
      %679 = vmatmul.mubr.bf16.gmra.mrb[0].mxu0 %v641
      %v680 = vpop.f32.mrb[0].mxu0
      %v681 = vadd.f32 0.0, %v680
      %v682 = vpop.f32.mrb[0].mxu0
      %v683 = vpop.f32.mrb[0].mxu0
      %v684 = vpop.f32.mrb[0].mxu0
      %685 = vdwg.mxu0
      %v686 = vadd.f32 %v525, %v681
      %687 = vrot.lane.b32.xlu0 %v369, 112
      %v688 = vpop.permute.xlu0 %687
      %689 = vrot.lane.b32.xlu0 %v370, 112
      %v690 = vpop.permute.xlu0 %689
      %v692 = vsel %vm371, %v688, 0
      %v695 = vsel %vm371, %v690, 0
      %697 = vmatprep.subr.bf16.mxu0 0
      %698 = vmatpush1.bf16.xpose.msra.mxu0 %v695
      %699 = vmatprep.subr.bf16.mxu0 0
      %700 = vmatpush1.bf16.xpose.msra.mxu0 0
      %701 = vmatprep.subr.bf16.mxu0 0
      %702 = vmatpush1.bf16.xpose.msra.mxu0 0
      %703 = vmatprep.subr.bf16.mxu0 0
      %704 = vmatpush1.bf16.xpose.msra.mxu0 0
      %705 = vmatprep.subr.bf16.mxu0 0
      %706 = vmatpush1.bf16.xpose.msra.mxu0 0
      %707 = vmatprep.subr.bf16.mxu0 0
      %708 = vmatpush1.bf16.xpose.msra.mxu0 0
      %709 = vmatprep.subr.bf16.mxu0 0
      %710 = vmatpush1.bf16.xpose.msra.mxu0 0
      %711 = vmatprep.subr.bf16.mxu0 0
      %712 = vmatpush1.bf16.xpose.msra.mxu0 0
      %713 = vmatprep.subr.bf16.mxu0 0
      %714 = vmatpush1.bf16.xpose.msra.mxu0 0
      %715 = vmatprep.subr.bf16.mxu0 0
      %716 = vmatpush1.bf16.xpose.msra.mxu0 0
      %717 = vmatprep.subr.bf16.mxu0 0
      %718 = vmatpush1.bf16.xpose.msra.mxu0 0
      %719 = vmatprep.subr.bf16.mxu0 0
      %720 = vmatpush1.bf16.xpose.msra.mxu0 0
      %721 = vmatprep.subr.bf16.mxu0 0
      %722 = vmatpush1.bf16.xpose.msra.mxu0 0
      %723 = vmatprep.subr.bf16.mxu0 0
      %724 = vmatpush1.bf16.xpose.msra.mxu0 0
      %725 = vmatprep.subr.bf16.mxu0 0
      %726 = vmatpush1.bf16.xpose.msra.mxu0 0
      %727 = vmatprep.subr.bf16.mxu0 0
      %728 = vmatpush1.bf16.xpose.msra.mxu0 0
      %729 = vmatprep.mubr.bf16.mxu0 0
      %730 = vmatmul.mubr.bf16.gmra.mrb[0].mxu0 %v692
      %v731 = vpop.f32.mrb[0].mxu0
      %v732 = vadd.f32 0.0, %v731
      %v733 = vpop.f32.mrb[0].mxu0
      %v734 = vpop.f32.mrb[0].mxu0
      %v735 = vpop.f32.mrb[0].mxu0
      %736 = vdwg.mxu0
      %v737 = vsel %vm371, %v732, -inf
      %738 = vmax.xlane.f32.xlu0 %v737
      %v739 = vpop.xlane.xlu0 %738
      %v740 = vsub.f32 %v732, %v739
      %v741 = vmul.f32 %v740, 1.442695
      %v742 = vpow.pop %v741
      %v743 = vsel %vm371, %v742, 0.0
      %744 = vadd.xlane.f32.xlu0 %v743
      %v745 = vpop.xlane.xlu0 %744
      %v746 = vrcp.pop %v745
      %v747 = vmul.f32 %v742, %v746
      %v748 = vpack.c.bf16 %v747, %v747
      %749 = vrot.lane.b32.xlu0 %v430, 112
      %v750 = vpop.permute.xlu0 %749
      %v752 = vsel %vm371, %v748, 0
      %v755 = vsel %vm434, %v750, 0
      %757 = vmatprep.subr.bf16.mxu0 0
      %758 = vmatpush1.bf16.msra.mxu0 %v755
      %759 = vmatprep.subr.bf16.mxu0 0
      %760 = vmatpush1.bf16.msra.mxu0 0
      %761 = vmatprep.subr.bf16.mxu0 0
      %762 = vmatpush1.bf16.msra.mxu0 0
      %763 = vmatprep.subr.bf16.mxu0 0
      %764 = vmatpush1.bf16.msra.mxu0 0
      %765 = vmatprep.subr.bf16.mxu0 0
      %766 = vmatpush1.bf16.msra.mxu0 0
      %767 = vmatprep.subr.bf16.mxu0 0
      %768 = vmatpush1.bf16.msra.mxu0 0
      %769 = vmatprep.subr.bf16.mxu0 0
      %770 = vmatpush1.bf16.msra.mxu0 0
      %771 = vmatprep.subr.bf16.mxu0 0
      %772 = vmatpush1.bf16.msra.mxu0 0
      %773 = vmatprep.subr.bf16.mxu0 0
      %774 = vmatpush1.bf16.msra.mxu0 0
      %775 = vmatprep.subr.bf16.mxu0 0
      %776 = vmatpush1.bf16.msra.mxu0 0
      %777 = vmatprep.subr.bf16.mxu0 0
      %778 = vmatpush1.bf16.msra.mxu0 0
      %779 = vmatprep.subr.bf16.mxu0 0
      %780 = vmatpush1.bf16.msra.mxu0 0
      %781 = vmatprep.subr.bf16.mxu0 0
      %782 = vmatpush1.bf16.msra.mxu0 0
      %783 = vmatprep.subr.bf16.mxu0 0
      %784 = vmatpush1.bf16.msra.mxu0 0
      %785 = vmatprep.subr.bf16.mxu0 0
      %786 = vmatpush1.bf16.msra.mxu0 0
      %787 = vmatprep.subr.bf16.mxu0 0
      %788 = vmatpush1.bf16.msra.mxu0 0
      %789 = vmatprep.mubr.bf16.mxu0 0
      %790 = vmatmul.mubr.bf16.gmra.mrb[0].mxu0 %v752
      %v791 = vpop.f32.mrb[0].mxu0
      %v792 = vadd.f32 0.0, %v791
      %v793 = vpop.f32.mrb[0].mxu0
      %v794 = vpop.f32.mrb[0].mxu0
      %v795 = vpop.f32.mrb[0].mxu0
      %796 = vdwg.mxu0
      %v797 = vpack.c.bf16 %v792, %v792
      %v799 = vsel %vm371, %v797, 0
      %v802 = vsel %vm434, %v367, 0
      %804 = vmatprep.subr.bf16.mxu0 0
      %805 = vmatpush1.bf16.msra.mxu0 %v802
      %806 = vmatprep.subr.bf16.mxu0 0
      %807 = vmatpush1.bf16.msra.mxu0 0
      %808 = vmatprep.subr.bf16.mxu0 0
      %809 = vmatpush1.bf16.msra.mxu0 0
      %810 = vmatprep.subr.bf16.mxu0 0
      %811 = vmatpush1.bf16.msra.mxu0 0
      %812 = vmatprep.subr.bf16.mxu0 0
      %813 = vmatpush1.bf16.msra.mxu0 0
      %814 = vmatprep.subr.bf16.mxu0 0
      %815 = vmatpush1.bf16.msra.mxu0 0
      %816 = vmatprep.subr.bf16.mxu0 0
      %817 = vmatpush1.bf16.msra.mxu0 0
      %818 = vmatprep.subr.bf16.mxu0 0
      %819 = vmatpush1.bf16.msra.mxu0 0
      %820 = vmatprep.subr.bf16.mxu0 0
      %821 = vmatpush1.bf16.msra.mxu0 0
      %822 = vmatprep.subr.bf16.mxu0 0
      %823 = vmatpush1.bf16.msra.mxu0 0
      %824 = vmatprep.subr.bf16.mxu0 0
      %825 = vmatpush1.bf16.msra.mxu0 0
      %826 = vmatprep.subr.bf16.mxu0 0
      %827 = vmatpush1.bf16.msra.mxu0 0
      %828 = vmatprep.subr.bf16.mxu0 0
      %829 = vmatpush1.bf16.msra.mxu0 0
      %830 = vmatprep.subr.bf16.mxu0 0
      %831 = vmatpush1.bf16.msra.mxu0 0
      %832 = vmatprep.subr.bf16.mxu0 0
      %833 = vmatpush1.bf16.msra.mxu0 0
      %834 = vmatprep.subr.bf16.mxu0 0
      %835 = vmatpush1.bf16.msra.mxu0 0
      %836 = vmatprep.mubr.bf16.mxu0 0
      %837 = vmatmul.mubr.bf16.gmra.mrb[0].mxu0 %v799
      %v838 = vpop.f32.mrb[0].mxu0
      %v839 = vadd.f32 0.0, %v838
      %v840 = vpop.f32.mrb[0].mxu0
      %v841 = vpop.f32.mrb[0].mxu0
      %v842 = vpop.f32.mrb[0].mxu0
      %843 = vdwg.mxu0
      %v844 = vadd.f32 %v686, %v839
      %845 = vrot.lane.b32.xlu0 %v369, 104
      %v846 = vpop.permute.xlu0 %845
      %847 = vrot.lane.b32.xlu0 %v370, 104
      %v848 = vpop.permute.xlu0 %847
      %v850 = vsel %vm371, %v846, 0
      %v853 = vsel %vm371, %v848, 0
      %855 = vmatprep.subr.bf16.mxu0 0
      %856 = vmatpush1.bf16.xpose.msra.mxu0 %v853
      %857 = vmatprep.subr.bf16.mxu0 0
      %858 = vmatpush1.bf16.xpose.msra.mxu0 0
      %859 = vmatprep.subr.bf16.mxu0 0
      %860 = vmatpush1.bf16.xpose.msra.mxu0 0
      %861 = vmatprep.subr.bf16.mxu0 0
      %862 = vmatpush1.bf16.xpose.msra.mxu0 0
      %863 = vmatprep.subr.bf16.mxu0 0
      %864 = vmatpush1.bf16.xpose.msra.mxu0 0
      %865 = vmatprep.subr.bf16.mxu0 0
      %866 = vmatpush1.bf16.xpose.msra.mxu0 0
      %867 = vmatprep.subr.bf16.mxu0 0
      %868 = vmatpush1.bf16.xpose.msra.mxu0 0
      %869 = vmatprep.subr.bf16.mxu0 0
      %870 = vmatpush1.bf16.xpose.msra.mxu0 0
      %871 = vmatprep.subr.bf16.mxu0 0
      %872 = vmatpush1.bf16.xpose.msra.mxu0 0
      %873 = vmatprep.subr.bf16.mxu0 0
      %874 = vmatpush1.bf16.xpose.msra.mxu0 0
      %875 = vmatprep.subr.bf16.mxu0 0
      %876 = vmatpush1.bf16.xpose.msra.mxu0 0
      %877 = vmatprep.subr.bf16.mxu0 0
      %878 = vmatpush1.bf16.xpose.msra.mxu0 0
      %879 = vmatprep.subr.bf16.mxu0 0
      %880 = vmatpush1.bf16.xpose.msra.mxu0 0
      %881 = vmatprep.subr.bf16.mxu0 0
      %882 = vmatpush1.bf16.xpose.msra.mxu0 0
      %883 = vmatprep.subr.bf16.mxu0 0
      %884 = vmatpush1.bf16.xpose.msra.mxu0 0
      %885 = vmatprep.subr.bf16.mxu0 0
      %886 = vmatpush1.bf16.xpose.msra.mxu0 0
      %887 = vmatprep.mubr.bf16.mxu0 0
      %888 = vmatmul.mubr.bf16.gmra.mrb[0].mxu0 %v850
      %v889 = vpop.f32.mrb[0].mxu0
      %v890 = vadd.f32 0.0, %v889
      %v891 = vpop.f32.mrb[0].mxu0
      %v892 = vpop.f32.mrb[0].mxu0
      %v893 = vpop.f32.mrb[0].mxu0
      %894 = vdwg.mxu0
      %v895 = vsel %vm371, %v890, -inf
      %896 = vmax.xlane.f32.xlu0 %v895
      %v897 = vpop.xlane.xlu0 %896
      %v898 = vsub.f32 %v890, %v897
      %v899 = vmul.f32 %v898, 1.442695
      %v900 = vpow.pop %v899
      %v901 = vsel %vm371, %v900, 0.0
      %902 = vadd.xlane.f32.xlu0 %v901
      %v903 = vpop.xlane.xlu0 %902
      %v904 = vrcp.pop %v903
      %v905 = vmul.f32 %v900, %v904
      %v906 = vpack.c.bf16 %v905, %v905
      %907 = vrot.lane.b32.xlu0 %v430, 104
      %v908 = vpop.permute.xlu0 %907
      %v910 = vsel %vm371, %v906, 0
      %v913 = vsel %vm434, %v908, 0
      %915 = vmatprep.subr.bf16.mxu0 0
      %916 = vmatpush1.bf16.msra.mxu0 %v913
      %917 = vmatprep.subr.bf16.mxu0 0
      %918 = vmatpush1.bf16.msra.mxu0 0
      %919 = vmatprep.subr.bf16.mxu0 0
      %920 = vmatpush1.bf16.msra.mxu0 0
      %921 = vmatprep.subr.bf16.mxu0 0
      %922 = vmatpush1.bf16.msra.mxu0 0
      %923 = vmatprep.subr.bf16.mxu0 0
      %924 = vmatpush1.bf16.msra.mxu0 0
      %925 = vmatprep.subr.bf16.mxu0 0
      %926 = vmatpush1.bf16.msra.mxu0 0
      %927 = vmatprep.subr.bf16.mxu0 0
      %928 = vmatpush1.bf16.msra.mxu0 0
      %929 = vmatprep.subr.bf16.mxu0 0
      %930 = vmatpush1.bf16.msra.mxu0 0
      %931 = vmatprep.subr.bf16.mxu0 0
      %932 = vmatpush1.bf16.msra.mxu0 0
      %933 = vmatprep.subr.bf16.mxu0 0
      %934 = vmatpush1.bf16.msra.mxu0 0
      %935 = vmatprep.subr.bf16.mxu0 0
      %936 = vmatpush1.bf16.msra.mxu0 0
      %937 = vmatprep.subr.bf16.mxu0 0
      %938 = vmatpush1.bf16.msra.mxu0 0
      %939 = vmatprep.subr.bf16.mxu0 0
      %940 = vmatpush1.bf16.msra.mxu0 0
      %941 = vmatprep.subr.bf16.mxu0 0
      %942 = vmatpush1.bf16.msra.mxu0 0
      %943 = vmatprep.subr.bf16.mxu0 0
      %944 = vmatpush1.bf16.msra.mxu0 0
      %945 = vmatprep.subr.bf16.mxu0 0
      %946 = vmatpush1.bf16.msra.mxu0 0
      %947 = vmatprep.mubr.bf16.mxu0 0
      %948 = vmatmul.mubr.bf16.gmra.mrb[0].mxu0 %v910
      %v949 = vpop.f32.mrb[0].mxu0
      %v950 = vadd.f32 0.0, %v949
      %v951 = vpop.f32.mrb[0].mxu0
      %v952 = vpop.f32.mrb[0].mxu0
      %v953 = vpop.f32.mrb[0].mxu0
      %954 = vdwg.mxu0
      %v955 = vpack.c.bf16 %v950, %v950
      %v957 = vsel %vm371, %v955, 0
      %v960 = vsel %vm434, %v368, 0
      %962 = vmatprep.subr.bf16.mxu0 0
      %963 = vmatpush1.bf16.msra.mxu0 %v960
      %964 = vmatprep.subr.bf16.mxu0 0
      %965 = vmatpush1.bf16.msra.mxu0 0
      %966 = vmatprep.subr.bf16.mxu0 0
      %967 = vmatpush1.bf16.msra.mxu0 0
      %968 = vmatprep.subr.bf16.mxu0 0
      %969 = vmatpush1.bf16.msra.mxu0 0
      %970 = vmatprep.subr.bf16.mxu0 0
      %971 = vmatpush1.bf16.msra.mxu0 0
      %972 = vmatprep.subr.bf16.mxu0 0
      %973 = vmatpush1.bf16.msra.mxu0 0
      %974 = vmatprep.subr.bf16.mxu0 0
      %975 = vmatpush1.bf16.msra.mxu0 0
      %976 = vmatprep.subr.bf16.mxu0 0
      %977 = vmatpush1.bf16.msra.mxu0 0
      %978 = vmatprep.subr.bf16.mxu0 0
      %979 = vmatpush1.bf16.msra.mxu0 0
      %980 = vmatprep.subr.bf16.mxu0 0
      %981 = vmatpush1.bf16.msra.mxu0 0
      %982 = vmatprep.subr.bf16.mxu0 0
      %983 = vmatpush1.bf16.msra.mxu0 0
      %984 = vmatprep.subr.bf16.mxu0 0
      %985 = vmatpush1.bf16.msra.mxu0 0
      %986 = vmatprep.subr.bf16.mxu0 0
      %987 = vmatpush1.bf16.msra.mxu0 0
      %988 = vmatprep.subr.bf16.mxu0 0
      %989 = vmatpush1.bf16.msra.mxu0 0
      %990 = vmatprep.subr.bf16.mxu0 0
      %991 = vmatpush1.bf16.msra.mxu0 0
      %992 = vmatprep.subr.bf16.mxu0 0
      %993 = vmatpush1.bf16.msra.mxu0 0
      %994 = vmatprep.mubr.bf16.mxu0 0
      %995 = vmatmul.mubr.bf16.gmra.mrb[0].mxu0 %v957
      %v996 = vpop.f32.mrb[0].mxu0
      %v997 = vadd.f32 0.0, %v996
      %v998 = vpop.f32.mrb[0].mxu0
      %v999 = vpop.f32.mrb[0].mxu0
      %v1000 = vpop.f32.mrb[0].mxu0
      %1001 = vdwg.mxu0
      %v1002 = vadd.f32 %v844, %v997
      %v1003 = vld [vmem:[%s6] sm:$0x1]
      %v1004 = vld [vmem:[%s7] sm:$0x1]
      %vm1005 = vcmask 261120
      %v1006 = vsel %vm1005, %v1002, 0.0
      %1007 = vadd.xlane.f32.xlu0 %v1006
      %v1008 = vpop.xlane.xlu0 %1007
      %v1009 = vrcp.pop 32.0
      %v1010 = vmul.f32 %v1008, %v1009
      %v1011 = vsub.f32 %v1002, %v1010
      %v1012 = vmul.f32 %v1011, %v1011
      %v1013 = vsel %vm1005, %v1012, 0.0
      %1014 = vadd.xlane.f32.xlu0 %v1013
      %v1015 = vpop.xlane.xlu0 %1014
      %v1016 = vmul.f32 %v1015, %v1009
      %v1017 = vadd.f32 %v1016, 1e-05
      %v1018 = vrsqrt.pop %v1017
      %v1019 = vmul.f32 %v1011, %v1018
      %v1021 = vlaneseq
      %v1022 = vshrl.u32 %v1021, 7
      %v1023 = vsub.s32 0, %v1022
      %v1024 = vrot.slane %v1003, %v1023
      %v1026 = vmul.f32 %v1019, %v1024
      %v1028 = vlaneseq
      %v1029 = vshrl.u32 %v1028, 7
      %v1030 = vsub.s32 0, %v1029
      %v1031 = vrot.slane %v1004, %v1030
      %v1033 = vadd.f32 %v1026, %v1031
      %1034 = vst.msk [vmem:[%s351] sm:$0xff] %vm1005, %v1033
      %p1035 = scmp.lt.s32.totalorder %s19, 1
      %s1036 = scalar_select %p1035, %s19, 1
      %s1037 = smul.addr %s1036, 8
      %s1038 = scalar_lea.vmem %s8, %s1037
      // Predicated region
      $region53: #{global_decoder_layer.7} parent=51 // pred_check
        %p1039 = pneg %p225
      $region54: #{global_decoder_layer.7} parent=51 // pred_check_branch
        %1041 = sbr.rel (%p1039) target = $region56
      $region55: #{global_decoder_layer.7} parent=51 // pred_region
        _
      $region56: #{global_decoder_layer.7} parent=51 // pred_fallthru
        _
    $region52: #{global_decoder_layer.7} parent=5 // pred_fallthru
      _
    %p1042 = scmp.le.s32.totalorder 2, %s14
    // Predicated region
    $region57: #{global_decoder_layer.7} parent=5 // pred_check
      %p1043 = pneg %p1042
    $region58: #{global_decoder_layer.7} parent=5 // pred_check_branch
      %1045 = sbr.rel (%p1043) target = $region60
    $region59: #{global_decoder_layer.7} parent=5 // pred_region
      %s1046 = ssub.s32 %s14, 2
      // Predicated region
      $region61: #{global_decoder_layer.7} parent=59 // pred_check
        %p1047 = pneg %p231
      $region62: #{global_decoder_layer.7} parent=59 // pred_check_branch
        %1049 = sbr.rel (%p1047) target = $region64
      $region63: #{global_decoder_layer.7} parent=59 // pred_region
        %p1050 = scmp.lt.s32.totalorder %s20, 1
        %s1051 = scalar_select %p1050, %s20, 1
        %s1052 = smul.addr %s1051, 8
        %s1053 = scalar_lea.vmem %s8, %s1052
      $region64: #{global_decoder_layer.7} parent=59 // pred_fallthru
        _
    $region60: #{global_decoder_layer.7} parent=5 // pred_fallthru
      _
  $region6: #{global_decoder_layer.7} parent=0 // loop_footer
    %s18 = sadd.s32 1, %s14
  $region7: #{global_decoder_layer.7} parent=0 // loop_footer_branch
    %13 = sbr.rel target = $region3
  $region8: #{global_decoder_layer.7} parent=0 // loop_exit
    _

// kernel: global_decoder_layer.11
$region0: #{global_decoder_layer.11}
  #allocation0 [shape = 'u32[]', space=smem, size = 0x4, offset = 0x4, fixed_abs, tag = 'smem constant byte address 0x4 - core index']
  #allocation1 [shape = 'u32[144,128]{1,0:T(1,128)}', space=vmem, size = 0x12000, scoped, tag = 'internal scratch']
  %s0 = inlined_call_operand.vmem [shape: f32[16,32], index: 0, kind: input, shape index: {}]
  %s1 = inlined_call_operand.vmem [shape: bf16[32,64], index: 1, kind: input, shape index: {}]
  %s2 = inlined_call_operand.vmem [shape: f32[1,64], index: 2, kind: input, shape index: {}]
  %s3 = inlined_call_operand.vmem [shape: bf16[64,32], index: 3, kind: input, shape index: {}]
  %s4 = inlined_call_operand.vmem [shape: f32[1,32], index: 4, kind: input, shape index: {}]
  %s5 = inlined_call_operand.vmem [shape: f32[1,32], index: 5, kind: input, shape index: {}]
  %s6 = inlined_call_operand.vmem [shape: f32[1,32], index: 6, kind: input, shape index: {}]
  %s7 = inlined_call_operand.hbm [shape: f32[16,32], index: 7, kind: output, shape index: {}]
  %s8 = sld [smem:[#allocation0]]
  $region38: #{global_decoder_layer.11} parent=0
    _
  %s10 = ssub.s32 1, %s8
  %s11 = scalar_select 0, %s10, %s8
  $region1: #{global_decoder_layer.11} parent=0
    #allocation2 [shape = 'u8[8192]{0}', space=vmem, size = 0x2000, scoped, tag = 'output window, operand 0, single buffered']
    #allocation3 [shape = 's32[1]{0}', space=sflag, size = 0x4, scoped, tag = 'scoped memory for global_decoder_layer.11']
    %12 = vsyncpa [#allocation3], 0
    // Predicated region
    $region2: #{global_decoder_layer.11} parent=1 // pred_check
      _
    $region3: #{global_decoder_layer.11} parent=1 // pred_check_branch
      %14 = sbr.rel (0) target = $region5
    $region4: #{global_decoder_layer.11} parent=1 // pred_region
      _
    $region5: #{global_decoder_layer.11} parent=1 // pred_fallthru
      _
    // Predicated region
    $region6: #{global_decoder_layer.11} parent=1 // pred_check
      _
    $region7: #{global_decoder_layer.11} parent=1 // pred_check_branch
      %16 = sbr.rel (0) target = $region9
    $region8: #{global_decoder_layer.11} parent=1 // pred_region
      _
    $region9: #{global_decoder_layer.11} parent=1 // pred_fallthru
      _
    // Predicated region
    $region10: #{global_decoder_layer.11} parent=1 // pred_check
      _
    $region11: #{global_decoder_layer.11} parent=1 // pred_check_branch
      %18 = sbr.rel (0) target = $region13
    $region12: #{global_decoder_layer.11} parent=1 // pred_region
      _
    $region13: #{global_decoder_layer.11} parent=1 // pred_fallthru
      _
    // Predicated region
    $region14: #{global_decoder_layer.11} parent=1 // pred_check
      _
    $region15: #{global_decoder_layer.11} parent=1 // pred_check_branch
      %20 = sbr.rel (0) target = $region17
    $region16: #{global_decoder_layer.11} parent=1 // pred_region
      _
    $region17: #{global_decoder_layer.11} parent=1 // pred_fallthru
      _
    // Predicated region
    $region18: #{global_decoder_layer.11} parent=1 // pred_check
      _
    $region19: #{global_decoder_layer.11} parent=1 // pred_check_branch
      %22 = sbr.rel (0) target = $region21
    $region20: #{global_decoder_layer.11} parent=1 // pred_region
      _
    $region21: #{global_decoder_layer.11} parent=1 // pred_fallthru
      _
    // Predicated region
    $region22: #{global_decoder_layer.11} parent=1 // pred_check
      _
    $region23: #{global_decoder_layer.11} parent=1 // pred_check_branch
      %24 = sbr.rel (0) target = $region25
    $region24: #{global_decoder_layer.11} parent=1 // pred_region
      _
    $region25: #{global_decoder_layer.11} parent=1 // pred_fallthru
      _
    // Predicated region
    $region26: #{global_decoder_layer.11} parent=1 // pred_check
      _
    $region27: #{global_decoder_layer.11} parent=1 // pred_check_branch
      %26 = sbr.rel (0) target = $region29
    $region28: #{global_decoder_layer.11} parent=1 // pred_region
      _
    $region29: #{global_decoder_layer.11} parent=1 // pred_fallthru
      _
    %v28 = vld [vmem:[%s0] sm:$0xff]
    %v29 = vld [vmem:[%s0 + $0x8] sm:$0xff]
    %v30 = vld [vmem:[%s1] sm:$0xf]
    %v31 = vld [vmem:[%s1 + $0x4] sm:$0xf]
    %v32 = vld [vmem:[%s1 + $0x8] sm:$0xf]
    %v33 = vld [vmem:[%s1 + $0xc] sm:$0xf]
    %v34 = vpack.c.bf16 %v29, %v28
    %v35 = vld [vmem:[%s2] sm:$0x1]
    %v37 = vlaneseq
    %v38 = vshrl.u32 %v37, 7
    %v39 = vsub.s32 0, %v38
    %v40 = vrot.slane %v35, %v39
    %v46 = vunpack.c.l.b16 %v30
    %v47 = vunpack.c.l.b16 %v31
    %v48 = vunpack.c.l.b16 %v32
    %v49 = vunpack.c.l.b16 %v33
    %v50 = vpack.c.b16 %v47, %v46
    %v51 = vpack.c.b16 %v49, %v48
    %vm54 = vcmask 261120
    %v56 = vsel %vm54, %v34, 0
    %58 = vmatprep.subr.bf16.mxu0 0
    %59 = vmatpush1.bf16.msra.mxu0 %v50
    %60 = vmatprep.subr.bf16.mxu0 0
    %61 = vmatpush1.bf16.msra.mxu0 %v51
    %62 = vmatprep.subr.bf16.mxu0 0
    %63 = vmatpush1.bf16.msra.mxu0 0
    %64 = vmatprep.subr.bf16.mxu0 0
    %65 = vmatpush1.bf16.msra.mxu0 0
    %66 = vmatprep.subr.bf16.mxu0 0
    %67 = vmatpush1.bf16.msra.mxu0 0
    %68 = vmatprep.subr.bf16.mxu0 0
    %69 = vmatpush1.bf16.msra.mxu0 0
    %70 = vmatprep.subr.bf16.mxu0 0
    %71 = vmatpush1.bf16.msra.mxu0 0
    %72 = vmatprep.subr.bf16.mxu0 0
    %73 = vmatpush1.bf16.msra.mxu0 0
    %74 = vmatprep.subr.bf16.mxu0 0
    %75 = vmatpush1.bf16.msra.mxu0 0
    %76 = vmatprep.subr.bf16.mxu0 0
    %77 = vmatpush1.bf16.msra.mxu0 0
    %78 = vmatprep.subr.bf16.mxu0 0
    %79 = vmatpush1.bf16.msra.mxu0 0
    %80 = vmatprep.subr.bf16.mxu0 0
    %81 = vmatpush1.bf16.msra.mxu0 0
    %82 = vmatprep.subr.bf16.mxu0 0
    %83 = vmatpush1.bf16.msra.mxu0 0
    %84 = vmatprep.subr.bf16.mxu0 0
    %85 = vmatpush1.bf16.msra.mxu0 0
    %86 = vmatprep.subr.bf16.mxu0 0
    %87 = vmatpush1.bf16.msra.mxu0 0
    %88 = vmatprep.subr.bf16.mxu0 0
    %89 = vmatpush1.bf16.msra.mxu0 0
    %90 = vmatprep.mubr.bf16.mxu0 0
    %91 = vmatmul.mubr.bf16.gmra.mrb[0].mxu0 %v56
    %v92 = vpop.f32.mrb[0].mxu0
    %v93 = vadd.f32 %v40, %v92
    %v94 = vpop.f32.mrb[0].mxu0
    %v95 = vpop.f32.mrb[0].mxu0
    %v96 = vadd.f32 %v40, %v95
    %v97 = vpop.f32.mrb[0].mxu0
    %98 = vdwg.mxu0
    %v99 = vmax.f32 %v93, 0.0
    %v100 = vmax.f32 %v96, 0.0
    %v101 = vld [vmem:[%s3] sm:$0xf]
    %v102 = vld [vmem:[%s3 + $0x4] sm:$0xf]
    %v103 = vld [vmem:[%s3 + $0x8] sm:$0xf]
    %v104 = vld [vmem:[%s3 + $0xc] sm:$0xf]
    %v105 = vld [vmem:[%s3 + $0x10] sm:$0xf]
    %v106 = vld [vmem:[%s3 + $0x14] sm:$0xf]
    %v107 = vld [vmem:[%s3 + $0x18] sm:$0xf]
    %v108 = vld [vmem:[%s3 + $0x1c] sm:$0xf]
    %v109 = vpack.c.bf16 %v100, %v99
    %v110 = vld [vmem:[%s4] sm:$0x1]
    %v112 = vlaneseq
    %v113 = vshrl.u32 %v112, 7
    %v114 = vsub.s32 0, %v113
    %v115 = vrot.slane %v110, %v114
    %v125 = vunpack.c.l.b16 %v101
    %v126 = vunpack.c.l.b16 %v102
    %v127 = vunpack.c.l.b16 %v103
    %v128 = vunpack.c.l.b16 %v104
    %v129 = vunpack.c.l.b16 %v105
    %v130 = vunpack.c.l.b16 %v106
    %v131 = vunpack.c.l.b16 %v107
    %v132 = vunpack.c.l.b16 %v108
    %v133 = vpack.c.b16 %v126, %v125
    %v134 = vpack.c.b16 %v128, %v127
    %v135 = vpack.c.b16 %v130, %v129
    %v136 = vpack.c.b16 %v132, %v131
    %vm141 = vcmask 523264
    %v143 = vsel %vm141, %v109, 0
    %145 = vmatprep.subr.bf16.mxu0 0
    %146 = vmatpush1.bf16.msra.mxu0 %v133
    %147 = vmatprep.subr.bf16.mxu0 0
    %148 = vmatpush1.bf16.msra.mxu0 %v134
    %149 = vmatprep.subr.bf16.mxu0 0
    %150 = vmatpush1.bf16.msra.mxu0 %v135
    %151 = vmatprep.subr.bf16.mxu0 0
    %152 = vmatpush1.bf16.msra.mxu0 %v136
    %153 = vmatprep.subr.bf16.mxu0 0
    %154 = vmatpush1.bf16.msra.mxu0 0
    %155 = vmatprep.subr.bf16.mxu0 0
    %156 = vmatpush1.bf16.msra.mxu0 0
    %157 = vmatprep.subr.bf16.mxu0 0
    %158 = vmatpush1.bf16.msra.mxu0 0
    %159 = vmatprep.subr.bf16.mxu0 0
    %160 = vmatpush1.bf16.msra.mxu0 0
    %161 = vmatprep.subr.bf16.mxu0 0
    %162 = vmatpush1.bf16.msra.mxu0 0
    %163 = vmatprep.subr.bf16.mxu0 0
    %164 = vmatpush1.bf16.msra.mxu0 0
    %165 = vmatprep.subr.bf16.mxu0 0
    %166 = vmatpush1.bf16.msra.mxu0 0
    %167 = vmatprep.subr.bf16.mxu0 0
    %168 = vmatpush1.bf16.msra.mxu0 0
    %169 = vmatprep.subr.bf16.mxu0 0
    %170 = vmatpush1.bf16.msra.mxu0 0
    %171 = vmatprep.subr.bf16.mxu0 0
    %172 = vmatpush1.bf16.msra.mxu0 0
    %173 = vmatprep.subr.bf16.mxu0 0
    %174 = vmatpush1.bf16.msra.mxu0 0
    %175 = vmatprep.subr.bf16.mxu0 0
    %176 = vmatpush1.bf16.msra.mxu0 0
    %177 = vmatprep.mubr.bf16.mxu0 0
    %178 = vmatmul.mubr.bf16.gmra.mrb[0].mxu0 %v143
    %v179 = vpop.f32.mrb[0].mxu0
    %v180 = vadd.f32 %v115, %v179
    %v181 = vpop.f32.mrb[0].mxu0
    %v182 = vpop.f32.mrb[0].mxu0
    %v183 = vadd.f32 %v115, %v182
    %v184 = vpop.f32.mrb[0].mxu0
    %185 = vdwg.mxu0
    %v186 = vadd.f32 %v180, %v28
    %v187 = vadd.f32 %v183, %v29
    %v188 = vld [vmem:[%s5] sm:$0x1]
    %v189 = vld [vmem:[%s6] sm:$0x1]
    %v190 = vsel %vm54, %v186, 0.0
    %191 = vadd.xlane.f32.xlu0 %v190
    %v192 = vpop.xlane.xlu0 %191
    %v193 = vsel %vm54, %v187, 0.0
    %194 = vadd.xlane.f32.xlu0 %v193
    %v195 = vpop.xlane.xlu0 %194
    %v196 = vrcp.pop 32.0
    %v197 = vmul.f32 %v192, %v196
    %v198 = vmul.f32 %v195, %v196
    %v199 = vsub.f32 %v186, %v197
    %v200 = vsub.f32 %v187, %v198
    %v201 = vmul.f32 %v199, %v199
    %v202 = vmul.f32 %v200, %v200
    %v203 = vsel %vm54, %v201, 0.0
    %204 = vadd.xlane.f32.xlu0 %v203
    %v205 = vpop.xlane.xlu0 %204
    %v206 = vsel %vm54, %v202, 0.0
    %207 = vadd.xlane.f32.xlu0 %v206
    %v208 = vpop.xlane.xlu0 %207
    %v209 = vmul.f32 %v205, %v196
    %v210 = vmul.f32 %v208, %v196
    %v211 = vadd.f32 %v209, 1e-05
    %v212 = vadd.f32 %v210, 1e-05
    %v213 = vrsqrt.pop %v211
    %v214 = vrsqrt.pop %v212
    %v215 = vmul.f32 %v199, %v213
    %v216 = vmul.f32 %v200, %v214
    %v218 = vlaneseq
    %v219 = vshrl.u32 %v218, 7
    %v220 = vsub.s32 0, %v219
    %v221 = vrot.slane %v188, %v220
    %v223 = vmul.f32 %v215, %v221
    %v224 = vmul.f32 %v216, %v221
    %v226 = vlaneseq
    %v227 = vshrl.u32 %v226, 7
    %v228 = vsub.s32 0, %v227
    %v229 = vrot.slane %v189, %v228
    %v231 = vadd.f32 %v223, %v229
    %v232 = vadd.f32 %v224, %v229
    %233 = vst.msk [vmem:[#allocation2] sm:$0xff] %vm54, %v231
    %234 = vst.msk [vmem:[#allocation2 + $0x8] sm:$0xff] %vm54, %v232
    // Predicated region
    $region30: #{global_decoder_layer.11} parent=1 // pred_check
      _
    $region31: #{global_decoder_layer.11} parent=1 // pred_check_branch
      %236 = sbr.rel (0) target = $region33
    $region32: #{global_decoder_layer.11} parent=1 // pred_region
      %s238 = ssub.s32 256, 256
      %239 = vsyncadd [#allocation3], %s238
      %s240 = sshll.u32 [#allocation2], 4
      %s241 = int_to_ptr.vmem [resolvable:$true] %s240
      %246 = dma.vmem_to_hbm [thread:$0]  %s241, 256, %s7, [#allocation3], 128, 128, 8
    $region33: #{global_decoder_layer.11} parent=1 // pred_fallthru
      _
    // Predicated region
    $region34: #{global_decoder_layer.11} parent=1 // pred_check
      _
    $region35: #{global_decoder_layer.11} parent=1 // pred_check_branch
      %248 = sbr.rel (0) target = $region37
    $region36: #{global_decoder_layer.11} parent=1 // pred_region
      %249 = dma.done [#allocation3], 256
    $region37: #{global_decoder_layer.11} parent=1 // pred_fallthru
      _
    %250 = vsyncpa [#allocation3], 1

// kernel: global_decoder_layer.10
$region0: #{global_decoder_layer.10}
  #allocation0 [shape = 'u32[]', space=smem, size = 0x4, offset = 0x4, fixed_abs, tag = 'smem constant byte address 0x4 - core index']
  #allocation1 [shape = 'u32[144,128]{1,0:T(1,128)}', space=vmem, size = 0x12000, scoped, tag = 'internal scratch']
  %s0 = inlined_call_operand.vmem [shape: f32[2,8,32], index: 0, kind: input, shape index: {}]
  %s1 = inlined_call_operand.vmem [shape: f32[2,16,32], index: 1, kind: input, shape index: {}]
  %s2 = inlined_call_operand.vmem [shape: f32[2,16,32], index: 2, kind: input, shape index: {}]
  %s3 = inlined_call_operand.vmem [shape: f32[2,1,16], index: 3, kind: input, shape index: {}]
  %s4 = inlined_call_operand.vmem [shape: f32[2,8,32], index: 4, kind: input, shape index: {}]
  %s5 = inlined_call_operand.vmem [shape: bf16[32,32], index: 5, kind: input, shape index: {}]
  %s6 = inlined_call_operand.vmem [shape: f32[1,32], index: 6, kind: input, shape index: {}]
  %s7 = inlined_call_operand.vmem [shape: f32[1,32], index: 7, kind: input, shape index: {}]
  %s8 = inlined_call_operand.vmem [shape: f32[1,32], index: 8, kind: input, shape index: {}]
  %s9 = inlined_call_operand.vmem [shape: f32[2,8,32], index: 9, kind: output, shape index: {}]
  %s10 = sld [smem:[#allocation0]]
  $region69: #{global_decoder_layer.10} parent=0
    _
  %s12 = ssub.s32 1, %s10
  %s13 = scalar_select 0, %s12, %s10
  loop: start=0, step=1, limit=4
  $region2: #{global_decoder_layer.10} parent=0 // loop_pre_header
    _
  $region3: #{global_decoder_layer.10} parent=0 // loop_header
    %s15 = sphi 0, %s19
    %p16 = scmp.ge.s32.totalorder %s15, 4
    %s25 = sphi 0, %s27
    %s28 = sphi 0, %s25
    %s29 = sphi 0, %s28
    %s45 = sphi 0, %s29
    %s51 = sphi 0, %s53
    %s54 = sphi 0, %s51
    %s55 = sphi 0, %s54
    %s71 = sphi 0, %s55
    %s77 = sphi 0, %s79
    %s80 = sphi 0, %s77
    %s81 = sphi 0, %s80
    %s97 = sphi 0, %s81
    %s103 = sphi 0, %s105
    %s106 = sphi 0, %s103
    %s107 = sphi 0, %s106
    %s123 = sphi 0, %s107
    %s129 = sphi 0, %s131
    %s132 = sphi 0, %s129
    %s133 = sphi 0, %s132
    %s149 = sphi 0, %s133
    %s153 = sphi 0, %s153
    %s155 = sphi 0, %s153
    %s156 = sphi 0, %s155
    %s170 = sphi 0, %s156
    %s174 = sphi 0, %s174
    %s176 = sphi 0, %s174
    %s177 = sphi 0, %s176
    %s191 = sphi 0, %s177
    %s195 = sphi 0, %s195
    %s197 = sphi 0, %s195
    %s198 = sphi 0, %s197
    %s212 = sphi 0, %s198
    %s216 = sphi 0, %s216
    %s218 = sphi 0, %s216
    %s219 = sphi 0, %s218
    %s233 = sphi 0, %s219
    %s239 = sphi 0, %s241
    %s242 = sphi 0, %s239
    %s243 = sphi 0, %s242
    %s259 = sphi 0, %s243
  $region4: #{global_decoder_layer.10} parent=0 // loop_header_branch
    %18 = sbr.rel (%p16) target = $region8
  $region5: #{global_decoder_layer.10} parent=0 // loop_body
    %s20 = ssub.s32 %s15, 1
    %s21 = ssub.s32 %s15, 2
    %s22 = sadd.s32 %s15, 1
    %s23 = ssub.s32 %s15, %s22
    %p24 = scmp.eq.s32.totalorder %s23, 0
    %s26 = sadd.s32 %s25, 1
    %s27 = scalar_select %p24, %s25, %s26
    %p30 = pneg %p24
    %p31 = scmp.eq.s32.totalorder %s15, 1
    %p32 = por %p30, %p31
    %p33 = scmp.ne.s32.totalorder %s25, %s28
    %p34 = scmp.eq.s32.totalorder %s15, 0
    %p35 = por %p33, %p34
    %p36 = scmp.ne.s32.totalorder %s25, %s28
    %p37 = scmp.eq.s32.totalorder %s20, 1
    %p38 = por %p36, %p37
    %p39 = scmp.ne.s32.totalorder %s28, %s29
    %p40 = scmp.eq.s32.totalorder %s20, 0
    %p41 = por %p39, %p40
    %p42 = scmp.ne.s32.totalorder %s28, %s29
    %p43 = scmp.eq.s32.totalorder %s21, 1
    %p44 = por %p42, %p43
    %p46 = scmp.ne.s32.totalorder %s29, %s45
    %p47 = scmp.eq.s32.totalorder %s21, 0
    %p48 = por %p46, %p47
    %s49 = ssub.s32 %s15, %s22
    %p50 = scmp.eq.s32.totalorder %s49, 0
    %s52 = sadd.s32 %s51, 1
    %s53 = scalar_select %p50, %s51, %s52
    %p56 = pneg %p50
    %p57 = scmp.eq.s32.totalorder %s15, 1
    %p58 = por %p56, %p57
    %p59 = scmp.ne.s32.totalorder %s51, %s54
    %p60 = scmp.eq.s32.totalorder %s15, 0
    %p61 = por %p59, %p60
    %p62 = scmp.ne.s32.totalorder %s51, %s54
    %p63 = scmp.eq.s32.totalorder %s20, 1
    %p64 = por %p62, %p63
    %p65 = scmp.ne.s32.totalorder %s54, %s55
    %p66 = scmp.eq.s32.totalorder %s20, 0
    %p67 = por %p65, %p66
    %p68 = scmp.ne.s32.totalorder %s54, %s55
    %p69 = scmp.eq.s32.totalorder %s21, 1
    %p70 = por %p68, %p69
    %p72 = scmp.ne.s32.totalorder %s55, %s71
    %p73 = scmp.eq.s32.totalorder %s21, 0
    %p74 = por %p72, %p73
    %s75 = ssub.s32 %s15, %s22
    %p76 = scmp.eq.s32.totalorder %s75, 0
    %s78 = sadd.s32 %s77, 1
    %s79 = scalar_select %p76, %s77, %s78
    %p82 = pneg %p76
    %p83 = scmp.eq.s32.totalorder %s15, 1
    %p84 = por %p82, %p83
    %p85 = scmp.ne.s32.totalorder %s77, %s80
    %p86 = scmp.eq.s32.totalorder %s15, 0
    %p87 = por %p85, %p86
    %p88 = scmp.ne.s32.totalorder %s77, %s80
    %p89 = scmp.eq.s32.totalorder %s20, 1
    %p90 = por %p88, %p89
    %p91 = scmp.ne.s32.totalorder %s80, %s81
    %p92 = scmp.eq.s32.totalorder %s20, 0
    %p93 = por %p91, %p92
    %p94 = scmp.ne.s32.totalorder %s80, %s81
    %p95 = scmp.eq.s32.totalorder %s21, 1
    %p96 = por %p94, %p95
    %p98 = scmp.ne.s32.totalorder %s81, %s97
    %p99 = scmp.eq.s32.totalorder %s21, 0
    %p100 = por %p98, %p99
    %s101 = ssub.s32 %s15, %s22
    %p102 = scmp.eq.s32.totalorder %s101, 0
    %s104 = sadd.s32 %s103, 1
    %s105 = scalar_select %p102, %s103, %s104
    %p108 = pneg %p102
    %p109 = scmp.eq.s32.totalorder %s15, 1
    %p110 = por %p108, %p109
    %p111 = scmp.ne.s32.totalorder %s103, %s106
    %p112 = scmp.eq.s32.totalorder %s15, 0
    %p113 = por %p111, %p112
    %p114 = scmp.ne.s32.totalorder %s103, %s106
    %p115 = scmp.eq.s32.totalorder %s20, 1
    %p116 = por %p114, %p115
    %p117 = scmp.ne.s32.totalorder %s106, %s107
    %p118 = scmp.eq.s32.totalorder %s20, 0
    %p119 = por %p117, %p118
    %p120 = scmp.ne.s32.totalorder %s106, %s107
    %p121 = scmp.eq.s32.totalorder %s21, 1
    %p122 = por %p120, %p121
    %p124 = scmp.ne.s32.totalorder %s107, %s123
    %p125 = scmp.eq.s32.totalorder %s21, 0
    %p126 = por %p124, %p125
    %s127 = ssub.s32 %s15, %s22
    %p128 = scmp.eq.s32.totalorder %s127, 0
    %s130 = sadd.s32 %s129, 1
    %s131 = scalar_select %p128, %s129, %s130
    %p134 = pneg %p128
    %p135 = scmp.eq.s32.totalorder %s15, 1
    %p136 = por %p134, %p135
    %p137 = scmp.ne.s32.totalorder %s129, %s132
    %p138 = scmp.eq.s32.totalorder %s15, 0
    %p139 = por %p137, %p138
    %p140 = scmp.ne.s32.totalorder %s129, %s132
    %p141 = scmp.eq.s32.totalorder %s20, 1
    %p142 = por %p140, %p141
    %p143 = scmp.ne.s32.totalorder %s132, %s133
    %p144 = scmp.eq.s32.totalorder %s20, 0
    %p145 = por %p143, %p144
    %p146 = scmp.ne.s32.totalorder %s132, %s133
    %p147 = scmp.eq.s32.totalorder %s21, 1
    %p148 = por %p146, %p147
    %p150 = scmp.ne.s32.totalorder %s133, %s149
    %p151 = scmp.eq.s32.totalorder %s21, 0
    %p152 = por %p150, %p151
    %s154 = sadd.s32 %s153, 1
    %p157 = scmp.eq.s32.totalorder %s15, 1
    %p158 = scmp.ne.s32.totalorder %s153, %s155
    %p159 = scmp.eq.s32.totalorder %s15, 0
    %p160 = por %p158, %p159
    %p161 = scmp.ne.s32.totalorder %s153, %s155
    %p162 = scmp.eq.s32.totalorder %s20, 1
    %p163 = por %p161, %p162
    %p164 = scmp.ne.s32.totalorder %s155, %s156
    %p165 = scmp.eq.s32.totalorder %s20, 0
    %p166 = por %p164, %p165
    %p167 = scmp.ne.s32.totalorder %s155, %s156
    %p168 = scmp.eq.s32.totalorder %s21, 1
    %p169 = por %p167, %p168
    %p171 = scmp.ne.s32.totalorder %s156, %s170
    %p172 = scmp.eq.s32.totalorder %s21, 0
    %p173 = por %p171, %p172
    %s175 = sadd.s32 %s174, 1
    %p178 = scmp.eq.s32.totalorder %s15, 1
    %p179 = scmp.ne.s32.totalorder %s174, %s176
    %p180 = scmp.eq.s32.totalorder %s15, 0
    %p181 = por %p179, %p180
    %p182 = scmp.ne.s32.totalorder %s174, %s176
    %p183 = scmp.eq.s32.totalorder %s20, 1
    %p184 = por %p182, %p183
    %p185 = scmp.ne.s32.totalorder %s176, %s177
    %p186 = scmp.eq.s32.totalorder %s20, 0
    %p187 = por %p185, %p186
    %p188 = scmp.ne.s32.totalorder %s176, %s177
    %p189 = scmp.eq.s32.totalorder %s21, 1
    %p190 = por %p188, %p189
    %p192 = scmp.ne.s32.totalorder %s177, %s191
    %p193 = scmp.eq.s32.totalorder %s21, 0
    %p194 = por %p192, %p193
    %s196 = sadd.s32 %s195, 1
    %p199 = scmp.eq.s32.totalorder %s15, 1
    %p200 = scmp.ne.s32.totalorder %s195, %s197
    %p201 = scmp.eq.s32.totalorder %s15, 0
    %p202 = por %p200, %p201
    %p203 = scmp.ne.s32.totalorder %s195, %s197
    %p204 = scmp.eq.s32.totalorder %s20, 1
    %p205 = por %p203, %p204
    %p206 = scmp.ne.s32.totalorder %s197, %s198
    %p207 = scmp.eq.s32.totalorder %s20, 0
    %p208 = por %p206, %p207
    %p209 = scmp.ne.s32.totalorder %s197, %s198
    %p210 = scmp.eq.s32.totalorder %s21, 1
    %p211 = por %p209, %p210
    %p213 = scmp.ne.s32.totalorder %s198, %s212
    %p214 = scmp.eq.s32.totalorder %s21, 0
    %p215 = por %p213, %p214
    %s217 = sadd.s32 %s216, 1
    %p220 = scmp.eq.s32.totalorder %s15, 1
    %p221 = scmp.ne.s32.totalorder %s216, %s218
    %p222 = scmp.eq.s32.totalorder %s15, 0
    %p223 = por %p221, %p222
    %p224 = scmp.ne.s32.totalorder %s216, %s218
    %p225 = scmp.eq.s32.totalorder %s20, 1
    %p226 = por %p224, %p225
    %p227 = scmp.ne.s32.totalorder %s218, %s219
    %p228 = scmp.eq.s32.totalorder %s20, 0
    %p229 = por %p227, %p228
    %p230 = scmp.ne.s32.totalorder %s218, %s219
    %p231 = scmp.eq.s32.totalorder %s21, 1
    %p232 = por %p230, %p231
    %p234 = scmp.ne.s32.totalorder %s219, %s233
    %p235 = scmp.eq.s32.totalorder %s21, 0
    %p236 = por %p234, %p235
    %s237 = ssub.s32 %s15, %s22
    %p238 = scmp.eq.s32.totalorder %s237, 0
    %s240 = sadd.s32 %s239, 1
    %s241 = scalar_select %p238, %s239, %s240
    %p244 = pneg %p238
    %p245 = scmp.eq.s32.totalorder %s15, 1
    %p246 = por %p244, %p245
    %p247 = scmp.ne.s32.totalorder %s239, %s242
    %p248 = scmp.eq.s32.totalorder %s15, 0
    %p249 = por %p247, %p248
    %p250 = scmp.ne.s32.totalorder %s239, %s242
    %p251 = scmp.eq.s32.totalorder %s20, 1
    %p252 = por %p250, %p251
    %p253 = scmp.ne.s32.totalorder %s242, %s243
    %p254 = scmp.eq.s32.totalorder %s20, 0
    %p255 = por %p253, %p254
    %p256 = scmp.ne.s32.totalorder %s242, %s243
    %p257 = scmp.eq.s32.totalorder %s21, 1
    %p258 = por %p256, %p257
    %p260 = scmp.ne.s32.totalorder %s243, %s259
    %p261 = scmp.eq.s32.totalorder %s21, 0
    %p262 = por %p260, %p261
    %p263 = scmp.le.s32.totalorder 1, %s15
    %p264 = scmp.lt.s32.totalorder %s15, 3
    %p265 = pnand %p263, %p264
    %p266 = pneg %p265
    // Predicated region
    $region9: #{global_decoder_layer.10} parent=5 // pred_check
      _
    $region10: #{global_decoder_layer.10} parent=5 // pred_check_branch
      %268 = sbr.rel (%p265) target = $region12
    $region11: #{global_decoder_layer.10} parent=5 // pred_region
      %s269 = ssub.s32 %s15, 1
      // Predicated region
      $region13: #{global_decoder_layer.10} parent=11 // pred_check
        %p270 = pneg %p166
      $region14: #{global_decoder_layer.10} parent=11 // pred_check_branch
        %272 = sbr.rel (%p270) target = $region16
      $region15: #{global_decoder_layer.10} parent=11 // pred_region
        _
      $region16: #{global_decoder_layer.10} parent=11 // pred_fallthru
        _
      // Predicated region
      $region17: #{global_decoder_layer.10} parent=11 // pred_check
        %p273 = pneg %p187
      $region18: #{global_decoder_layer.10} parent=11 // pred_check_branch
        %275 = sbr.rel (%p273) target = $region20
      $region19: #{global_decoder_layer.10} parent=11 // pred_region
        _
      $region20: #{global_decoder_layer.10} parent=11 // pred_fallthru
        _
      // Predicated region
      $region21: #{global_decoder_layer.10} parent=11 // pred_check
        %p276 = pneg %p208
      $region22: #{global_decoder_layer.10} parent=11 // pred_check_branch
        %278 = sbr.rel (%p276) target = $region24
      $region23: #{global_decoder_layer.10} parent=11 // pred_region
        _
      $region24: #{global_decoder_layer.10} parent=11 // pred_fallthru
        _
      // Predicated region
      $region25: #{global_decoder_layer.10} parent=11 // pred_check
        %p279 = pneg %p229
      $region26: #{global_decoder_layer.10} parent=11 // pred_check_branch
        %281 = sbr.rel (%p279) target = $region28
      $region27: #{global_decoder_layer.10} parent=11 // pred_region
        _
      $region28: #{global_decoder_layer.10} parent=11 // pred_fallthru
        _
    $region12: #{global_decoder_layer.10} parent=5 // pred_fallthru
      _
    %p282 = scmp.lt.s32.totalorder %s15, 2
    // Predicated region
    $region29: #{global_decoder_layer.10} parent=5 // pred_check
      %p283 = pneg %p282
    $region30: #{global_decoder_layer.10} parent=5 // pred_check_branch
      %285 = sbr.rel (%p283) target = $region32
    $region31: #{global_decoder_layer.10} parent=5 // pred_region
      // Predicated region
      $region33: #{global_decoder_layer.10} parent=31 // pred_check
        %p286 = pneg %p35
      $region34: #{global_decoder_layer.10} parent=31 // pred_check_branch
        %288 = sbr.rel (%p286) target = $region36
      $region35: #{global_decoder_layer.10} parent=31 // pred_region
        %p289 = scmp.lt.s32.totalorder %s15, 1
        %s290 = scalar_select %p289, %s15, 1
        %s291 = smul.addr %s290, 8
        %s292 = scalar_lea.vmem %s0, %s291
      $region36: #{global_decoder_layer.10} parent=31 // pred_fallthru
        _
      // Predicated region
      $region37: #{global_decoder_layer.10} parent=31 // pred_check
        %p293 = pneg %p61
      $region38: #{global_decoder_layer.10} parent=31 // pred_check_branch
        %295 = sbr.rel (%p293) target = $region40
      $region39: #{global_decoder_layer.10} parent=31 // pred_region
        %p296 = scmp.lt.s32.totalorder %s15, 1
        %s297 = scalar_select %p296, %s15, 1
        %s298 = smul.addr %s297, 2
        %s299 = smul.addr %s298, 8
        %s300 = scalar_lea.vmem %s1, %s299
      $region40: #{global_decoder_layer.10} parent=31 // pred_fallthru
        _
      // Predicated region
      $region41: #{global_decoder_layer.10} parent=31 // pred_check
        %p301 = pneg %p87
      $region42: #{global_decoder_layer.10} parent=31 // pred_check_branch
        %303 = sbr.rel (%p301) target = $region44
      $region43: #{global_decoder_layer.10} parent=31 // pred_region
        %p304 = scmp.lt.s32.totalorder %s15, 1
        %s305 = scalar_select %p304, %s15, 1
        %s306 = smul.addr %s305, 2
        %s307 = smul.addr %s306, 8
        %s308 = scalar_lea.vmem %s2, %s307
      $region44: #{global_decoder_layer.10} parent=31 // pred_fallthru
        _
      // Predicated region
      $region45: #{global_decoder_layer.10} parent=31 // pred_check
        %p309 = pneg %p113
      $region46: #{global_decoder_layer.10} parent=31 // pred_check_branch
        %311 = sbr.rel (%p309) target = $region48
      $region47: #{global_decoder_layer.10} parent=31 // pred_region
        %p312 = scmp.lt.s32.totalorder %s15, 1
        %s313 = scalar_select %p312, %s15, 1
        %s314 = scalar_lea.vmem %s3, %s313
      $region48: #{global_decoder_layer.10} parent=31 // pred_fallthru
        _
      // Predicated region
      $region49: #{global_decoder_layer.10} parent=31 // pred_check
        %p315 = pneg %p139
      $region50: #{global_decoder_layer.10} parent=31 // pred_check_branch
        %317 = sbr.rel (%p315) target = $region52
      $region51: #{global_decoder_layer.10} parent=31 // pred_region
        %p318 = scmp.lt.s32.totalorder %s15, 1
        %s319 = scalar_select %p318, %s15, 1
        %s320 = smul.addr %s319, 8
        %s321 = scalar_lea.vmem %s4, %s320
      $region52: #{global_decoder_layer.10} parent=31 // pred_fallthru
        _
    $region32: #{global_decoder_layer.10} parent=5 // pred_fallthru
      _
    %p322 = scmp.le.s32.totalorder 1, %s15
    %p323 = scmp.lt.s32.totalorder %s15, 3
    %p324 = pnand %p322, %p323
    %p325 = pneg %p324
    // Predicated region
    $region53: #{global_decoder_layer.10} parent=5 // pred_check
      _
    $region54: #{global_decoder_layer.10} parent=5 // pred_check_branch
      %327 = sbr.rel (%p324) target = $region56
    $region55: #{global_decoder_layer.10} parent=5 // pred_region
      %s328 = ssub.s32 %s15, 1
      %p329 = scmp.lt.s32.totalorder %s20, 1
      %s330 = scalar_select %p329, %s20, 1
      %s331 = smul.addr %s330, 8
      %s332 = scalar_lea.vmem %s0, %s331
      %p333 = pneg %p41
      %p334 = pneg %p38
      %p335 = scmp.lt.s32.totalorder %s20, 1
      %s336 = scalar_select %p335, %s20, 1
      %s337 = smul.addr %s336, 2
      %s338 = smul.addr %s337, 8
      %s339 = scalar_lea.vmem %s1, %s338
      %p340 = pneg %p67
      %p341 = pneg %p64
      %p342 = scmp.lt.s32.totalorder %s20, 1
      %s343 = scalar_select %p342, %s20, 1
      %s344 = smul.addr %s343, 2
      %s345 = smul.addr %s344, 8
      %s346 = scalar_lea.vmem %s2, %s345
      %p347 = pneg %p93
      %p348 = pneg %p90
      %p349 = scmp.lt.s32.totalorder %s20, 1
      %s350 = scalar_select %p349, %s20, 1
      %s351 = scalar_lea.vmem %s3, %s350
      %p352 = pneg %p119
      %p353 = pneg %p116
      %p354 = scmp.lt.s32.totalorder %s20, 1
      %s355 = scalar_select %p354, %s20, 1
      %s356 = smul.addr %s355, 8
      %s357 = scalar_lea.vmem %s4, %s356
      %p358 = pneg %p145
      %p359 = pneg %p142
      %p360 = pneg %p166
      %p361 = pneg %p163
      %p362 = pneg %p187
      %p363 = pneg %p184
      %p364 = pneg %p208
      %p365 = pneg %p205
      %p366 = pneg %p229
      %p367 = pneg %p226
      %p368 = pneg %p255
      %p369 = pneg %p252
      %p370 = scmp.lt.s32.totalorder %s20, 1
      %s371 = scalar_select %p370, %s20, 1
      %s372 = smul.addr %s371, 8
      %s373 = scalar_lea.vmem %s9, %s372
      %p374 = scmp.lt.s32.totalorder %s20, 1
      %s375 = scalar_select %p374, %s20, 1
      %s376 = smul.addr %s375, 8
      %s377 = scalar_lea.vmem %s0, %s376
      %p378 = scmp.lt.s32.totalorder %s20, 1
      %s379 = scalar_select %p378, %s20, 1
      %s380 = smul.addr %s379, 2
      %s381 = smul.addr %s380, 8
      %s382 = scalar_lea.vmem %s1, %s381
      %p383 = scmp.lt.s32.totalorder %s20, 1
      %s384 = scalar_select %p383, %s20, 1
      %s385 = smul.addr %s384, 2
      %s386 = smul.addr %s385, 8
      %s387 = scalar_lea.vmem %s2, %s386
      %p388 = scmp.lt.s32.totalorder %s20, 1
      %s389 = scalar_select %p388, %s20, 1
      %s390 = scalar_lea.vmem %s3, %s389
      %p391 = scmp.lt.s32.totalorder %s20, 1
      %s392 = scalar_select %p391, %s20, 1
      %s393 = smul.addr %s392, 8
      %s394 = scalar_lea.vmem %s4, %s393
      %p395 = scmp.lt.s32.totalorder %s20, 1
      %s396 = scalar_select %p395, %s20, 1
      %s397 = smul.addr %s396, 8
      %s398 = scalar_lea.vmem %s9, %s397
      %v400 = vld [vmem:[%s394] sm:$0xff]
      %v401 = vld [vmem:[%s6] sm:$0x1]
      %v403 = vlaneseq
      %v404 = vshrl.u32 %v403, 7
      %v405 = vsub.s32 0, %v404
      %v406 = vrot.slane %v401, %v405
      %v408 = vadd.f32 %v400, %v406
      %v409 = vld [vmem:[%s377] sm:$0xff]
      %v410 = vld [vmem:[%s382] sm:$0xff]
      %v411 = vld [vmem:[%s382 + $0x8] sm:$0xff]
      %v412 = vld [vmem:[%s387] sm:$0xff]
      %v413 = vld [vmem:[%s387 + $0x8] sm:$0xff]
      %v414 = vld [vmem:[%s390] sm:$0x1]
      %v415 = vld [vmem:[%s5] sm:$0xf]
      %v416 = vld [vmem:[%s5 + $0x4] sm:$0xf]
      %v417 = vld [vmem:[%s5 + $0x8] sm:$0xf]
      %v418 = vld [vmem:[%s5 + $0xc] sm:$0xf]
      %v419 = vpack.c.bf16 %v409, %v409
      %v420 = vpack.c.bf16 %v411, %v410
      %v422 = vlaneseq
      %v423 = vshrl.u32 %v422, 7
      %v424 = vsub.s32 0, %v423
      %v425 = vrot.slane %v414, %v424
      %vm427 = vcmask 64512
      %v429 = vsel %vm427, %v419, 0
      %v432 = vsel %vm427, %v420, 0
      %434 = vmatprep.subr.bf16.mxu0 0
      %435 = vmatpush1.bf16.xpose.msra.mxu0 %v432
      %436 = vmatprep.subr.bf16.mxu0 0
      %437 = vmatpush1.bf16.xpose.msra.mxu0 0
      %438 = vmatprep.subr.bf16.mxu0 0
      %439 = vmatpush1.bf16.xpose.msra.mxu0 0
      %440 = vmatprep.subr.bf16.mxu0 0
      %441 = vmatpush1.bf16.xpose.msra.mxu0 0
      %442 = vmatprep.subr.bf16.mxu0 0
      %443 = vmatpush1.bf16.xpose.msra.mxu0 0
      %444 = vmatprep.subr.bf16.mxu0 0
      %445 = vmatpush1.bf16.xpose.msra.mxu0 0
      %446 = vmatprep.subr.bf16.mxu0 0
      %447 = vmatpush1.bf16.xpose.msra.mxu0 0
      %448 = vmatprep.subr.bf16.mxu0 0
      %449 = vmatpush1.bf16.xpose.msra.mxu0 0
      %450 = vmatprep.subr.bf16.mxu0 0
      %451 = vmatpush1.bf16.xpose.msra.mxu0 0
      %452 = vmatprep.subr.bf16.mxu0 0
      %453 = vmatpush1.bf16.xpose.msra.mxu0 0
      %454 = vmatprep.subr.bf16.mxu0 0
      %455 = vmatpush1.bf16.xpose.msra.mxu0 0
      %456 = vmatprep.subr.bf16.mxu0 0
      %457 = vmatpush1.bf16.xpose.msra.mxu0 0
      %458 = vmatprep.subr.bf16.mxu0 0
      %459 = vmatpush1.bf16.xpose.msra.mxu0 0
      %460 = vmatprep.subr.bf16.mxu0 0
      %461 = vmatpush1.bf16.xpose.msra.mxu0 0
      %462 = vmatprep.subr.bf16.mxu0 0
      %463 = vmatpush1.bf16.xpose.msra.mxu0 0
      %464 = vmatprep.subr.bf16.mxu0 0
      %465 = vmatpush1.bf16.xpose.msra.mxu0 0
      %466 = vmatprep.mubr.bf16.mxu0 0
      %467 = vmatmul.mubr.bf16.gmra.mrb[0].mxu0 %v429
      %v468 = vpop.f32.mrb[0].mxu0
      %v469 = vadd.f32 %v425, %v468
      %v470 = vpop.f32.mrb[0].mxu0
      %v471 = vpop.f32.mrb[0].mxu0
      %v472 = vpop.f32.mrb[0].mxu0
      %473 = vdwg.mxu0
      %vm474 = vcmask 130048
      %v475 = vsel %vm474, %v469, -inf
      %476 = vmax.xlane.f32.xlu0 %v475
      %v477 = vpop.xlane.xlu0 %476
      %v478 = vsub.f32 %v469, %v477
      %v479 = vmul.f32 %v478, 1.442695
      %v480 = vpow.pop %v479
      %v481 = vsel %vm474, %v480, 0.0
      %482 = vadd.xlane.f32.xlu0 %v481
      %v483 = vpop.xlane.xlu0 %482
      %v484 = vrcp.pop %v483
      %v485 = vmul.f32 %v480, %v484
      %v486 = vpack.c.bf16 %v485, %v485
      %v487 = vpack.c.bf16 %v413, %v412
      %v489 = vsel %vm474, %v486, 0
      %491 = vmatprep.subr.bf16.mxu0 0
      %492 = vmatpush1.bf16.msra.mxu0 %v487
      %493 = vmatprep.subr.bf16.mxu0 0
      %494 = vmatpush1.bf16.msra.mxu0 0
      %495 = vmatprep.subr.bf16.mxu0 0
      %496 = vmatpush1.bf16.msra.mxu0 0
      %497 = vmatprep.subr.bf16.mxu0 0
      %498 = vmatpush1.bf16.msra.mxu0 0
      %499 = vmatprep.subr.bf16.mxu0 0
      %500 = vmatpush1.bf16.msra.mxu0 0
      %501 = vmatprep.subr.bf16.mxu0 0
      %502 = vmatpush1.bf16.msra.mxu0 0
      %503 = vmatprep.subr.bf16.mxu0 0
      %504 = vmatpush1.bf16.msra.mxu0 0
      %505 = vmatprep.subr.bf16.mxu0 0
      %506 = vmatpush1.bf16.msra.mxu0 0
      %507 = vmatprep.subr.bf16.mxu0 0
      %508 = vmatpush1.bf16.msra.mxu0 0
      %509 = vmatprep.subr.bf16.mxu0 0
      %510 = vmatpush1.bf16.msra.mxu0 0
      %511 = vmatprep.subr.bf16.mxu0 0
      %512 = vmatpush1.bf16.msra.mxu0 0
      %513 = vmatprep.subr.bf16.mxu0 0
      %514 = vmatpush1.bf16.msra.mxu0 0
      %515 = vmatprep.subr.bf16.mxu0 0
      %516 = vmatpush1.bf16.msra.mxu0 0
      %517 = vmatprep.subr.bf16.mxu0 0
      %518 = vmatpush1.bf16.msra.mxu0 0
      %519 = vmatprep.subr.bf16.mxu0 0
      %520 = vmatpush1.bf16.msra.mxu0 0
      %521 = vmatprep.subr.bf16.mxu0 0
      %522 = vmatpush1.bf16.msra.mxu0 0
      %523 = vmatprep.mubr.bf16.mxu0 0
      %524 = vmatmul.mubr.bf16.gmra.mrb[0].mxu0 %v489
      %v525 = vpop.f32.mrb[0].mxu0
      %v526 = vadd.f32 0.0, %v525
      %v527 = vpop.f32.mrb[0].mxu0
      %v528 = vpop.f32.mrb[0].mxu0
      %v529 = vpop.f32.mrb[0].mxu0
      %530 = vdwg.mxu0
      %v531 = vpack.c.bf16 %v526, %v526
      %v533 = vsel %vm427, %v531, 0
      %vm535 = vcmask 1043456
      %v537 = vsel %vm535, %v415, 0
      %539 = vmatprep.subr.bf16.mxu0 0
      %540 = vmatpush1.bf16.msra.mxu0 %v537
      %541 = vmatprep.subr.bf16.mxu0 0
      %542 = vmatpush1.bf16.msra.mxu0 0
      %543 = vmatprep.subr.bf16.mxu0 0
      %544 = vmatpush1.bf16.msra.mxu0 0
      %545 = vmatprep.subr.bf16.mxu0 0
      %546 = vmatpush1.bf16.msra.mxu0 0
      %547 = vmatprep.subr.bf16.mxu0 0
      %548 = vmatpush1.bf16.msra.mxu0 0
      %549 = vmatprep.subr.bf16.mxu0 0
      %550 = vmatpush1.bf16.msra.mxu0 0
      %551 = vmatprep.subr.bf16.mxu0 0
      %552 = vmatpush1.bf16.msra.mxu0 0
      %553 = vmatprep.subr.bf16.mxu0 0
      %554 = vmatpush1.bf16.msra.mxu0 0
      %555 = vmatprep.subr.bf16.mxu0 0
      %556 = vmatpush1.bf16.msra.mxu0 0
      %557 = vmatprep.subr.bf16.mxu0 0
      %558 = vmatpush1.bf16.msra.mxu0 0
      %559 = vmatprep.subr.bf16.mxu0 0
      %560 = vmatpush1.bf16.msra.mxu0 0
      %561 = vmatprep.subr.bf16.mxu0 0
      %562 = vmatpush1.bf16.msra.mxu0 0
      %563 = vmatprep.subr.bf16.mxu0 0
      %564 = vmatpush1.bf16.msra.mxu0 0
      %565 = vmatprep.subr.bf16.mxu0 0
      %566 = vmatpush1.bf16.msra.mxu0 0
      %567 = vmatprep.subr.bf16.mxu0 0
      %568 = vmatpush1.bf16.msra.mxu0 0
      %569 = vmatprep.subr.bf16.mxu0 0
      %570 = vmatpush1.bf16.msra.mxu0 0
      %571 = vmatprep.mubr.bf16.mxu0 0
      %572 = vmatmul.mubr.bf16.gmra.mrb[0].mxu0 %v533
      %v573 = vpop.f32.mrb[0].mxu0
      %v574 = vadd.f32 0.0, %v573
      %v575 = vpop.f32.mrb[0].mxu0
      %v576 = vpop.f32.mrb[0].mxu0
      %v577 = vpop.f32.mrb[0].mxu0
      %578 = vdwg.mxu0
      %v579 = vadd.f32 %v408, %v574
      %581 = vrot.lane.b32.xlu0 %v419, 120
      %v582 = vpop.permute.xlu0 %581
      %584 = vrot.lane.b32.xlu0 %v420, 120
      %v585 = vpop.permute.xlu0 %584
      %v587 = vsel %vm427, %v582, 0
      %v590 = vsel %vm427, %v585, 0
      %592 = vmatprep.subr.bf16.mxu0 0
      %593 = vmatpush1.bf16.xpose.msra.mxu0 %v590
      %594 = vmatprep.subr.bf16.mxu0 0
      %595 = vmatpush1.bf16.xpose.msra.mxu0 0
      %596 = vmatprep.subr.bf16.mxu0 0
      %597 = vmatpush1.bf16.xpose.msra.mxu0 0
      %598 = vmatprep.subr.bf16.mxu0 0
      %599 = vmatpush1.bf16.xpose.msra.mxu0 0
      %600 = vmatprep.subr.bf16.mxu0 0
      %601 = vmatpush1.bf16.xpose.msra.mxu0 0
      %602 = vmatprep.subr.bf16.mxu0 0
      %603 = vmatpush1.bf16.xpose.msra.mxu0 0
      %604 = vmatprep.subr.bf16.mxu0 0
      %605 = vmatpush1.bf16.xpose.msra.mxu0 0
      %606 = vmatprep.subr.bf16.mxu0 0
      %607 = vmatpush1.bf16.xpose.msra.mxu0 0
      %608 = vmatprep.subr.bf16.mxu0 0
      %609 = vmatpush1.bf16.xpose.msra.mxu0 0
      %610 = vmatprep.subr.bf16.mxu0 0
      %611 = vmatpush1.bf16.xpose.msra.mxu0 0
      %612 = vmatprep.subr.bf16.mxu0 0
      %613 = vmatpush1.bf16.xpose.msra.mxu0 0
      %614 = vmatprep.subr.bf16.mxu0 0
      %615 = vmatpush1.bf16.xpose.msra.mxu0 0
      %616 = vmatprep.subr.bf16.mxu0 0
      %617 = vmatpush1.bf16.xpose.msra.mxu0 0
      %618 = vmatprep.subr.bf16.mxu0 0
      %619 = vmatpush1.bf16.xpose.msra.mxu0 0
      %620 = vmatprep.subr.bf16.mxu0 0
      %621 = vmatpush1.bf16.xpose.msra.mxu0 0
      %622 = vmatprep.subr.bf16.mxu0 0
      %623 = vmatpush1.bf16.xpose.msra.mxu0 0
      %624 = vmatprep.mubr.bf16.mxu0 0
      %625 = vmatmul.mubr.bf16.gmra.mrb[0].mxu0 %v587
      %v626 = vpop.f32.mrb[0].mxu0
      %v627 = vadd.f32 %v425, %v626
      %v628 = vpop.f32.mrb[0].mxu0
      %v629 = vpop.f32.mrb[0].mxu0
      %v630 = vpop.f32.mrb[0].mxu0
      %631 = vdwg.mxu0
      %v632 = vsel %vm474, %v627, -inf
      %633 = vmax.xlane.f32.xlu0 %v632
      %v634 = vpop.xlane.xlu0 %633
      %v635 = vsub.f32 %v627, %v634
      %v636 = vmul.f32 %v635, 1.442695
      %v637 = vpow.pop %v636
      %v638 = vsel %vm474, %v637, 0.0
      %639 = vadd.xlane.f32.xlu0 %v638
      %v640 = vpop.xlane.xlu0 %639
      %v641 = vrcp.pop %v640
      %v642 = vmul.f32 %v637, %v641
      %v643 = vpack.c.bf16 %v642, %v642
      %645 = vrot.lane.b32.xlu0 %v487, 120
      %v646 = vpop.permute.xlu0 %645
      %v649 = vsel %vm474, %v643, 0
      %651 = vmatprep.subr.bf16.mxu0 0
      %652 = vmatpush1.bf16.msra.mxu0 %v646
      %653 = vmatprep.subr.bf16.mxu0 0
      %654 = vmatpush1.bf16.msra.mxu0 0
      %655 = vmatprep.subr.bf16.mxu0 0
      %656 = vmatpush1.bf16.msra.mxu0 0
      %657 = vmatprep.subr.bf16.mxu0 0
      %658 = vmatpush1.bf16.msra.mxu0 0
      %659 = vmatprep.subr.bf16.mxu0 0
      %660 = vmatpush1.bf16.msra.mxu0 0
      %661 = vmatprep.subr.bf16.mxu0 0
      %662 = vmatpush1.bf16.msra.mxu0 0
      %663 = vmatprep.subr.bf16.mxu0 0
      %664 = vmatpush1.bf16.msra.mxu0 0
      %665 = vmatprep.subr.bf16.mxu0 0
      %666 = vmatpush1.bf16.msra.mxu0 0
      %667 = vmatprep.subr.bf16.mxu0 0
      %668 = vmatpush1.bf16.msra.mxu0 0
      %669 = vmatprep.subr.bf16.mxu0 0
      %670 = vmatpush1.bf16.msra.mxu0 0
      %671 = vmatprep.subr.bf16.mxu0 0
      %672 = vmatpush1.bf16.msra.mxu0 0
      %673 = vmatprep.subr.bf16.mxu0 0
      %674 = vmatpush1.bf16.msra.mxu0 0
      %675 = vmatprep.subr.bf16.mxu0 0
      %676 = vmatpush1.bf16.msra.mxu0 0
      %677 = vmatprep.subr.bf16.mxu0 0
      %678 = vmatpush1.bf16.msra.mxu0 0
      %679 = vmatprep.subr.bf16.mxu0 0
      %680 = vmatpush1.bf16.msra.mxu0 0
      %681 = vmatprep.subr.bf16.mxu0 0
      %682 = vmatpush1.bf16.msra.mxu0 0
      %683 = vmatprep.mubr.bf16.mxu0 0
      %684 = vmatmul.mubr.bf16.gmra.mrb[0].mxu0 %v649
      %v685 = vpop.f32.mrb[0].mxu0
      %v686 = vadd.f32 0.0, %v685
      %v687 = vpop.f32.mrb[0].mxu0
      %v688 = vpop.f32.mrb[0].mxu0
      %v689 = vpop.f32.mrb[0].mxu0
      %690 = vdwg.mxu0
      %v691 = vpack.c.bf16 %v686, %v686
      %v693 = vsel %vm427, %v691, 0
      %v696 = vsel %vm535, %v416, 0
      %698 = vmatprep.subr.bf16.mxu0 0
      %699 = vmatpush1.bf16.msra.mxu0 %v696
      %700 = vmatprep.subr.bf16.mxu0 0
      %701 = vmatpush1.bf16.msra.mxu0 0
      %702 = vmatprep.subr.bf16.mxu0 0
      %703 = vmatpush1.bf16.msra.mxu0 0
      %704 = vmatprep.subr.bf16.mxu0 0
      %705 = vmatpush1.bf16.msra.mxu0 0
      %706 = vmatprep.subr.bf16.mxu0 0
      %707 = vmatpush1.bf16.msra.mxu0 0
      %708 = vmatprep.subr.bf16.mxu0 0
      %709 = vmatpush1.bf16.msra.mxu0 0
      %710 = vmatprep.subr.bf16.mxu0 0
      %711 = vmatpush1.bf16.msra.mxu0 0
      %712 = vmatprep.subr.bf16.mxu0 0
      %713 = vmatpush1.bf16.msra.mxu0 0
      %714 = vmatprep.subr.bf16.mxu0 0
      %715 = vmatpush1.bf16.msra.mxu0 0
      %716 = vmatprep.subr.bf16.mxu0 0
      %717 = vmatpush1.bf16.msra.mxu0 0
      %718 = vmatprep.subr.bf16.mxu0 0
      %719 = vmatpush1.bf16.msra.mxu0 0
      %720 = vmatprep.subr.bf16.mxu0 0
      %721 = vmatpush1.bf16.msra.mxu0 0
      %722 = vmatprep.subr.bf16.mxu0 0
      %723 = vmatpush1.bf16.msra.mxu0 0
      %724 = vmatprep.subr.bf16.mxu0 0
      %725 = vmatpush1.bf16.msra.mxu0 0
      %726 = vmatprep.subr.bf16.mxu0 0
      %727 = vmatpush1.bf16.msra.mxu0 0
      %728 = vmatprep.subr.bf16.mxu0 0
      %729 = vmatpush1.bf16.msra.mxu0 0
      %730 = vmatprep.mubr.bf16.mxu0 0
      %731 = vmatmul.mubr.bf16.gmra.mrb[0].mxu0 %v693
      %v732 = vpop.f32.mrb[0].mxu0
      %v733 = vadd.f32 0.0, %v732
      %v734 = vpop.f32.mrb[0].mxu0
      %v735 = vpop.f32.mrb[0].mxu0
      %v736 = vpop.f32.mrb[0].mxu0
      %737 = vdwg.mxu0
      %v738 = vadd.f32 %v579, %v733
      %739 = vrot.lane.b32.xlu0 %v419, 112
      %v740 = vpop.permute.xlu0 %739
      %741 = vrot.lane.b32.xlu0 %v420, 112
      %v742 = vpop.permute.xlu0 %741
      %v744 = vsel %vm427, %v740, 0
      %v747 = vsel %vm427, %v742, 0
      %749 = vmatprep.subr.bf16.mxu0 0
      %750 = vmatpush1.bf16.xpose.msra.mxu0 %v747
      %751 = vmatprep.subr.bf16.mxu0 0
      %752 = vmatpush1.bf16.xpose.msra.mxu0 0
      %753 = vmatprep.subr.bf16.mxu0 0
      %754 = vmatpush1.bf16.xpose.msra.mxu0 0
      %755 = vmatprep.subr.bf16.mxu0 0
      %756 = vmatpush1.bf16.xpose.msra.mxu0 0
      %757 = vmatprep.subr.bf16.mxu0 0
      %758 = vmatpush1.bf16.xpose.msra.mxu0 0
      %759 = vmatprep.subr.bf16.mxu0 0
      %760 = vmatpush1.bf16.xpose.msra.mxu0 0
      %761 = vmatprep.subr.bf16.mxu0 0
      %762 = vmatpush1.bf16.xpose.msra.mxu0 0
      %763 = vmatprep.subr.bf16.mxu0 0
      %764 = vmatpush1.bf16.xpose.msra.mxu0 0
      %765 = vmatprep.subr.bf16.mxu0 0
      %766 = vmatpush1.bf16.xpose.msra.mxu0 0
      %767 = vmatprep.subr.bf16.mxu0 0
      %768 = vmatpush1.bf16.xpose.msra.mxu0 0
      %769 = vmatprep.subr.bf16.mxu0 0
      %770 = vmatpush1.bf16.xpose.msra.mxu0 0
      %771 = vmatprep.subr.bf16.mxu0 0
      %772 = vmatpush1.bf16.xpose.msra.mxu0 0
      %773 = vmatprep.subr.bf16.mxu0 0
      %774 = vmatpush1.bf16.xpose.msra.mxu0 0
      %775 = vmatprep.subr.bf16.mxu0 0
      %776 = vmatpush1.bf16.xpose.msra.mxu0 0
      %777 = vmatprep.subr.bf16.mxu0 0
      %778 = vmatpush1.bf16.xpose.msra.mxu0 0
      %779 = vmatprep.subr.bf16.mxu0 0
      %780 = vmatpush1.bf16.xpose.msra.mxu0 0
      %781 = vmatprep.mubr.bf16.mxu0 0
      %782 = vmatmul.mubr.bf16.gmra.mrb[0].mxu0 %v744
      %v783 = vpop.f32.mrb[0].mxu0
      %v784 = vadd.f32 %v425, %v783
      %v785 = vpop.f32.mrb[0].mxu0
      %v786 = vpop.f32.mrb[0].mxu0
      %v787 = vpop.f32.mrb[0].mxu0
      %788 = vdwg.mxu0
      %v789 = vsel %vm474, %v784, -inf
      %790 = vmax.xlane.f32.xlu0 %v789
      %v791 = vpop.xlane.xlu0 %790
      %v792 = vsub.f32 %v784, %v791
      %v793 = vmul.f32 %v792, 1.442695
      %v794 = vpow.pop %v793
      %v795 = vsel %vm474, %v794, 0.0
      %796 = vadd.xlane.f32.xlu0 %v795
      %v797 = vpop.xlane.xlu0 %796
      %v798 = vrcp.pop %v797
      %v799 = vmul.f32 %v794, %v798
      %v800 = vpack.c.bf16 %v799, %v799
      %801 = vrot.lane.b32.xlu0 %v487, 112
      %v802 = vpop.permute.xlu0 %801
      %v805 = vsel %vm474, %v800, 0
      %807 = vmatprep.subr.bf16.mxu0 0
      %808 = vmatpush1.bf16.msra.mxu0 %v802
      %809 = vmatprep.subr.bf16.mxu0 0
      %810 = vmatpush1.bf16.msra.mxu0 0
      %811 = vmatprep.subr.bf16.mxu0 0
      %812 = vmatpush1.bf16.msra.mxu0 0
      %813 = vmatprep.subr.bf16.mxu0 0
      %814 = vmatpush1.bf16.msra.mxu0 0
      %815 = vmatprep.subr.bf16.mxu0 0
      %816 = vmatpush1.bf16.msra.mxu0 0
      %817 = vmatprep.subr.bf16.mxu0 0
      %818 = vmatpush1.bf16.msra.mxu0 0
      %819 = vmatprep.subr.bf16.mxu0 0
      %820 = vmatpush1.bf16.msra.mxu0 0
      %821 = vmatprep.subr.bf16.mxu0 0
      %822 = vmatpush1.bf16.msra.mxu0 0
      %823 = vmatprep.subr.bf16.mxu0 0
      %824 = vmatpush1.bf16.msra.mxu0 0
      %825 = vmatprep.subr.bf16.mxu0 0
      %826 = vmatpush1.bf16.msra.mxu0 0
      %827 = vmatprep.subr.bf16.mxu0 0
      %828 = vmatpush1.bf16.msra.mxu0 0
      %829 = vmatprep.subr.bf16.mxu0 0
      %830 = vmatpush1.bf16.msra.mxu0 0
      %831 = vmatprep.subr.bf16.mxu0 0
      %832 = vmatpush1.bf16.msra.mxu0 0
      %833 = vmatprep.subr.bf16.mxu0 0
      %834 = vmatpush1.bf16.msra.mxu0 0
      %835 = vmatprep.subr.bf16.mxu0 0
      %836 = vmatpush1.bf16.msra.mxu0 0
      %837 = vmatprep.subr.bf16.mxu0 0
      %838 = vmatpush1.bf16.msra.mxu0 0
      %839 = vmatprep.mubr.bf16.mxu0 0
      %840 = vmatmul.mubr.bf16.gmra.mrb[0].mxu0 %v805
      %v841 = vpop.f32.mrb[0].mxu0
      %v842 = vadd.f32 0.0, %v841
      %v843 = vpop.f32.mrb[0].mxu0
      %v844 = vpop.f32.mrb[0].mxu0
      %v845 = vpop.f32.mrb[0].mxu0
      %846 = vdwg.mxu0
      %v847 = vpack.c.bf16 %v842, %v842
      %v849 = vsel %vm427, %v847, 0
      %v852 = vsel %vm535, %v417, 0
      %854 = vmatprep.subr.bf16.mxu0 0
      %855 = vmatpush1.bf16.msra.mxu0 %v852
      %856 = vmatprep.subr.bf16.mxu0 0
      %857 = vmatpush1.bf16.msra.mxu0 0
      %858 = vmatprep.subr.bf16.mxu0 0
      %859 = vmatpush1.bf16.msra.mxu0 0
      %860 = vmatprep.subr.bf16.mxu0 0
      %861 = vmatpush1.bf16.msra.mxu0 0
      %862 = vmatprep.subr.bf16.mxu0 0
      %863 = vmatpush1.bf16.msra.mxu0 0
      %864 = vmatprep.subr.bf16.mxu0 0
      %865 = vmatpush1.bf16.msra.mxu0 0
      %866 = vmatprep.subr.bf16.mxu0 0
      %867 = vmatpush1.bf16.msra.mxu0 0
      %868 = vmatprep.subr.bf16.mxu0 0
      %869 = vmatpush1.bf16.msra.mxu0 0
      %870 = vmatprep.subr.bf16.mxu0 0
      %871 = vmatpush1.bf16.msra.mxu0 0
      %872 = vmatprep.subr.bf16.mxu0 0
      %873 = vmatpush1.bf16.msra.mxu0 0
      %874 = vmatprep.subr.bf16.mxu0 0
      %875 = vmatpush1.bf16.msra.mxu0 0
      %876 = vmatprep.subr.bf16.mxu0 0
      %877 = vmatpush1.bf16.msra.mxu0 0
      %878 = vmatprep.subr.bf16.mxu0 0
      %879 = vmatpush1.bf16.msra.mxu0 0
      %880 = vmatprep.subr.bf16.mxu0 0
      %881 = vmatpush1.bf16.msra.mxu0 0
      %882 = vmatprep.subr.bf16.mxu0 0
      %883 = vmatpush1.bf16.msra.mxu0 0
      %884 = vmatprep.subr.bf16.mxu0 0
      %885 = vmatpush1.bf16.msra.mxu0 0
      %886 = vmatprep.mubr.bf16.mxu0 0
      %887 = vmatmul.mubr.bf16.gmra.mrb[0].mxu0 %v849
      %v888 = vpop.f32.mrb[0].mxu0
      %v889 = vadd.f32 0.0, %v888
      %v890 = vpop.f32.mrb[0].mxu0
      %v891 = vpop.f32.mrb[0].mxu0
      %v892 = vpop.f32.mrb[0].mxu0
      %893 = vdwg.mxu0
      %v894 = vadd.f32 %v738, %v889
      %895 = vrot.lane.b32.xlu0 %v419, 104
      %v896 = vpop.permute.xlu0 %895
      %897 = vrot.lane.b32.xlu0 %v420, 104
      %v898 = vpop.permute.xlu0 %897
      %v900 = vsel %vm427, %v896, 0
      %v903 = vsel %vm427, %v898, 0
      %905 = vmatprep.subr.bf16.mxu0 0
      %906 = vmatpush1.bf16.xpose.msra.mxu0 %v903
      %907 = vmatprep.subr.bf16.mxu0 0
      %908 = vmatpush1.bf16.xpose.msra.mxu0 0
      %909 = vmatprep.subr.bf16.mxu0 0
      %910 = vmatpush1.bf16.xpose.msra.mxu0 0
      %911 = vmatprep.subr.bf16.mxu0 0
      %912 = vmatpush1.bf16.xpose.msra.mxu0 0
      %913 = vmatprep.subr.bf16.mxu0 0
      %914 = vmatpush1.bf16.xpose.msra.mxu0 0
      %915 = vmatprep.subr.bf16.mxu0 0
      %916 = vmatpush1.bf16.xpose.msra.mxu0 0
      %917 = vmatprep.subr.bf16.mxu0 0
      %918 = vmatpush1.bf16.xpose.msra.mxu0 0
      %919 = vmatprep.subr.bf16.mxu0 0
      %920 = vmatpush1.bf16.xpose.msra.mxu0 0
      %921 = vmatprep.subr.bf16.mxu0 0
      %922 = vmatpush1.bf16.xpose.msra.mxu0 0
      %923 = vmatprep.subr.bf16.mxu0 0
      %924 = vmatpush1.bf16.xpose.msra.mxu0 0
      %925 = vmatprep.subr.bf16.mxu0 0
      %926 = vmatpush1.bf16.xpose.msra.mxu0 0
      %927 = vmatprep.subr.bf16.mxu0 0
      %928 = vmatpush1.bf16.xpose.msra.mxu0 0
      %929 = vmatprep.subr.bf16.mxu0 0
      %930 = vmatpush1.bf16.xpose.msra.mxu0 0
      %931 = vmatprep.subr.bf16.mxu0 0
      %932 = vmatpush1.bf16.xpose.msra.mxu0 0
      %933 = vmatprep.subr.bf16.mxu0 0
      %934 = vmatpush1.bf16.xpose.msra.mxu0 0
      %935 = vmatprep.subr.bf16.mxu0 0
      %936 = vmatpush1.bf16.xpose.msra.mxu0 0
      %937 = vmatprep.mubr.bf16.mxu0 0
      %938 = vmatmul.mubr.bf16.gmra.mrb[0].mxu0 %v900
      %v939 = vpop.f32.mrb[0].mxu0
      %v940 = vadd.f32 %v425, %v939
      %v941 = vpop.f32.mrb[0].mxu0
      %v942 = vpop.f32.mrb[0].mxu0
      %v943 = vpop.f32.mrb[0].mxu0
      %944 = vdwg.mxu0
      %v945 = vsel %vm474, %v940, -inf
      %946 = vmax.xlane.f32.xlu0 %v945
      %v947 = vpop.xlane.xlu0 %946
      %v948 = vsub.f32 %v940, %v947
      %v949 = vmul.f32 %v948, 1.442695
      %v950 = vpow.pop %v949
      %v951 = vsel %vm474, %v950, 0.0
      %952 = vadd.xlane.f32.xlu0 %v951
      %v953 = vpop.xlane.xlu0 %952
      %v954 = vrcp.pop %v953
      %v955 = vmul.f32 %v950, %v954
      %v956 = vpack.c.bf16 %v955, %v955
      %957 = vrot.lane.b32.xlu0 %v487, 104
      %v958 = vpop.permute.xlu0 %957
      %v961 = vsel %vm474, %v956, 0
      %963 = vmatprep.subr.bf16.mxu0 0
      %964 = vmatpush1.bf16.msra.mxu0 %v958
      %965 = vmatprep.subr.bf16.mxu0 0
      %966 = vmatpush1.bf16.msra.mxu0 0
      %967 = vmatprep.subr.bf16.mxu0 0
      %968 = vmatpush1.bf16.msra.mxu0 0
      %969 = vmatprep.subr.bf16.mxu0 0
      %970 = vmatpush1.bf16.msra.mxu0 0
      %971 = vmatprep.subr.bf16.mxu0 0
      %972 = vmatpush1.bf16.msra.mxu0 0
      %973 = vmatprep.subr.bf16.mxu0 0
      %974 = vmatpush1.bf16.msra.mxu0 0
      %975 = vmatprep.subr.bf16.mxu0 0
      %976 = vmatpush1.bf16.msra.mxu0 0
      %977 = vmatprep.subr.bf16.mxu0 0
      %978 = vmatpush1.bf16.msra.mxu0 0
      %979 = vmatprep.subr.bf16.mxu0 0
      %980 = vmatpush1.bf16.msra.mxu0 0
      %981 = vmatprep.subr.bf16.mxu0 0
      %982 = vmatpush1.bf16.msra.mxu0 0
      %983 = vmatprep.subr.bf16.mxu0 0
      %984 = vmatpush1.bf16.msra.mxu0 0
      %985 = vmatprep.subr.bf16.mxu0 0
      %986 = vmatpush1.bf16.msra.mxu0 0
      %987 = vmatprep.subr.bf16.mxu0 0
      %988 = vmatpush1.bf16.msra.mxu0 0
      %989 = vmatprep.subr.bf16.mxu0 0
      %990 = vmatpush1.bf16.msra.mxu0 0
      %991 = vmatprep.subr.bf16.mxu0 0
      %992 = vmatpush1.bf16.msra.mxu0 0
      %993 = vmatprep.subr.bf16.mxu0 0
      %994 = vmatpush1.bf16.msra.mxu0 0
      %995 = vmatprep.mubr.bf16.mxu0 0
      %996 = vmatmul.mubr.bf16.gmra.mrb[0].mxu0 %v961
      %v997 = vpop.f32.mrb[0].mxu0
      %v998 = vadd.f32 0.0, %v997
      %v999 = vpop.f32.mrb[0].mxu0
      %v1000 = vpop.f32.mrb[0].mxu0
      %v1001 = vpop.f32.mrb[0].mxu0
      %1002 = vdwg.mxu0
      %v1003 = vpack.c.bf16 %v998, %v998
      %v1005 = vsel %vm427, %v1003, 0
      %v1008 = vsel %vm535, %v418, 0
      %1010 = vmatprep.subr.bf16.mxu0 0
      %1011 = vmatpush1.bf16.msra.mxu0 %v1008
      %1012 = vmatprep.subr.bf16.mxu0 0
      %1013 = vmatpush1.bf16.msra.mxu0 0
      %1014 = vmatprep.subr.bf16.mxu0 0
      %1015 = vmatpush1.bf16.msra.mxu0 0
      %1016 = vmatprep.subr.bf16.mxu0 0
      %1017 = vmatpush1.bf16.msra.mxu0 0
      %1018 = vmatprep.subr.bf16.mxu0 0
      %1019 = vmatpush1.bf16.msra.mxu0 0
      %1020 = vmatprep.subr.bf16.mxu0 0
      %1021 = vmatpush1.bf16.msra.mxu0 0
      %1022 = vmatprep.subr.bf16.mxu0 0
      %1023 = vmatpush1.bf16.msra.mxu0 0
      %1024 = vmatprep.subr.bf16.mxu0 0
      %1025 = vmatpush1.bf16.msra.mxu0 0
      %1026 = vmatprep.subr.bf16.mxu0 0
      %1027 = vmatpush1.bf16.msra.mxu0 0
      %1028 = vmatprep.subr.bf16.mxu0 0
      %1029 = vmatpush1.bf16.msra.mxu0 0
      %1030 = vmatprep.subr.bf16.mxu0 0
      %1031 = vmatpush1.bf16.msra.mxu0 0
      %1032 = vmatprep.subr.bf16.mxu0 0
      %1033 = vmatpush1.bf16.msra.mxu0 0
      %1034 = vmatprep.subr.bf16.mxu0 0
      %1035 = vmatpush1.bf16.msra.mxu0 0
      %1036 = vmatprep.subr.bf16.mxu0 0
      %1037 = vmatpush1.bf16.msra.mxu0 0
      %1038 = vmatprep.subr.bf16.mxu0 0
      %1039 = vmatpush1.bf16.msra.mxu0 0
      %1040 = vmatprep.subr.bf16.mxu0 0
      %1041 = vmatpush1.bf16.msra.mxu0 0
      %1042 = vmatprep.mubr.bf16.mxu0 0
      %1043 = vmatmul.mubr.bf16.gmra.mrb[0].mxu0 %v1005
      %v1044 = vpop.f32.mrb[0].mxu0
      %v1045 = vadd.f32 0.0, %v1044
      %v1046 = vpop.f32.mrb[0].mxu0
      %v1047 = vpop.f32.mrb[0].mxu0
      %v1048 = vpop.f32.mrb[0].mxu0
      %1049 = vdwg.mxu0
      %v1050 = vadd.f32 %v894, %v1045
      %v1051 = vld [vmem:[%s7] sm:$0x1]
      %v1052 = vld [vmem:[%s8] sm:$0x1]
      %vm1053 = vcmask 261120
      %v1054 = vsel %vm1053, %v1050, 0.0
      %1055 = vadd.xlane.f32.xlu0 %v1054
      %v1056 = vpop.xlane.xlu0 %1055
      %v1057 = vrcp.pop 32.0
      %v1058 = vmul.f32 %v1056, %v1057
      %v1059 = vsub.f32 %v1050, %v1058
      %v1060 = vmul.f32 %v1059, %v1059
      %v1061 = vsel %vm1053, %v1060, 0.0
      %1062 = vadd.xlane.f32.xlu0 %v1061
      %v1063 = vpop.xlane.xlu0 %1062
      %v1064 = vmul.f32 %v1063, %v1057
      %v1065 = vadd.f32 %v1064, 1e-05
      %v1066 = vrsqrt.pop %v1065
      %v1067 = vmul.f32 %v1059, %v1066
      %v1069 = vlaneseq
      %v1070 = vshrl.u32 %v1069, 7
      %v1071 = vsub.s32 0, %v1070
      %v1072 = vrot.slane %v1051, %v1071
      %v1074 = vmul.f32 %v1067, %v1072
      %v1076 = vlaneseq
      %v1077 = vshrl.u32 %v1076, 7
      %v1078 = vsub.s32 0, %v1077
      %v1079 = vrot.slane %v1052, %v1078
      %v1081 = vadd.f32 %v1074, %v1079
      %1082 = vst.msk [vmem:[%s398] sm:$0xff] %vm1053, %v1081
      %p1083 = scmp.lt.s32.totalorder %s20, 1
      %s1084 = scalar_select %p1083, %s20, 1
      %s1085 = smul.addr %s1084, 8
      %s1086 = scalar_lea.vmem %s9, %s1085
      // Predicated region
      $region57: #{global_decoder_layer.10} parent=55 // pred_check
        %p1087 = pneg %p252
      $region58: #{global_decoder_layer.10} parent=55 // pred_check_branch
        %1089 = sbr.rel (%p1087) target = $region60
      $region59: #{global_decoder_layer.10} parent=55 // pred_region
        _
      $region60: #{global_decoder_layer.10} parent=55 // pred_fallthru
        _
    $region56: #{global_decoder_layer.10} parent=5 // pred_fallthru
      _
    %p1090 = scmp.le.s32.totalorder 2, %s15
    // Predicated region
    $region61: #{global_decoder_layer.10} parent=5 // pred_check
      %p1091 = pneg %p1090
    $region62: #{global_decoder_layer.10} parent=5 // pred_check_branch
      %1093 = sbr.rel (%p1091) target = $region64
    $region63: #{global_decoder_layer.10} parent=5 // pred_region
      %s1094 = ssub.s32 %s15, 2
      // Predicated region
      $region65: #{global_decoder_layer.10} parent=63 // pred_check
        %p1095 = pneg %p258
      $region66: #{global_decoder_layer.10} parent=63 // pred_check_branch
        %1097 = sbr.rel (%p1095) target = $region68
      $region67: #{global_decoder_layer.10} parent=63 // pred_region
        %p1098 = scmp.lt.s32.totalorder %s21, 1
        %s1099 = scalar_select %p1098, %s21, 1
        %s1100 = smul.addr %s1099, 8
        %s1101 = scalar_lea.vmem %s9, %s1100
      $region68: #{global_decoder_layer.10} parent=63 // pred_fallthru
        _
    $region64: #{global_decoder_layer.10} parent=5 // pred_fallthru
      _
  $region6: #{global_decoder_layer.10} parent=0 // loop_footer
    %s19 = sadd.s32 1, %s15
  $region7: #{global_decoder_layer.10} parent=0 // loop_footer_branch
    %14 = sbr.rel target = $region3
  $region8: #{global_decoder_layer.10} parent=0 // loop_exit
    _

</llo_original>
